<compile_context>
chip_gen: v5e
topology: v5e:2x2
jax: 0.10.0
libtpu: 0.0.40
codegen_flags: <defaults>
</compile_context>

<pallas_src>
import jax
import jax.numpy as jnp
from jax.experimental import pallas as pl
from jax.experimental.pallas import tpu as pltpu


HIDDEN_UNITS = 128        # from Network_Wrapper.__init__
BACKBONE_OUT = 1000       # `model` is assumed to be an ImageNet-style 1000-d classifier


def _round_up(x, m):
    return (x + m - 1) // m * m


def _pad_to(a, shape):
    pads = [(0, t - s) for s, t in zip(a.shape, shape)]
    return jnp.pad(a, pads)


def _wrapper_kernel(x_ref, w0_ref, b0_ref, w1_ref, b1_ref, w2_ref, b2_ref, o_ref):
    # backbone stand-in: feats = x @ W0 + b0            -> [TM, 1024]  (f32 accum)
    feats = jnp.dot(x_ref[...], w0_ref[...], preferred_element_type=jnp.float32)
    feats = feats + b0_ref[...]
    # fc[0]: ReLU (f32 on the VPU)
    h = jnp.maximum(feats, 0.0)
    # fc[1]: Linear(1024 -> 128), bf16 operands, f32 accumulation
    h = jnp.dot(h.astype(jnp.bfloat16), w1_ref[...],
                preferred_element_type=jnp.float32) + b1_ref[...]
    # fc[2]: ReLU
    h = jnp.maximum(h, 0.0)
    # fc[3]: Linear(128 -> num_class_padded)
    out = jnp.dot(h.astype(jnp.bfloat16), w2_ref[...],
                  preferred_element_type=jnp.float32) + b2_ref[...]
    o_ref[...] = out.astype(o_ref.dtype)


def network_wrapper_forward(x_nchw, params):
    """x_nchw: [B, C, H, W] float32. params: dict of f32 weights/biases."""
    B = x_nchw.shape[0]
    x_flat = x_nchw.reshape(B, -1)            # flatten NCHW -> [B, C*H*W]
    K = x_flat.shape[1]
    num_class = params["w2"].shape[1]

    # lane-aligned padded dims
    K_pad = _round_up(K, 128)
    NB = _round_up(BACKBONE_OUT, 128)         # 1024
    NH = _round_up(HIDDEN_UNITS, 128)         # 128
    NC = _round_up(num_class, 128)            # 128

    # batch tile: sublane-aligned (>=8), capped at 128 rows per grid step
    if B <= 128:
        TM = max(8, _round_up(B, 8))
    else:
        TM = 128
    B_pad = _round_up(B, TM)
    grid = (B_pad // TM,)

    # pad (zeros) and cast matmul operands to bf16; biases stay f32
    xp = _pad_to(x_flat, (B_pad, K_pad)).astype(jnp.bfloat16)
    w0 = _pad_to(params["w0"], (K_pad, NB)).astype(jnp.bfloat16)
    b0 = _pad_to(params["b0"], (1, NB)).astype(jnp.float32)
    w1 = _pad_to(params["w1"], (NB, NH)).astype(jnp.bfloat16)
    b1 = _pad_to(params["b1"], (1, NH)).astype(jnp.float32)
    w2 = _pad_to(params["w2"], (NH, NC)).astype(jnp.bfloat16)
    b2 = _pad_to(params["b2"], (1, NC)).astype(jnp.float32)

    # specs: x/out tiled over batch; weights & biases resident (same block every step)
    x_spec = pl.BlockSpec((TM, K_pad), lambda i: (i, 0))
    w0_spec = pl.BlockSpec((K_pad, NB), lambda i: (0, 0))
    b0_spec = pl.BlockSpec((1, NB), lambda i: (0, 0))
    w1_spec = pl.BlockSpec((NB, NH), lambda i: (0, 0))
    b1_spec = pl.BlockSpec((1, NH), lambda i: (0, 0))
    w2_spec = pl.BlockSpec((NH, NC), lambda i: (0, 0))
    b2_spec = pl.BlockSpec((1, NC), lambda i: (0, 0))
    out_spec = pl.BlockSpec((TM, NC), lambda i: (i, 0))

    flops = 2 * B_pad * (K_pad * NB + NB * NH + NH * NC)
    bytes_accessed = (
        xp.size * 2 + w0.size * 2 + w1.size * 2 + w2.size * 2
        + b0.size * 4 + b1.size * 4 + b2.size * 4
        + B_pad * NC * 4
    )
    cost = pl.CostEstimate(flops=flops, transcendentals=0,
                           bytes_accessed=bytes_accessed)

    out = pl.pallas_call(
        _wrapper_kernel,
        out_shape=jax.ShapeDtypeStruct((B_pad, NC), jnp.float32),
        grid_spec=pltpu.PrefetchScalarGridSpec(
            num_scalar_prefetch=0,
            grid=grid,
            in_specs=[x_spec, w0_spec, b0_spec, w1_spec, b1_spec, w2_spec, b2_spec],
            out_specs=out_spec,
        ),
        compiler_params=pltpu.CompilerParams(
            dimension_semantics=("parallel",),
        ),
        cost_estimate=cost,
    )(xp, w0, b0, w1, b1, w2, b2)

    # slice off batch / class padding
    return out[:B, :num_class]


def init_params(key, in_features, num_class):
    k0, k1, k2 = jax.random.split(key, 3)
    # deterministic, small-scale init (synthetic weights, not a checkpoint)
    w0 = jax.random.normal(k0, (in_features, BACKBONE_OUT), jnp.float32) * 0.02
    b0 = jnp.zeros((1, BACKBONE_OUT), jnp.float32)
    w1 = jax.random.normal(k1, (BACKBONE_OUT, HIDDEN_UNITS), jnp.float32) * 0.02
    b1 = jnp.full((1, HIDDEN_UNITS), 0.01, jnp.float32)
    w2 = jax.random.normal(k2, (HIDDEN_UNITS, num_class), jnp.float32) * 0.02
    b2 = jnp.full((1, num_class), 0.01, jnp.float32)
    return {"w0": w0, "b0": b0, "w1": w1, "b1": b1, "w2": w2, "b2": b2}


def _reference_forward_f32(x_nchw, params):
    # pure-JAX f32 semantic reference
    x = x_nchw.reshape(x_nchw.shape[0], -1)
    feats = x @ params["w0"] + params["b0"]
    h = jnp.maximum(feats, 0.0)
    h = jnp.maximum(h @ params["w1"] + params["b1"], 0.0)
    return h @ params["w2"] + params["b2"]


def _reference_forward_bf16(x_nchw, params):
    # pure-JAX reference matching the kernel's bf16-operand / f32-accumulate path
    x = x_nchw.reshape(x_nchw.shape[0], -1).astype(jnp.bfloat16)
    w0 = params["w0"].astype(jnp.bfloat16)
    w1 = params["w1"].astype(jnp.bfloat16)
    w2 = params["w2"].astype(jnp.bfloat16)
    feats = jnp.dot(x, w0, preferred_element_type=jnp.float32) + params["b0"]
    h = jnp.maximum(feats, 0.0)
    h = jnp.dot(h.astype(jnp.bfloat16), w1,
                preferred_element_type=jnp.float32) + params["b1"]
    h = jnp.maximum(h, 0.0)
    return jnp.dot(h.astype(jnp.bfloat16), w2,
                   preferred_element_type=jnp.float32) + params["b2"]


if __name__ == "__main__":
    key = jax.random.PRNGKey(0)
    kx, kp = jax.random.split(key)

    B, C, H, W = 2, 4, 16, 16          # small NCHW input
    num_class = 10
    x = jax.random.normal(kx, (B, C, H, W), jnp.float32)
    params = init_params(kp, C * H * W, num_class)

    out = jax.block_until_ready(network_wrapper_forward(x, params))

    ref_bf16 = _reference_forward_bf16(x, params)
    ref_f32 = _reference_forward_f32(x, params)

    assert out.shape == (B, num_class)
    assert jnp.allclose(out, ref_bf16, atol=2e-3, rtol=2e-3), \
        "mismatch vs bf16-matched JAX reference"
    assert jnp.allclose(out, ref_f32, atol=5e-2, rtol=5e-2), \
        "mismatch vs f32 semantic reference"

    print("KERNEL_OK")
</pallas_src>

<mosaic_0001>
module attributes {stable_mosaic.version = 11 : i64} {
  func.func @_wrapper_kernel(%arg0: i32, %arg1: memref<8x1024xbf16, #tpu.memory_space<vmem>>, %arg2: memref<1024x1024xbf16, #tpu.memory_space<vmem>>, %arg3: memref<1x1024xf32, #tpu.memory_space<vmem>>, %arg4: memref<1024x128xbf16, #tpu.memory_space<vmem>>, %arg5: memref<1x128xf32, #tpu.memory_space<vmem>>, %arg6: memref<128x128xbf16, #tpu.memory_space<vmem>>, %arg7: memref<1x128xf32, #tpu.memory_space<vmem>>, %arg8: memref<8x128xf32, #tpu.memory_space<vmem>>) attributes {dimension_semantics = [#tpu.dimension_semantics<parallel>], iteration_bounds = array<i64: 1>, scalar_prefetch = 0 : i64, scratch_operands = 0 : i64, tpu.core_type = #tpu.core_type<tc>, window_params = [{transform_indices = @transform_0, window_bounds = array<i64: 8, 1024>}, {pipeline_mode = #tpu.pipeline_mode<synchronous>, transform_indices = @transform_1, window_bounds = array<i64: 1024, 1024>}, {pipeline_mode = #tpu.pipeline_mode<synchronous>, transform_indices = @transform_2, window_bounds = array<i64: 1, 1024>}, {pipeline_mode = #tpu.pipeline_mode<synchronous>, transform_indices = @transform_3, window_bounds = array<i64: 1024, 128>}, {pipeline_mode = #tpu.pipeline_mode<synchronous>, transform_indices = @transform_4, window_bounds = array<i64: 1, 128>}, {pipeline_mode = #tpu.pipeline_mode<synchronous>, transform_indices = @transform_5, window_bounds = array<i64: 128, 128>}, {pipeline_mode = #tpu.pipeline_mode<synchronous>, transform_indices = @transform_6, window_bounds = array<i64: 1, 128>}, {transform_indices = @transform_7, window_bounds = array<i64: 8, 128>}]} {
    %c0 = arith.constant 0 : index
    %c0_0 = arith.constant 0 : index
    %0 = vector.load %arg1[%c0, %c0_0] : memref<8x1024xbf16, #tpu.memory_space<vmem>>, vector<8x1024xbf16>
    %c0_1 = arith.constant 0 : index
    %c0_2 = arith.constant 0 : index
    %1 = vector.load %arg2[%c0_1, %c0_2] : memref<1024x1024xbf16, #tpu.memory_space<vmem>>, vector<1024x1024xbf16>
    %cst = arith.constant dense<0.000000e+00> : vector<8x1024xf32>
    %2 = tpu.matmul %0, %1, %cst {dimension_numbers = #tpu.dot_dimension_numbers<[1], [0], [0], [1], [0, 0, 1, 1], [], []>} : vector<8x1024xbf16>, vector<1024x1024xbf16>, vector<8x1024xf32> -> vector<8x1024xf32>
    %c0_3 = arith.constant 0 : index
    %c0_4 = arith.constant 0 : index
    %3 = vector.load %arg3[%c0_3, %c0_4] : memref<1x1024xf32, #tpu.memory_space<vmem>>, vector<1x1024xf32>
    %4 = vector.broadcast %3 : vector<1x1024xf32> to vector<8x1024xf32>
    %5 = arith.addf %2, %4 : vector<8x1024xf32>
    %cst_5 = arith.constant 0.000000e+00 : f32
    %6 = vector.broadcast %cst_5 : f32 to vector<8x1024xf32>
    %7 = arith.maximumf %5, %6 : vector<8x1024xf32>
    %8 = arith.truncf %7 : vector<8x1024xf32> to vector<8x1024xbf16>
    %c0_6 = arith.constant 0 : index
    %c0_7 = arith.constant 0 : index
    %9 = vector.load %arg4[%c0_6, %c0_7] : memref<1024x128xbf16, #tpu.memory_space<vmem>>, vector<1024x128xbf16>
    %cst_8 = arith.constant dense<0.000000e+00> : vector<8x128xf32>
    %10 = tpu.matmul %8, %9, %cst_8 {dimension_numbers = #tpu.dot_dimension_numbers<[1], [0], [0], [1], [0, 0, 1, 1], [], []>} : vector<8x1024xbf16>, vector<1024x128xbf16>, vector<8x128xf32> -> vector<8x128xf32>
    %c0_9 = arith.constant 0 : index
    %c0_10 = arith.constant 0 : index
    %11 = vector.load %arg5[%c0_9, %c0_10] : memref<1x128xf32, #tpu.memory_space<vmem>>, vector<1x128xf32>
    %12 = vector.broadcast %11 : vector<1x128xf32> to vector<8x128xf32>
    %13 = arith.addf %10, %12 : vector<8x128xf32>
    %cst_11 = arith.constant 0.000000e+00 : f32
    %14 = vector.broadcast %cst_11 : f32 to vector<8x128xf32>
    %15 = arith.maximumf %13, %14 : vector<8x128xf32>
    %16 = arith.truncf %15 : vector<8x128xf32> to vector<8x128xbf16>
    %c0_12 = arith.constant 0 : index
    %c0_13 = arith.constant 0 : index
    %17 = vector.load %arg6[%c0_12, %c0_13] : memref<128x128xbf16, #tpu.memory_space<vmem>>, vector<128x128xbf16>
    %cst_14 = arith.constant dense<0.000000e+00> : vector<8x128xf32>
    %18 = tpu.matmul %16, %17, %cst_14 {dimension_numbers = #tpu.dot_dimension_numbers<[1], [0], [0], [1], [0, 0, 1, 1], [], []>} : vector<8x128xbf16>, vector<128x128xbf16>, vector<8x128xf32> -> vector<8x128xf32>
    %c0_15 = arith.constant 0 : index
    %c0_16 = arith.constant 0 : index
    %19 = vector.load %arg7[%c0_15, %c0_16] : memref<1x128xf32, #tpu.memory_space<vmem>>, vector<1x128xf32>
    %20 = vector.broadcast %19 : vector<1x128xf32> to vector<8x128xf32>
    %21 = arith.addf %18, %20 : vector<8x128xf32>
    %c0_17 = arith.constant 0 : index
    %c0_18 = arith.constant 0 : index
    %22 = vector.load %arg8[%c0_17, %c0_18] : memref<8x128xf32, #tpu.memory_space<vmem>>, vector<8x128xf32>
    tpu.vector_store %arg8[%c0_17, %c0_18], %21 {strides = array<i32>} : memref<8x128xf32, #tpu.memory_space<vmem>>, vector<8x128xf32>,
    return
  }
  func.func @transform_0(%arg0: i32) -> (i32, i32) {
    %c0_i32 = arith.constant 0 : i32
    %c0_i32_0 = arith.constant 0 : i32
    return %arg0, %c0_i32 : i32, i32
  }
  func.func @transform_1(%arg0: i32) -> (i32, i32) {
    %c0_i32 = arith.constant 0 : i32
    %c0_i32_0 = arith.constant 0 : i32
    %c0_i32_1 = arith.constant 0 : i32
    return %c0_i32, %c0_i32_0 : i32, i32
  }
  func.func @transform_2(%arg0: i32) -> (i32, i32) {
    %c0_i32 = arith.constant 0 : i32
    %c0_i32_0 = arith.constant 0 : i32
    %c0_i32_1 = arith.constant 0 : i32
    return %c0_i32, %c0_i32_0 : i32, i32
  }
  func.func @transform_3(%arg0: i32) -> (i32, i32) {
    %c0_i32 = arith.constant 0 : i32
    %c0_i32_0 = arith.constant 0 : i32
    %c0_i32_1 = arith.constant 0 : i32
    return %c0_i32, %c0_i32_0 : i32, i32
  }
  func.func @transform_4(%arg0: i32) -> (i32, i32) {
    %c0_i32 = arith.constant 0 : i32
    %c0_i32_0 = arith.constant 0 : i32
    %c0_i32_1 = arith.constant 0 : i32
    return %c0_i32, %c0_i32_0 : i32, i32
  }
  func.func @transform_5(%arg0: i32) -> (i32, i32) {
    %c0_i32 = arith.constant 0 : i32
    %c0_i32_0 = arith.constant 0 : i32
    %c0_i32_1 = arith.constant 0 : i32
    return %c0_i32, %c0_i32_0 : i32, i32
  }
  func.func @transform_6(%arg0: i32) -> (i32, i32) {
    %c0_i32 = arith.constant 0 : i32
    %c0_i32_0 = arith.constant 0 : i32
    %c0_i32_1 = arith.constant 0 : i32
    return %c0_i32, %c0_i32_0 : i32, i32
  }
  func.func @transform_7(%arg0: i32) -> (i32, i32) {
    %c0_i32 = arith.constant 0 : i32
    %c0_i32_0 = arith.constant 0 : i32
    return %arg0, %c0_i32 : i32, i32
  }
}

</mosaic_0001>

<llo_original>
// kernel: tpu_custom_call.1
$region0: #{tpu_custom_call.1}
  #allocation0 [shape = 'u32[]', space=smem, size = 0x4, offset = 0x4, fixed_abs, tag = 'smem constant byte address 0x4 - core index']
  #allocation1 [shape = 'u32[72,128]{1,0:T(1,128)}', space=vmem, size = 0x9000, scoped, tag = 'internal scratch']
  %s0 = inlined_call_operand.hbm [shape: bf16[8,1024], index: 0, kind: input, shape index: {}]
  %s1 = inlined_call_operand.hbm [shape: bf16[1024,1024], index: 1, kind: input, shape index: {}]
  %s2 = inlined_call_operand.hbm [shape: f32[1,1024], index: 2, kind: input, shape index: {}]
  %s3 = inlined_call_operand.hbm [shape: bf16[1024,128], index: 3, kind: input, shape index: {}]
  %s4 = inlined_call_operand.hbm [shape: f32[1,128], index: 4, kind: input, shape index: {}]
  %s5 = inlined_call_operand.hbm [shape: bf16[128,128], index: 5, kind: input, shape index: {}]
  %s6 = inlined_call_operand.hbm [shape: f32[1,128], index: 6, kind: input, shape index: {}]
  %s7 = inlined_call_operand.hbm [shape: f32[8,128], index: 7, kind: output, shape index: {}]
  %s8 = sld [smem:[#allocation0]]
  $region66: #{tpu_custom_call.1} parent=0
    _
  %s10 = ssub.s32 1, %s8
  %s11 = scalar_select 0, %s10, %s8
  $region1: #{tpu_custom_call.1} parent=0
    #allocation2 [shape = 'u8[16384]{0}', space=vmem, size = 0x4000, scoped, tag = 'input window, operand 0, single buffered']
    #allocation3 [shape = 's32[1]{0}', space=sflag, size = 0x4, scoped, tag = 'scoped memory for tpu_custom_call.1']
    #allocation4 [shape = 's32[1]{0}', space=sflag, size = 0x4, scoped, tag = 'scoped memory for tpu_custom_call.1']
    #allocation5 [shape = 'u8[2097152]{0}', space=vmem, size = 0x200000, scoped, tag = 'input window, operand 1, single buffered']
    #allocation6 [shape = 's32[1]{0}', space=sflag, size = 0x4, scoped, tag = 'scoped memory for tpu_custom_call.1']
    #allocation7 [shape = 'u8[4096]{0}', space=vmem, size = 0x1000, scoped, tag = 'input window, operand 2, single buffered']
    #allocation8 [shape = 'u8[262144]{0}', space=vmem, size = 0x40000, scoped, tag = 'input window, operand 3, single buffered']
    #allocation9 [shape = 's32[1]{0}', space=sflag, size = 0x4, scoped, tag = 'scoped memory for tpu_custom_call.1']
    #allocation10 [shape = 'u8[512]{0}', space=vmem, size = 0x400, scoped, tag = 'input window, operand 4, single buffered']
    #allocation11 [shape = 'u8[32768]{0}', space=vmem, size = 0x8000, scoped, tag = 'input window, operand 5, single buffered']
    #allocation12 [shape = 's32[1]{0}', space=sflag, size = 0x4, scoped, tag = 'scoped memory for tpu_custom_call.1']
    #allocation13 [shape = 'u8[512]{0}', space=vmem, size = 0x400, scoped, tag = 'input window, operand 6, single buffered']
    #allocation14 [shape = 'u8[4096]{0}', space=vmem, size = 0x1000, scoped, tag = 'output window, operand 0, single buffered']
    %12 = vsyncpa [#allocation3], 0
    %13 = vsyncpa [#allocation6], 0
    %14 = vsyncpa [#allocation9], 0
    %15 = vsyncpa [#allocation12], 0
    %16 = vsyncpa [#allocation4], 0
    // Predicated region
    $region2: #{tpu_custom_call.1} parent=1 // pred_check
      _
    $region3: #{tpu_custom_call.1} parent=1 // pred_check_branch
      %18 = sbr.rel (0) target = $region5
    $region4: #{tpu_custom_call.1} parent=1 // pred_region
      %20 = vsyncadd [#allocation3], 0
      %s22 = sshll.u32 %s0, 4
      %s23 = int_to_ptr.hbm [resolvable:$true] %s22
      %s24 = sshll.u32 [#allocation2], 4
      %s25 = int_to_ptr.vmem [resolvable:$true] %s24
      %27 = dma.hbm_to_vmem [thread:$0]  %s23, 512, %s25, [#allocation3]
    $region5: #{tpu_custom_call.1} parent=1 // pred_fallthru
      _
    // Predicated region
    $region6: #{tpu_custom_call.1} parent=1 // pred_check
      _
    $region7: #{tpu_custom_call.1} parent=1 // pred_check_branch
      %29 = sbr.rel (0) target = $region9
    $region8: #{tpu_custom_call.1} parent=1 // pred_region
      %31 = vsyncadd [#allocation6], 0
      %s32 = sshll.u32 %s1, 4
      %s33 = int_to_ptr.hbm [resolvable:$true] %s32
      %s34 = sshll.u32 [#allocation5], 4
      %s35 = int_to_ptr.vmem [resolvable:$true] %s34
      %40 = dma.hbm_to_vmem [thread:$0]  %s33, 65536, %s35, [#allocation6], 512, 512, 32
    $region9: #{tpu_custom_call.1} parent=1 // pred_fallthru
      _
    // Predicated region
    $region10: #{tpu_custom_call.1} parent=1 // pred_check
      _
    $region11: #{tpu_custom_call.1} parent=1 // pred_check_branch
      %42 = sbr.rel (0) target = $region13
    $region12: #{tpu_custom_call.1} parent=1 // pred_region
      %44 = vsyncadd [#allocation6], 0
      %s46 = sshll.u32 %s2, 4
      %s47 = int_to_ptr.hbm [resolvable:$true] %s46
      %s48 = sshll.u32 [#allocation7], 4
      %s49 = int_to_ptr.vmem [resolvable:$true] %s48
      %51 = dma.hbm_to_vmem [thread:$0]  %s47, 128, %s49, [#allocation6]
    $region13: #{tpu_custom_call.1} parent=1 // pred_fallthru
      _
    // Predicated region
    $region14: #{tpu_custom_call.1} parent=1 // pred_check
      _
    $region15: #{tpu_custom_call.1} parent=1 // pred_check_branch
      %53 = sbr.rel (0) target = $region17
    $region16: #{tpu_custom_call.1} parent=1 // pred_region
      %55 = vsyncadd [#allocation9], 0
      %s56 = sshll.u32 %s3, 4
      %s57 = int_to_ptr.hbm [resolvable:$true] %s56
      %s58 = sshll.u32 [#allocation8], 4
      %s59 = int_to_ptr.vmem [resolvable:$true] %s58
      %64 = dma.hbm_to_vmem [thread:$0]  %s57, 8192, %s59, [#allocation9], 64, 64, 4
    $region17: #{tpu_custom_call.1} parent=1 // pred_fallthru
      _
    // Predicated region
    $region18: #{tpu_custom_call.1} parent=1 // pred_check
      _
    $region19: #{tpu_custom_call.1} parent=1 // pred_check_branch
      %66 = sbr.rel (0) target = $region21
    $region20: #{tpu_custom_call.1} parent=1 // pred_region
      %68 = vsyncadd [#allocation9], 0
      %s70 = sshll.u32 %s4, 4
      %s71 = int_to_ptr.hbm [resolvable:$true] %s70
      %s72 = sshll.u32 [#allocation10], 4
      %s73 = int_to_ptr.vmem [resolvable:$true] %s72
      %75 = dma.hbm_to_vmem [thread:$0]  %s71, 16, %s73, [#allocation9]
    $region21: #{tpu_custom_call.1} parent=1 // pred_fallthru
      _
    // Predicated region
    $region22: #{tpu_custom_call.1} parent=1 // pred_check
      _
    $region23: #{tpu_custom_call.1} parent=1 // pred_check_branch
      %77 = sbr.rel (0) target = $region25
    $region24: #{tpu_custom_call.1} parent=1 // pred_region
      %79 = vsyncadd [#allocation12], 0
      %s80 = sshll.u32 %s5, 4
      %s81 = int_to_ptr.hbm [resolvable:$true] %s80
      %s82 = sshll.u32 [#allocation11], 4
      %s83 = int_to_ptr.vmem [resolvable:$true] %s82
      %88 = dma.hbm_to_vmem [thread:$0]  %s81, 1024, %s83, [#allocation12], 64, 64, 4
    $region25: #{tpu_custom_call.1} parent=1 // pred_fallthru
      _
    // Predicated region
    $region26: #{tpu_custom_call.1} parent=1 // pred_check
      _
    $region27: #{tpu_custom_call.1} parent=1 // pred_check_branch
      %90 = sbr.rel (0) target = $region29
    $region28: #{tpu_custom_call.1} parent=1 // pred_region
      %92 = vsyncadd [#allocation12], 0
      %s94 = sshll.u32 %s6, 4
      %s95 = int_to_ptr.hbm [resolvable:$true] %s94
      %s96 = sshll.u32 [#allocation13], 4
      %s97 = int_to_ptr.vmem [resolvable:$true] %s96
      %99 = dma.hbm_to_vmem [thread:$0]  %s95, 16, %s97, [#allocation12]
    $region29: #{tpu_custom_call.1} parent=1 // pred_fallthru
      _
    // Predicated region
    $region30: #{tpu_custom_call.1} parent=1 // pred_check
      _
    $region31: #{tpu_custom_call.1} parent=1 // pred_check_branch
      %101 = sbr.rel (0) target = $region33
    $region32: #{tpu_custom_call.1} parent=1 // pred_region
      %103 = dma.done [#allocation3], 512
    $region33: #{tpu_custom_call.1} parent=1 // pred_fallthru
      _
    // Predicated region
    $region34: #{tpu_custom_call.1} parent=1 // pred_check
      _
    $region35: #{tpu_custom_call.1} parent=1 // pred_check_branch
      %105 = sbr.rel (0) target = $region37
    $region36: #{tpu_custom_call.1} parent=1 // pred_region
      %107 = dma.done [#allocation6], 65536
    $region37: #{tpu_custom_call.1} parent=1 // pred_fallthru
      _
    // Predicated region
    $region38: #{tpu_custom_call.1} parent=1 // pred_check
      _
    $region39: #{tpu_custom_call.1} parent=1 // pred_check_branch
      %109 = sbr.rel (0) target = $region41
    $region40: #{tpu_custom_call.1} parent=1 // pred_region
      %111 = dma.done [#allocation6], 128
    $region41: #{tpu_custom_call.1} parent=1 // pred_fallthru
      _
    // Predicated region
    $region42: #{tpu_custom_call.1} parent=1 // pred_check
      _
    $region43: #{tpu_custom_call.1} parent=1 // pred_check_branch
      %113 = sbr.rel (0) target = $region45
    $region44: #{tpu_custom_call.1} parent=1 // pred_region
      %115 = dma.done [#allocation9], 8192
    $region45: #{tpu_custom_call.1} parent=1 // pred_fallthru
      _
    // Predicated region
    $region46: #{tpu_custom_call.1} parent=1 // pred_check
      _
    $region47: #{tpu_custom_call.1} parent=1 // pred_check_branch
      %117 = sbr.rel (0) target = $region49
    $region48: #{tpu_custom_call.1} parent=1 // pred_region
      %119 = dma.done [#allocation9], 16
    $region49: #{tpu_custom_call.1} parent=1 // pred_fallthru
      _
    // Predicated region
    $region50: #{tpu_custom_call.1} parent=1 // pred_check
      _
    $region51: #{tpu_custom_call.1} parent=1 // pred_check_branch
      %121 = sbr.rel (0) target = $region53
    $region52: #{tpu_custom_call.1} parent=1 // pred_region
      %123 = dma.done [#allocation12], 1024
    $region53: #{tpu_custom_call.1} parent=1 // pred_fallthru
      _
    // Predicated region
    $region54: #{tpu_custom_call.1} parent=1 // pred_check
      _
    $region55: #{tpu_custom_call.1} parent=1 // pred_check_branch
      %125 = sbr.rel (0) target = $region57
    $region56: #{tpu_custom_call.1} parent=1 // pred_region
      %127 = dma.done [#allocation12], 16
    $region57: #{tpu_custom_call.1} parent=1 // pred_fallthru
      _
    %v128 = vld [vmem:[#allocation2] sm:$0xff]
    %v129 = vld [vmem:[#allocation2 + $0x8] sm:$0xff]
    %v130 = vld [vmem:[#allocation2 + $0x10] sm:$0xff]
    %v131 = vld [vmem:[#allocation2 + $0x18] sm:$0xff]
    %v132 = vld [vmem:[#allocation5] sm:$0xff]
    %v133 = vld [vmem:[#allocation5 + $0x8] sm:$0xff]
    %v134 = vld [vmem:[#allocation5 + $0x10] sm:$0xff]
    %v135 = vld [vmem:[#allocation5 + $0x18] sm:$0xff]
    %v136 = vld [vmem:[#allocation5 + $0x20] sm:$0xff]
    %v137 = vld [vmem:[#allocation5 + $0x28] sm:$0xff]
    %v138 = vld [vmem:[#allocation5 + $0x30] sm:$0xff]
    %v139 = vld [vmem:[#allocation5 + $0x38] sm:$0xff]
    %v140 = vld [vmem:[#allocation5 + $0x40] sm:$0xff]
    %v141 = vld [vmem:[#allocation5 + $0x48] sm:$0xff]
    %v142 = vld [vmem:[#allocation5 + $0x50] sm:$0xff]
    %v143 = vld [vmem:[#allocation5 + $0x58] sm:$0xff]
    %v144 = vld [vmem:[#allocation5 + $0x60] sm:$0xff]
    %v145 = vld [vmem:[#allocation5 + $0x68] sm:$0xff]
    %v146 = vld [vmem:[#allocation5 + $0x70] sm:$0xff]
    %v147 = vld [vmem:[#allocation5 + $0x78] sm:$0xff]
    %v148 = vld [vmem:[#allocation5 + $0x80] sm:$0xff]
    %v149 = vld [vmem:[#allocation5 + $0x88] sm:$0xff]
    %v150 = vld [vmem:[#allocation5 + $0x90] sm:$0xff]
    %v151 = vld [vmem:[#allocation5 + $0x98] sm:$0xff]
    %v152 = vld [vmem:[#allocation5 + $0xa0] sm:$0xff]
    %v153 = vld [vmem:[#allocation5 + $0xa8] sm:$0xff]
    %v154 = vld [vmem:[#allocation5 + $0xb0] sm:$0xff]
    %v155 = vld [vmem:[#allocation5 + $0xb8] sm:$0xff]
    %v156 = vld [vmem:[#allocation5 + $0xc0] sm:$0xff]
    %v157 = vld [vmem:[#allocation5 + $0xc8] sm:$0xff]
    %v158 = vld [vmem:[#allocation5 + $0xd0] sm:$0xff]
    %v159 = vld [vmem:[#allocation5 + $0xd8] sm:$0xff]
    %v160 = vld [vmem:[#allocation5 + $0xe0] sm:$0xff]
    %v161 = vld [vmem:[#allocation5 + $0xe8] sm:$0xff]
    %v162 = vld [vmem:[#allocation5 + $0xf0] sm:$0xff]
    %v163 = vld [vmem:[#allocation5 + $0xf8] sm:$0xff]
    %v164 = vld [vmem:[#allocation5 + $0x100] sm:$0xff]
    %v165 = vld [vmem:[#allocation5 + $0x108] sm:$0xff]
    %v166 = vld [vmem:[#allocation5 + $0x110] sm:$0xff]
    %v167 = vld [vmem:[#allocation5 + $0x118] sm:$0xff]
    %v168 = vld [vmem:[#allocation5 + $0x120] sm:$0xff]
    %v169 = vld [vmem:[#allocation5 + $0x128] sm:$0xff]
    %v170 = vld [vmem:[#allocation5 + $0x130] sm:$0xff]
    %v171 = vld [vmem:[#allocation5 + $0x138] sm:$0xff]
    %v172 = vld [vmem:[#allocation5 + $0x140] sm:$0xff]
    %v173 = vld [vmem:[#allocation5 + $0x148] sm:$0xff]
    %v174 = vld [vmem:[#allocation5 + $0x150] sm:$0xff]
    %v175 = vld [vmem:[#allocation5 + $0x158] sm:$0xff]
    %v176 = vld [vmem:[#allocation5 + $0x160] sm:$0xff]
    %v177 = vld [vmem:[#allocation5 + $0x168] sm:$0xff]
    %v178 = vld [vmem:[#allocation5 + $0x170] sm:$0xff]
    %v179 = vld [vmem:[#allocation5 + $0x178] sm:$0xff]
    %v180 = vld [vmem:[#allocation5 + $0x180] sm:$0xff]
    %v181 = vld [vmem:[#allocation5 + $0x188] sm:$0xff]
    %v182 = vld [vmem:[#allocation5 + $0x190] sm:$0xff]
    %v183 = vld [vmem:[#allocation5 + $0x198] sm:$0xff]
    %v184 = vld [vmem:[#allocation5 + $0x1a0] sm:$0xff]
    %v185 = vld [vmem:[#allocation5 + $0x1a8] sm:$0xff]
    %v186 = vld [vmem:[#allocation5 + $0x1b0] sm:$0xff]
    %v187 = vld [vmem:[#allocation5 + $0x1b8] sm:$0xff]
    %v188 = vld [vmem:[#allocation5 + $0x1c0] sm:$0xff]
    %v189 = vld [vmem:[#allocation5 + $0x1c8] sm:$0xff]
    %v190 = vld [vmem:[#allocation5 + $0x1d0] sm:$0xff]
    %v191 = vld [vmem:[#allocation5 + $0x1d8] sm:$0xff]
    %v192 = vld [vmem:[#allocation5 + $0x1e0] sm:$0xff]
    %v193 = vld [vmem:[#allocation5 + $0x1e8] sm:$0xff]
    %v194 = vld [vmem:[#allocation5 + $0x1f0] sm:$0xff]
    %v195 = vld [vmem:[#allocation5 + $0x1f8] sm:$0xff]
    %v196 = vld [vmem:[#allocation5 + $0x200] sm:$0xff]
    %v197 = vld [vmem:[#allocation5 + $0x208] sm:$0xff]
    %v198 = vld [vmem:[#allocation5 + $0x210] sm:$0xff]
    %v199 = vld [vmem:[#allocation5 + $0x218] sm:$0xff]
    %v200 = vld [vmem:[#allocation5 + $0x220] sm:$0xff]
    %v201 = vld [vmem:[#allocation5 + $0x228] sm:$0xff]
    %v202 = vld [vmem:[#allocation5 + $0x230] sm:$0xff]
    %v203 = vld [vmem:[#allocation5 + $0x238] sm:$0xff]
    %v204 = vld [vmem:[#allocation5 + $0x240] sm:$0xff]
    %v205 = vld [vmem:[#allocation5 + $0x248] sm:$0xff]
    %v206 = vld [vmem:[#allocation5 + $0x250] sm:$0xff]
    %v207 = vld [vmem:[#allocation5 + $0x258] sm:$0xff]
    %v208 = vld [vmem:[#allocation5 + $0x260] sm:$0xff]
    %v209 = vld [vmem:[#allocation5 + $0x268] sm:$0xff]
    %v210 = vld [vmem:[#allocation5 + $0x270] sm:$0xff]
    %v211 = vld [vmem:[#allocation5 + $0x278] sm:$0xff]
    %v212 = vld [vmem:[#allocation5 + $0x280] sm:$0xff]
    %v213 = vld [vmem:[#allocation5 + $0x288] sm:$0xff]
    %v214 = vld [vmem:[#allocation5 + $0x290] sm:$0xff]
    %v215 = vld [vmem:[#allocation5 + $0x298] sm:$0xff]
    %v216 = vld [vmem:[#allocation5 + $0x2a0] sm:$0xff]
    %v217 = vld [vmem:[#allocation5 + $0x2a8] sm:$0xff]
    %v218 = vld [vmem:[#allocation5 + $0x2b0] sm:$0xff]
    %v219 = vld [vmem:[#allocation5 + $0x2b8] sm:$0xff]
    %v220 = vld [vmem:[#allocation5 + $0x2c0] sm:$0xff]
    %v221 = vld [vmem:[#allocation5 + $0x2c8] sm:$0xff]
    %v222 = vld [vmem:[#allocation5 + $0x2d0] sm:$0xff]
    %v223 = vld [vmem:[#allocation5 + $0x2d8] sm:$0xff]
    %v224 = vld [vmem:[#allocation5 + $0x2e0] sm:$0xff]
    %v225 = vld [vmem:[#allocation5 + $0x2e8] sm:$0xff]
    %v226 = vld [vmem:[#allocation5 + $0x2f0] sm:$0xff]
    %v227 = vld [vmem:[#allocation5 + $0x2f8] sm:$0xff]
    %v228 = vld [vmem:[#allocation5 + $0x300] sm:$0xff]
    %v229 = vld [vmem:[#allocation5 + $0x308] sm:$0xff]
    %v230 = vld [vmem:[#allocation5 + $0x310] sm:$0xff]
    %v231 = vld [vmem:[#allocation5 + $0x318] sm:$0xff]
    %v232 = vld [vmem:[#allocation5 + $0x320] sm:$0xff]
    %v233 = vld [vmem:[#allocation5 + $0x328] sm:$0xff]
    %v234 = vld [vmem:[#allocation5 + $0x330] sm:$0xff]
    %v235 = vld [vmem:[#allocation5 + $0x338] sm:$0xff]
    %v236 = vld [vmem:[#allocation5 + $0x340] sm:$0xff]
    %v237 = vld [vmem:[#allocation5 + $0x348] sm:$0xff]
    %v238 = vld [vmem:[#allocation5 + $0x350] sm:$0xff]
    %v239 = vld [vmem:[#allocation5 + $0x358] sm:$0xff]
    %v240 = vld [vmem:[#allocation5 + $0x360] sm:$0xff]
    %v241 = vld [vmem:[#allocation5 + $0x368] sm:$0xff]
    %v242 = vld [vmem:[#allocation5 + $0x370] sm:$0xff]
    %v243 = vld [vmem:[#allocation5 + $0x378] sm:$0xff]
    %v244 = vld [vmem:[#allocation5 + $0x380] sm:$0xff]
    %v245 = vld [vmem:[#allocation5 + $0x388] sm:$0xff]
    %v246 = vld [vmem:[#allocation5 + $0x390] sm:$0xff]
    %v247 = vld [vmem:[#allocation5 + $0x398] sm:$0xff]
    %v248 = vld [vmem:[#allocation5 + $0x3a0] sm:$0xff]
    %v249 = vld [vmem:[#allocation5 + $0x3a8] sm:$0xff]
    %v250 = vld [vmem:[#allocation5 + $0x3b0] sm:$0xff]
    %v251 = vld [vmem:[#allocation5 + $0x3b8] sm:$0xff]
    %v252 = vld [vmem:[#allocation5 + $0x3c0] sm:$0xff]
    %v253 = vld [vmem:[#allocation5 + $0x3c8] sm:$0xff]
    %v254 = vld [vmem:[#allocation5 + $0x3d0] sm:$0xff]
    %v255 = vld [vmem:[#allocation5 + $0x3d8] sm:$0xff]
    %v256 = vld [vmem:[#allocation5 + $0x3e0] sm:$0xff]
    %v257 = vld [vmem:[#allocation5 + $0x3e8] sm:$0xff]
    %v258 = vld [vmem:[#allocation5 + $0x3f0] sm:$0xff]
    %v259 = vld [vmem:[#allocation5 + $0x3f8] sm:$0xff]
    %v260 = vld [vmem:[#allocation5 + $0x400] sm:$0xff]
    %v261 = vld [vmem:[#allocation5 + $0x408] sm:$0xff]
    %v262 = vld [vmem:[#allocation5 + $0x410] sm:$0xff]
    %v263 = vld [vmem:[#allocation5 + $0x418] sm:$0xff]
    %v264 = vld [vmem:[#allocation5 + $0x420] sm:$0xff]
    %v265 = vld [vmem:[#allocation5 + $0x428] sm:$0xff]
    %v266 = vld [vmem:[#allocation5 + $0x430] sm:$0xff]
    %v267 = vld [vmem:[#allocation5 + $0x438] sm:$0xff]
    %v268 = vld [vmem:[#allocation5 + $0x440] sm:$0xff]
    %v269 = vld [vmem:[#allocation5 + $0x448] sm:$0xff]
    %v270 = vld [vmem:[#allocation5 + $0x450] sm:$0xff]
    %v271 = vld [vmem:[#allocation5 + $0x458] sm:$0xff]
    %v272 = vld [vmem:[#allocation5 + $0x460] sm:$0xff]
    %v273 = vld [vmem:[#allocation5 + $0x468] sm:$0xff]
    %v274 = vld [vmem:[#allocation5 + $0x470] sm:$0xff]
    %v275 = vld [vmem:[#allocation5 + $0x478] sm:$0xff]
    %v276 = vld [vmem:[#allocation5 + $0x480] sm:$0xff]
    %v277 = vld [vmem:[#allocation5 + $0x488] sm:$0xff]
    %v278 = vld [vmem:[#allocation5 + $0x490] sm:$0xff]
    %v279 = vld [vmem:[#allocation5 + $0x498] sm:$0xff]
    %v280 = vld [vmem:[#allocation5 + $0x4a0] sm:$0xff]
    %v281 = vld [vmem:[#allocation5 + $0x4a8] sm:$0xff]
    %v282 = vld [vmem:[#allocation5 + $0x4b0] sm:$0xff]
    %v283 = vld [vmem:[#allocation5 + $0x4b8] sm:$0xff]
    %v284 = vld [vmem:[#allocation5 + $0x4c0] sm:$0xff]
    %v285 = vld [vmem:[#allocation5 + $0x4c8] sm:$0xff]
    %v286 = vld [vmem:[#allocation5 + $0x4d0] sm:$0xff]
    %v287 = vld [vmem:[#allocation5 + $0x4d8] sm:$0xff]
    %v288 = vld [vmem:[#allocation5 + $0x4e0] sm:$0xff]
    %v289 = vld [vmem:[#allocation5 + $0x4e8] sm:$0xff]
    %v290 = vld [vmem:[#allocation5 + $0x4f0] sm:$0xff]
    %v291 = vld [vmem:[#allocation5 + $0x4f8] sm:$0xff]
    %v292 = vld [vmem:[#allocation5 + $0x500] sm:$0xff]
    %v293 = vld [vmem:[#allocation5 + $0x508] sm:$0xff]
    %v294 = vld [vmem:[#allocation5 + $0x510] sm:$0xff]
    %v295 = vld [vmem:[#allocation5 + $0x518] sm:$0xff]
    %v296 = vld [vmem:[#allocation5 + $0x520] sm:$0xff]
    %v297 = vld [vmem:[#allocation5 + $0x528] sm:$0xff]
    %v298 = vld [vmem:[#allocation5 + $0x530] sm:$0xff]
    %v299 = vld [vmem:[#allocation5 + $0x538] sm:$0xff]
    %v300 = vld [vmem:[#allocation5 + $0x540] sm:$0xff]
    %v301 = vld [vmem:[#allocation5 + $0x548] sm:$0xff]
    %v302 = vld [vmem:[#allocation5 + $0x550] sm:$0xff]
    %v303 = vld [vmem:[#allocation5 + $0x558] sm:$0xff]
    %v304 = vld [vmem:[#allocation5 + $0x560] sm:$0xff]
    %v305 = vld [vmem:[#allocation5 + $0x568] sm:$0xff]
    %v306 = vld [vmem:[#allocation5 + $0x570] sm:$0xff]
    %v307 = vld [vmem:[#allocation5 + $0x578] sm:$0xff]
    %v308 = vld [vmem:[#allocation5 + $0x580] sm:$0xff]
    %v309 = vld [vmem:[#allocation5 + $0x588] sm:$0xff]
    %v310 = vld [vmem:[#allocation5 + $0x590] sm:$0xff]
    %v311 = vld [vmem:[#allocation5 + $0x598] sm:$0xff]
    %v312 = vld [vmem:[#allocation5 + $0x5a0] sm:$0xff]
    %v313 = vld [vmem:[#allocation5 + $0x5a8] sm:$0xff]
    %v314 = vld [vmem:[#allocation5 + $0x5b0] sm:$0xff]
    %v315 = vld [vmem:[#allocation5 + $0x5b8] sm:$0xff]
    %v316 = vld [vmem:[#allocation5 + $0x5c0] sm:$0xff]
    %v317 = vld [vmem:[#allocation5 + $0x5c8] sm:$0xff]
    %v318 = vld [vmem:[#allocation5 + $0x5d0] sm:$0xff]
    %v319 = vld [vmem:[#allocation5 + $0x5d8] sm:$0xff]
    %v320 = vld [vmem:[#allocation5 + $0x5e0] sm:$0xff]
    %v321 = vld [vmem:[#allocation5 + $0x5e8] sm:$0xff]
    %v322 = vld [vmem:[#allocation5 + $0x5f0] sm:$0xff]
    %v323 = vld [vmem:[#allocation5 + $0x5f8] sm:$0xff]
    %v324 = vld [vmem:[#allocation5 + $0x600] sm:$0xff]
    %v325 = vld [vmem:[#allocation5 + $0x608] sm:$0xff]
    %v326 = vld [vmem:[#allocation5 + $0x610] sm:$0xff]
    %v327 = vld [vmem:[#allocation5 + $0x618] sm:$0xff]
    %v328 = vld [vmem:[#allocation5 + $0x620] sm:$0xff]
    %v329 = vld [vmem:[#allocation5 + $0x628] sm:$0xff]
    %v330 = vld [vmem:[#allocation5 + $0x630] sm:$0xff]
    %v331 = vld [vmem:[#allocation5 + $0x638] sm:$0xff]
    %v332 = vld [vmem:[#allocation5 + $0x640] sm:$0xff]
    %v333 = vld [vmem:[#allocation5 + $0x648] sm:$0xff]
    %v334 = vld [vmem:[#allocation5 + $0x650] sm:$0xff]
    %v335 = vld [vmem:[#allocation5 + $0x658] sm:$0xff]
    %v336 = vld [vmem:[#allocation5 + $0x660] sm:$0xff]
    %v337 = vld [vmem:[#allocation5 + $0x668] sm:$0xff]
    %v338 = vld [vmem:[#allocation5 + $0x670] sm:$0xff]
    %v339 = vld [vmem:[#allocation5 + $0x678] sm:$0xff]
    %v340 = vld [vmem:[#allocation5 + $0x680] sm:$0xff]
    %v341 = vld [vmem:[#allocation5 + $0x688] sm:$0xff]
    %v342 = vld [vmem:[#allocation5 + $0x690] sm:$0xff]
    %v343 = vld [vmem:[#allocation5 + $0x698] sm:$0xff]
    %v344 = vld [vmem:[#allocation5 + $0x6a0] sm:$0xff]
    %v345 = vld [vmem:[#allocation5 + $0x6a8] sm:$0xff]
    %v346 = vld [vmem:[#allocation5 + $0x6b0] sm:$0xff]
    %v347 = vld [vmem:[#allocation5 + $0x6b8] sm:$0xff]
    %v348 = vld [vmem:[#allocation5 + $0x6c0] sm:$0xff]
    %v349 = vld [vmem:[#allocation5 + $0x6c8] sm:$0xff]
    %v350 = vld [vmem:[#allocation5 + $0x6d0] sm:$0xff]
    %v351 = vld [vmem:[#allocation5 + $0x6d8] sm:$0xff]
    %v352 = vld [vmem:[#allocation5 + $0x6e0] sm:$0xff]
    %v353 = vld [vmem:[#allocation5 + $0x6e8] sm:$0xff]
    %v354 = vld [vmem:[#allocation5 + $0x6f0] sm:$0xff]
    %v355 = vld [vmem:[#allocation5 + $0x6f8] sm:$0xff]
    %v356 = vld [vmem:[#allocation5 + $0x700] sm:$0xff]
    %v357 = vld [vmem:[#allocation5 + $0x708] sm:$0xff]
    %v358 = vld [vmem:[#allocation5 + $0x710] sm:$0xff]
    %v359 = vld [vmem:[#allocation5 + $0x718] sm:$0xff]
    %v360 = vld [vmem:[#allocation5 + $0x720] sm:$0xff]
    %v361 = vld [vmem:[#allocation5 + $0x728] sm:$0xff]
    %v362 = vld [vmem:[#allocation5 + $0x730] sm:$0xff]
    %v363 = vld [vmem:[#allocation5 + $0x738] sm:$0xff]
    %v364 = vld [vmem:[#allocation5 + $0x740] sm:$0xff]
    %v365 = vld [vmem:[#allocation5 + $0x748] sm:$0xff]
    %v366 = vld [vmem:[#allocation5 + $0x750] sm:$0xff]
    %v367 = vld [vmem:[#allocation5 + $0x758] sm:$0xff]
    %v368 = vld [vmem:[#allocation5 + $0x760] sm:$0xff]
    %v369 = vld [vmem:[#allocation5 + $0x768] sm:$0xff]
    %v370 = vld [vmem:[#allocation5 + $0x770] sm:$0xff]
    %v371 = vld [vmem:[#allocation5 + $0x778] sm:$0xff]
    %v372 = vld [vmem:[#allocation5 + $0x780] sm:$0xff]
    %v373 = vld [vmem:[#allocation5 + $0x788] sm:$0xff]
    %v374 = vld [vmem:[#allocation5 + $0x790] sm:$0xff]
    %v375 = vld [vmem:[#allocation5 + $0x798] sm:$0xff]
    %v376 = vld [vmem:[#allocation5 + $0x7a0] sm:$0xff]
    %v377 = vld [vmem:[#allocation5 + $0x7a8] sm:$0xff]
    %v378 = vld [vmem:[#allocation5 + $0x7b0] sm:$0xff]
    %v379 = vld [vmem:[#allocation5 + $0x7b8] sm:$0xff]
    %v380 = vld [vmem:[#allocation5 + $0x7c0] sm:$0xff]
    %v381 = vld [vmem:[#allocation5 + $0x7c8] sm:$0xff]
    %v382 = vld [vmem:[#allocation5 + $0x7d0] sm:$0xff]
    %v383 = vld [vmem:[#allocation5 + $0x7d8] sm:$0xff]
    %v384 = vld [vmem:[#allocation5 + $0x7e0] sm:$0xff]
    %v385 = vld [vmem:[#allocation5 + $0x7e8] sm:$0xff]
    %v386 = vld [vmem:[#allocation5 + $0x7f0] sm:$0xff]
    %v387 = vld [vmem:[#allocation5 + $0x7f8] sm:$0xff]
    %v388 = vld [vmem:[#allocation5 + $0x800] sm:$0xff]
    %v389 = vld [vmem:[#allocation5 + $0x808] sm:$0xff]
    %v390 = vld [vmem:[#allocation5 + $0x810] sm:$0xff]
    %v391 = vld [vmem:[#allocation5 + $0x818] sm:$0xff]
    %v392 = vld [vmem:[#allocation5 + $0x820] sm:$0xff]
    %v393 = vld [vmem:[#allocation5 + $0x828] sm:$0xff]
    %v394 = vld [vmem:[#allocation5 + $0x830] sm:$0xff]
    %v395 = vld [vmem:[#allocation5 + $0x838] sm:$0xff]
    %v396 = vld [vmem:[#allocation5 + $0x840] sm:$0xff]
    %v397 = vld [vmem:[#allocation5 + $0x848] sm:$0xff]
    %v398 = vld [vmem:[#allocation5 + $0x850] sm:$0xff]
    %v399 = vld [vmem:[#allocation5 + $0x858] sm:$0xff]
    %v400 = vld [vmem:[#allocation5 + $0x860] sm:$0xff]
    %v401 = vld [vmem:[#allocation5 + $0x868] sm:$0xff]
    %v402 = vld [vmem:[#allocation5 + $0x870] sm:$0xff]
    %v403 = vld [vmem:[#allocation5 + $0x878] sm:$0xff]
    %v404 = vld [vmem:[#allocation5 + $0x880] sm:$0xff]
    %v405 = vld [vmem:[#allocation5 + $0x888] sm:$0xff]
    %v406 = vld [vmem:[#allocation5 + $0x890] sm:$0xff]
    %v407 = vld [vmem:[#allocation5 + $0x898] sm:$0xff]
    %v408 = vld [vmem:[#allocation5 + $0x8a0] sm:$0xff]
    %v409 = vld [vmem:[#allocation5 + $0x8a8] sm:$0xff]
    %v410 = vld [vmem:[#allocation5 + $0x8b0] sm:$0xff]
    %v411 = vld [vmem:[#allocation5 + $0x8b8] sm:$0xff]
    %v412 = vld [vmem:[#allocation5 + $0x8c0] sm:$0xff]
    %v413 = vld [vmem:[#allocation5 + $0x8c8] sm:$0xff]
    %v414 = vld [vmem:[#allocation5 + $0x8d0] sm:$0xff]
    %v415 = vld [vmem:[#allocation5 + $0x8d8] sm:$0xff]
    %v416 = vld [vmem:[#allocation5 + $0x8e0] sm:$0xff]
    %v417 = vld [vmem:[#allocation5 + $0x8e8] sm:$0xff]
    %v418 = vld [vmem:[#allocation5 + $0x8f0] sm:$0xff]
    %v419 = vld [vmem:[#allocation5 + $0x8f8] sm:$0xff]
    %v420 = vld [vmem:[#allocation5 + $0x900] sm:$0xff]
    %v421 = vld [vmem:[#allocation5 + $0x908] sm:$0xff]
    %v422 = vld [vmem:[#allocation5 + $0x910] sm:$0xff]
    %v423 = vld [vmem:[#allocation5 + $0x918] sm:$0xff]
    %v424 = vld [vmem:[#allocation5 + $0x920] sm:$0xff]
    %v425 = vld [vmem:[#allocation5 + $0x928] sm:$0xff]
    %v426 = vld [vmem:[#allocation5 + $0x930] sm:$0xff]
    %v427 = vld [vmem:[#allocation5 + $0x938] sm:$0xff]
    %v428 = vld [vmem:[#allocation5 + $0x940] sm:$0xff]
    %v429 = vld [vmem:[#allocation5 + $0x948] sm:$0xff]
    %v430 = vld [vmem:[#allocation5 + $0x950] sm:$0xff]
    %v431 = vld [vmem:[#allocation5 + $0x958] sm:$0xff]
    %v432 = vld [vmem:[#allocation5 + $0x960] sm:$0xff]
    %v433 = vld [vmem:[#allocation5 + $0x968] sm:$0xff]
    %v434 = vld [vmem:[#allocation5 + $0x970] sm:$0xff]
    %v435 = vld [vmem:[#allocation5 + $0x978] sm:$0xff]
    %v436 = vld [vmem:[#allocation5 + $0x980] sm:$0xff]
    %v437 = vld [vmem:[#allocation5 + $0x988] sm:$0xff]
    %v438 = vld [vmem:[#allocation5 + $0x990] sm:$0xff]
    %v439 = vld [vmem:[#allocation5 + $0x998] sm:$0xff]
    %v440 = vld [vmem:[#allocation5 + $0x9a0] sm:$0xff]
    %v441 = vld [vmem:[#allocation5 + $0x9a8] sm:$0xff]
    %v442 = vld [vmem:[#allocation5 + $0x9b0] sm:$0xff]
    %v443 = vld [vmem:[#allocation5 + $0x9b8] sm:$0xff]
    %v444 = vld [vmem:[#allocation5 + $0x9c0] sm:$0xff]
    %v445 = vld [vmem:[#allocation5 + $0x9c8] sm:$0xff]
    %v446 = vld [vmem:[#allocation5 + $0x9d0] sm:$0xff]
    %v447 = vld [vmem:[#allocation5 + $0x9d8] sm:$0xff]
    %v448 = vld [vmem:[#allocation5 + $0x9e0] sm:$0xff]
    %v449 = vld [vmem:[#allocation5 + $0x9e8] sm:$0xff]
    %v450 = vld [vmem:[#allocation5 + $0x9f0] sm:$0xff]
    %v451 = vld [vmem:[#allocation5 + $0x9f8] sm:$0xff]
    %v452 = vld [vmem:[#allocation5 + $0xa00] sm:$0xff]
    %v453 = vld [vmem:[#allocation5 + $0xa08] sm:$0xff]
    %v454 = vld [vmem:[#allocation5 + $0xa10] sm:$0xff]
    %v455 = vld [vmem:[#allocation5 + $0xa18] sm:$0xff]
    %v456 = vld [vmem:[#allocation5 + $0xa20] sm:$0xff]
    %v457 = vld [vmem:[#allocation5 + $0xa28] sm:$0xff]
    %v458 = vld [vmem:[#allocation5 + $0xa30] sm:$0xff]
    %v459 = vld [vmem:[#allocation5 + $0xa38] sm:$0xff]
    %v460 = vld [vmem:[#allocation5 + $0xa40] sm:$0xff]
    %v461 = vld [vmem:[#allocation5 + $0xa48] sm:$0xff]
    %v462 = vld [vmem:[#allocation5 + $0xa50] sm:$0xff]
    %v463 = vld [vmem:[#allocation5 + $0xa58] sm:$0xff]
    %v464 = vld [vmem:[#allocation5 + $0xa60] sm:$0xff]
    %v465 = vld [vmem:[#allocation5 + $0xa68] sm:$0xff]
    %v466 = vld [vmem:[#allocation5 + $0xa70] sm:$0xff]
    %v467 = vld [vmem:[#allocation5 + $0xa78] sm:$0xff]
    %v468 = vld [vmem:[#allocation5 + $0xa80] sm:$0xff]
    %v469 = vld [vmem:[#allocation5 + $0xa88] sm:$0xff]
    %v470 = vld [vmem:[#allocation5 + $0xa90] sm:$0xff]
    %v471 = vld [vmem:[#allocation5 + $0xa98] sm:$0xff]
    %v472 = vld [vmem:[#allocation5 + $0xaa0] sm:$0xff]
    %v473 = vld [vmem:[#allocation5 + $0xaa8] sm:$0xff]
    %v474 = vld [vmem:[#allocation5 + $0xab0] sm:$0xff]
    %v475 = vld [vmem:[#allocation5 + $0xab8] sm:$0xff]
    %v476 = vld [vmem:[#allocation5 + $0xac0] sm:$0xff]
    %v477 = vld [vmem:[#allocation5 + $0xac8] sm:$0xff]
    %v478 = vld [vmem:[#allocation5 + $0xad0] sm:$0xff]
    %v479 = vld [vmem:[#allocation5 + $0xad8] sm:$0xff]
    %v480 = vld [vmem:[#allocation5 + $0xae0] sm:$0xff]
    %v481 = vld [vmem:[#allocation5 + $0xae8] sm:$0xff]
    %v482 = vld [vmem:[#allocation5 + $0xaf0] sm:$0xff]
    %v483 = vld [vmem:[#allocation5 + $0xaf8] sm:$0xff]
    %v484 = vld [vmem:[#allocation5 + $0xb00] sm:$0xff]
    %v485 = vld [vmem:[#allocation5 + $0xb08] sm:$0xff]
    %v486 = vld [vmem:[#allocation5 + $0xb10] sm:$0xff]
    %v487 = vld [vmem:[#allocation5 + $0xb18] sm:$0xff]
    %v488 = vld [vmem:[#allocation5 + $0xb20] sm:$0xff]
    %v489 = vld [vmem:[#allocation5 + $0xb28] sm:$0xff]
    %v490 = vld [vmem:[#allocation5 + $0xb30] sm:$0xff]
    %v491 = vld [vmem:[#allocation5 + $0xb38] sm:$0xff]
    %v492 = vld [vmem:[#allocation5 + $0xb40] sm:$0xff]
    %v493 = vld [vmem:[#allocation5 + $0xb48] sm:$0xff]
    %v494 = vld [vmem:[#allocation5 + $0xb50] sm:$0xff]
    %v495 = vld [vmem:[#allocation5 + $0xb58] sm:$0xff]
    %v496 = vld [vmem:[#allocation5 + $0xb60] sm:$0xff]
    %v497 = vld [vmem:[#allocation5 + $0xb68] sm:$0xff]
    %v498 = vld [vmem:[#allocation5 + $0xb70] sm:$0xff]
    %v499 = vld [vmem:[#allocation5 + $0xb78] sm:$0xff]
    %v500 = vld [vmem:[#allocation5 + $0xb80] sm:$0xff]
    %v501 = vld [vmem:[#allocation5 + $0xb88] sm:$0xff]
    %v502 = vld [vmem:[#allocation5 + $0xb90] sm:$0xff]
    %v503 = vld [vmem:[#allocation5 + $0xb98] sm:$0xff]
    %v504 = vld [vmem:[#allocation5 + $0xba0] sm:$0xff]
    %v505 = vld [vmem:[#allocation5 + $0xba8] sm:$0xff]
    %v506 = vld [vmem:[#allocation5 + $0xbb0] sm:$0xff]
    %v507 = vld [vmem:[#allocation5 + $0xbb8] sm:$0xff]
    %v508 = vld [vmem:[#allocation5 + $0xbc0] sm:$0xff]
    %v509 = vld [vmem:[#allocation5 + $0xbc8] sm:$0xff]
    %v510 = vld [vmem:[#allocation5 + $0xbd0] sm:$0xff]
    %v511 = vld [vmem:[#allocation5 + $0xbd8] sm:$0xff]
    %v512 = vld [vmem:[#allocation5 + $0xbe0] sm:$0xff]
    %v513 = vld [vmem:[#allocation5 + $0xbe8] sm:$0xff]
    %v514 = vld [vmem:[#allocation5 + $0xbf0] sm:$0xff]
    %v515 = vld [vmem:[#allocation5 + $0xbf8] sm:$0xff]
    %v516 = vld [vmem:[#allocation5 + $0xc00] sm:$0xff]
    %v517 = vld [vmem:[#allocation5 + $0xc08] sm:$0xff]
    %v518 = vld [vmem:[#allocation5 + $0xc10] sm:$0xff]
    %v519 = vld [vmem:[#allocation5 + $0xc18] sm:$0xff]
    %v520 = vld [vmem:[#allocation5 + $0xc20] sm:$0xff]
    %v521 = vld [vmem:[#allocation5 + $0xc28] sm:$0xff]
    %v522 = vld [vmem:[#allocation5 + $0xc30] sm:$0xff]
    %v523 = vld [vmem:[#allocation5 + $0xc38] sm:$0xff]
    %v524 = vld [vmem:[#allocation5 + $0xc40] sm:$0xff]
    %v525 = vld [vmem:[#allocation5 + $0xc48] sm:$0xff]
    %v526 = vld [vmem:[#allocation5 + $0xc50] sm:$0xff]
    %v527 = vld [vmem:[#allocation5 + $0xc58] sm:$0xff]
    %v528 = vld [vmem:[#allocation5 + $0xc60] sm:$0xff]
    %v529 = vld [vmem:[#allocation5 + $0xc68] sm:$0xff]
    %v530 = vld [vmem:[#allocation5 + $0xc70] sm:$0xff]
    %v531 = vld [vmem:[#allocation5 + $0xc78] sm:$0xff]
    %v532 = vld [vmem:[#allocation5 + $0xc80] sm:$0xff]
    %v533 = vld [vmem:[#allocation5 + $0xc88] sm:$0xff]
    %v534 = vld [vmem:[#allocation5 + $0xc90] sm:$0xff]
    %v535 = vld [vmem:[#allocation5 + $0xc98] sm:$0xff]
    %v536 = vld [vmem:[#allocation5 + $0xca0] sm:$0xff]
    %v537 = vld [vmem:[#allocation5 + $0xca8] sm:$0xff]
    %v538 = vld [vmem:[#allocation5 + $0xcb0] sm:$0xff]
    %v539 = vld [vmem:[#allocation5 + $0xcb8] sm:$0xff]
    %v540 = vld [vmem:[#allocation5 + $0xcc0] sm:$0xff]
    %v541 = vld [vmem:[#allocation5 + $0xcc8] sm:$0xff]
    %v542 = vld [vmem:[#allocation5 + $0xcd0] sm:$0xff]
    %v543 = vld [vmem:[#allocation5 + $0xcd8] sm:$0xff]
    %v544 = vld [vmem:[#allocation5 + $0xce0] sm:$0xff]
    %v545 = vld [vmem:[#allocation5 + $0xce8] sm:$0xff]
    %v546 = vld [vmem:[#allocation5 + $0xcf0] sm:$0xff]
    %v547 = vld [vmem:[#allocation5 + $0xcf8] sm:$0xff]
    %v548 = vld [vmem:[#allocation5 + $0xd00] sm:$0xff]
    %v549 = vld [vmem:[#allocation5 + $0xd08] sm:$0xff]
    %v550 = vld [vmem:[#allocation5 + $0xd10] sm:$0xff]
    %v551 = vld [vmem:[#allocation5 + $0xd18] sm:$0xff]
    %v552 = vld [vmem:[#allocation5 + $0xd20] sm:$0xff]
    %v553 = vld [vmem:[#allocation5 + $0xd28] sm:$0xff]
    %v554 = vld [vmem:[#allocation5 + $0xd30] sm:$0xff]
    %v555 = vld [vmem:[#allocation5 + $0xd38] sm:$0xff]
    %v556 = vld [vmem:[#allocation5 + $0xd40] sm:$0xff]
    %v557 = vld [vmem:[#allocation5 + $0xd48] sm:$0xff]
    %v558 = vld [vmem:[#allocation5 + $0xd50] sm:$0xff]
    %v559 = vld [vmem:[#allocation5 + $0xd58] sm:$0xff]
    %v560 = vld [vmem:[#allocation5 + $0xd60] sm:$0xff]
    %v561 = vld [vmem:[#allocation5 + $0xd68] sm:$0xff]
    %v562 = vld [vmem:[#allocation5 + $0xd70] sm:$0xff]
    %v563 = vld [vmem:[#allocation5 + $0xd78] sm:$0xff]
    %v564 = vld [vmem:[#allocation5 + $0xd80] sm:$0xff]
    %v565 = vld [vmem:[#allocation5 + $0xd88] sm:$0xff]
    %v566 = vld [vmem:[#allocation5 + $0xd90] sm:$0xff]
    %v567 = vld [vmem:[#allocation5 + $0xd98] sm:$0xff]
    %v568 = vld [vmem:[#allocation5 + $0xda0] sm:$0xff]
    %v569 = vld [vmem:[#allocation5 + $0xda8] sm:$0xff]
    %v570 = vld [vmem:[#allocation5 + $0xdb0] sm:$0xff]
    %v571 = vld [vmem:[#allocation5 + $0xdb8] sm:$0xff]
    %v572 = vld [vmem:[#allocation5 + $0xdc0] sm:$0xff]
    %v573 = vld [vmem:[#allocation5 + $0xdc8] sm:$0xff]
    %v574 = vld [vmem:[#allocation5 + $0xdd0] sm:$0xff]
    %v575 = vld [vmem:[#allocation5 + $0xdd8] sm:$0xff]
    %v576 = vld [vmem:[#allocation5 + $0xde0] sm:$0xff]
    %v577 = vld [vmem:[#allocation5 + $0xde8] sm:$0xff]
    %v578 = vld [vmem:[#allocation5 + $0xdf0] sm:$0xff]
    %v579 = vld [vmem:[#allocation5 + $0xdf8] sm:$0xff]
    %v580 = vld [vmem:[#allocation5 + $0xe00] sm:$0xff]
    %v581 = vld [vmem:[#allocation5 + $0xe08] sm:$0xff]
    %v582 = vld [vmem:[#allocation5 + $0xe10] sm:$0xff]
    %v583 = vld [vmem:[#allocation5 + $0xe18] sm:$0xff]
    %v584 = vld [vmem:[#allocation5 + $0xe20] sm:$0xff]
    %v585 = vld [vmem:[#allocation5 + $0xe28] sm:$0xff]
    %v586 = vld [vmem:[#allocation5 + $0xe30] sm:$0xff]
    %v587 = vld [vmem:[#allocation5 + $0xe38] sm:$0xff]
    %v588 = vld [vmem:[#allocation5 + $0xe40] sm:$0xff]
    %v589 = vld [vmem:[#allocation5 + $0xe48] sm:$0xff]
    %v590 = vld [vmem:[#allocation5 + $0xe50] sm:$0xff]
    %v591 = vld [vmem:[#allocation5 + $0xe58] sm:$0xff]
    %v592 = vld [vmem:[#allocation5 + $0xe60] sm:$0xff]
    %v593 = vld [vmem:[#allocation5 + $0xe68] sm:$0xff]
    %v594 = vld [vmem:[#allocation5 + $0xe70] sm:$0xff]
    %v595 = vld [vmem:[#allocation5 + $0xe78] sm:$0xff]
    %v596 = vld [vmem:[#allocation5 + $0xe80] sm:$0xff]
    %v597 = vld [vmem:[#allocation5 + $0xe88] sm:$0xff]
    %v598 = vld [vmem:[#allocation5 + $0xe90] sm:$0xff]
    %v599 = vld [vmem:[#allocation5 + $0xe98] sm:$0xff]
    %v600 = vld [vmem:[#allocation5 + $0xea0] sm:$0xff]
    %v601 = vld [vmem:[#allocation5 + $0xea8] sm:$0xff]
    %v602 = vld [vmem:[#allocation5 + $0xeb0] sm:$0xff]
    %v603 = vld [vmem:[#allocation5 + $0xeb8] sm:$0xff]
    %v604 = vld [vmem:[#allocation5 + $0xec0] sm:$0xff]
    %v605 = vld [vmem:[#allocation5 + $0xec8] sm:$0xff]
    %v606 = vld [vmem:[#allocation5 + $0xed0] sm:$0xff]
    %v607 = vld [vmem:[#allocation5 + $0xed8] sm:$0xff]
    %v608 = vld [vmem:[#allocation5 + $0xee0] sm:$0xff]
    %v609 = vld [vmem:[#allocation5 + $0xee8] sm:$0xff]
    %v610 = vld [vmem:[#allocation5 + $0xef0] sm:$0xff]
    %v611 = vld [vmem:[#allocation5 + $0xef8] sm:$0xff]
    %v612 = vld [vmem:[#allocation5 + $0xf00] sm:$0xff]
    %v613 = vld [vmem:[#allocation5 + $0xf08] sm:$0xff]
    %v614 = vld [vmem:[#allocation5 + $0xf10] sm:$0xff]
    %v615 = vld [vmem:[#allocation5 + $0xf18] sm:$0xff]
    %v616 = vld [vmem:[#allocation5 + $0xf20] sm:$0xff]
    %v617 = vld [vmem:[#allocation5 + $0xf28] sm:$0xff]
    %v618 = vld [vmem:[#allocation5 + $0xf30] sm:$0xff]
    %v619 = vld [vmem:[#allocation5 + $0xf38] sm:$0xff]
    %v620 = vld [vmem:[#allocation5 + $0xf40] sm:$0xff]
    %v621 = vld [vmem:[#allocation5 + $0xf48] sm:$0xff]
    %v622 = vld [vmem:[#allocation5 + $0xf50] sm:$0xff]
    %v623 = vld [vmem:[#allocation5 + $0xf58] sm:$0xff]
    %v624 = vld [vmem:[#allocation5 + $0xf60] sm:$0xff]
    %v625 = vld [vmem:[#allocation5 + $0xf68] sm:$0xff]
    %v626 = vld [vmem:[#allocation5 + $0xf70] sm:$0xff]
    %v627 = vld [vmem:[#allocation5 + $0xf78] sm:$0xff]
    %v628 = vld [vmem:[#allocation5 + $0xf80] sm:$0xff]
    %v629 = vld [vmem:[#allocation5 + $0xf88] sm:$0xff]
    %v630 = vld [vmem:[#allocation5 + $0xf90] sm:$0xff]
    %v631 = vld [vmem:[#allocation5 + $0xf98] sm:$0xff]
    %v632 = vld [vmem:[#allocation5 + $0xfa0] sm:$0xff]
    %v633 = vld [vmem:[#allocation5 + $0xfa8] sm:$0xff]
    %v634 = vld [vmem:[#allocation5 + $0xfb0] sm:$0xff]
    %v635 = vld [vmem:[#allocation5 + $0xfb8] sm:$0xff]
    %v636 = vld [vmem:[#allocation5 + $0xfc0] sm:$0xff]
    %v637 = vld [vmem:[#allocation5 + $0xfc8] sm:$0xff]
    %v638 = vld [vmem:[#allocation5 + $0xfd0] sm:$0xff]
    %v639 = vld [vmem:[#allocation5 + $0xfd8] sm:$0xff]
    %v640 = vld [vmem:[#allocation5 + $0xfe0] sm:$0xff]
    %v641 = vld [vmem:[#allocation5 + $0xfe8] sm:$0xff]
    %v642 = vld [vmem:[#allocation5 + $0xff0] sm:$0xff]
    %v643 = vld [vmem:[#allocation5 + $0xff8] sm:$0xff]
    %v644 = vld [vmem:[#allocation7] sm:$0xff]
    %v646 = vperm.slane %v644, 0
    %v647 = vperm.slane %v644, 1
    %v648 = vperm.slane %v644, 2
    %v649 = vperm.slane %v644, 3
    %v650 = vperm.slane %v644, 4
    %v651 = vperm.slane %v644, 5
    %v652 = vperm.slane %v644, 6
    %v653 = vperm.slane %v644, 7
    %v666 = vunpack.c.l.b16 %v128
    %v667 = vunpack.c.h.b16 %v128
    %v668 = vunpack.c.l.b16 %v129
    %v669 = vunpack.c.h.b16 %v129
    %v670 = vunpack.c.l.b16 %v130
    %v671 = vunpack.c.h.b16 %v130
    %v672 = vunpack.c.l.b16 %v131
    %v673 = vunpack.c.h.b16 %v131
    %v674 = vpack.c.b16 %v666, %v666
    %v675 = vpack.c.b16 %v667, %v667
    %v676 = vpack.c.b16 %v668, %v668
    %v677 = vpack.c.b16 %v669, %v669
    %v678 = vpack.c.b16 %v670, %v670
    %v679 = vpack.c.b16 %v671, %v671
    %v680 = vpack.c.b16 %v672, %v672
    %v681 = vpack.c.b16 %v673, %v673
    %v1202 = vunpack.c.l.b16 %v132
    %v1203 = vunpack.c.h.b16 %v132
    %v1204 = vunpack.c.l.b16 %v133
    %v1205 = vunpack.c.h.b16 %v133
    %v1206 = vunpack.c.l.b16 %v134
    %v1207 = vunpack.c.h.b16 %v134
    %v1208 = vunpack.c.l.b16 %v135
    %v1209 = vunpack.c.h.b16 %v135
    %v1210 = vunpack.c.l.b16 %v136
    %v1211 = vunpack.c.h.b16 %v136
    %v1212 = vunpack.c.l.b16 %v137
    %v1213 = vunpack.c.h.b16 %v137
    %v1214 = vunpack.c.l.b16 %v138
    %v1215 = vunpack.c.h.b16 %v138
    %v1216 = vunpack.c.l.b16 %v139
    %v1217 = vunpack.c.h.b16 %v139
    %v1218 = vunpack.c.l.b16 %v140
    %v1219 = vunpack.c.h.b16 %v140
    %v1220 = vunpack.c.l.b16 %v141
    %v1221 = vunpack.c.h.b16 %v141
    %v1222 = vunpack.c.l.b16 %v142
    %v1223 = vunpack.c.h.b16 %v142
    %v1224 = vunpack.c.l.b16 %v143
    %v1225 = vunpack.c.h.b16 %v143
    %v1226 = vunpack.c.l.b16 %v144
    %v1227 = vunpack.c.h.b16 %v144
    %v1228 = vunpack.c.l.b16 %v145
    %v1229 = vunpack.c.h.b16 %v145
    %v1230 = vunpack.c.l.b16 %v146
    %v1231 = vunpack.c.h.b16 %v146
    %v1232 = vunpack.c.l.b16 %v147
    %v1233 = vunpack.c.h.b16 %v147
    %v1234 = vunpack.c.l.b16 %v148
    %v1235 = vunpack.c.h.b16 %v148
    %v1236 = vunpack.c.l.b16 %v149
    %v1237 = vunpack.c.h.b16 %v149
    %v1238 = vunpack.c.l.b16 %v150
    %v1239 = vunpack.c.h.b16 %v150
    %v1240 = vunpack.c.l.b16 %v151
    %v1241 = vunpack.c.h.b16 %v151
    %v1242 = vunpack.c.l.b16 %v152
    %v1243 = vunpack.c.h.b16 %v152
    %v1244 = vunpack.c.l.b16 %v153
    %v1245 = vunpack.c.h.b16 %v153
    %v1246 = vunpack.c.l.b16 %v154
    %v1247 = vunpack.c.h.b16 %v154
    %v1248 = vunpack.c.l.b16 %v155
    %v1249 = vunpack.c.h.b16 %v155
    %v1250 = vunpack.c.l.b16 %v156
    %v1251 = vunpack.c.h.b16 %v156
    %v1252 = vunpack.c.l.b16 %v157
    %v1253 = vunpack.c.h.b16 %v157
    %v1254 = vunpack.c.l.b16 %v158
    %v1255 = vunpack.c.h.b16 %v158
    %v1256 = vunpack.c.l.b16 %v159
    %v1257 = vunpack.c.h.b16 %v159
    %v1258 = vunpack.c.l.b16 %v160
    %v1259 = vunpack.c.h.b16 %v160
    %v1260 = vunpack.c.l.b16 %v161
    %v1261 = vunpack.c.h.b16 %v161
    %v1262 = vunpack.c.l.b16 %v162
    %v1263 = vunpack.c.h.b16 %v162
    %v1264 = vunpack.c.l.b16 %v163
    %v1265 = vunpack.c.h.b16 %v163
    %v1266 = vunpack.c.l.b16 %v164
    %v1267 = vunpack.c.h.b16 %v164
    %v1268 = vunpack.c.l.b16 %v165
    %v1269 = vunpack.c.h.b16 %v165
    %v1270 = vunpack.c.l.b16 %v166
    %v1271 = vunpack.c.h.b16 %v166
    %v1272 = vunpack.c.l.b16 %v167
    %v1273 = vunpack.c.h.b16 %v167
    %v1274 = vunpack.c.l.b16 %v168
    %v1275 = vunpack.c.h.b16 %v168
    %v1276 = vunpack.c.l.b16 %v169
    %v1277 = vunpack.c.h.b16 %v169
    %v1278 = vunpack.c.l.b16 %v170
    %v1279 = vunpack.c.h.b16 %v170
    %v1280 = vunpack.c.l.b16 %v171
    %v1281 = vunpack.c.h.b16 %v171
    %v1282 = vunpack.c.l.b16 %v172
    %v1283 = vunpack.c.h.b16 %v172
    %v1284 = vunpack.c.l.b16 %v173
    %v1285 = vunpack.c.h.b16 %v173
    %v1286 = vunpack.c.l.b16 %v174
    %v1287 = vunpack.c.h.b16 %v174
    %v1288 = vunpack.c.l.b16 %v175
    %v1289 = vunpack.c.h.b16 %v175
    %v1290 = vunpack.c.l.b16 %v176
    %v1291 = vunpack.c.h.b16 %v176
    %v1292 = vunpack.c.l.b16 %v177
    %v1293 = vunpack.c.h.b16 %v177
    %v1294 = vunpack.c.l.b16 %v178
    %v1295 = vunpack.c.h.b16 %v178
    %v1296 = vunpack.c.l.b16 %v179
    %v1297 = vunpack.c.h.b16 %v179
    %v1298 = vunpack.c.l.b16 %v180
    %v1299 = vunpack.c.h.b16 %v180
    %v1300 = vunpack.c.l.b16 %v181
    %v1301 = vunpack.c.h.b16 %v181
    %v1302 = vunpack.c.l.b16 %v182
    %v1303 = vunpack.c.h.b16 %v182
    %v1304 = vunpack.c.l.b16 %v183
    %v1305 = vunpack.c.h.b16 %v183
    %v1306 = vunpack.c.l.b16 %v184
    %v1307 = vunpack.c.h.b16 %v184
    %v1308 = vunpack.c.l.b16 %v185
    %v1309 = vunpack.c.h.b16 %v185
    %v1310 = vunpack.c.l.b16 %v186
    %v1311 = vunpack.c.h.b16 %v186
    %v1312 = vunpack.c.l.b16 %v187
    %v1313 = vunpack.c.h.b16 %v187
    %v1314 = vunpack.c.l.b16 %v188
    %v1315 = vunpack.c.h.b16 %v188
    %v1316 = vunpack.c.l.b16 %v189
    %v1317 = vunpack.c.h.b16 %v189
    %v1318 = vunpack.c.l.b16 %v190
    %v1319 = vunpack.c.h.b16 %v190
    %v1320 = vunpack.c.l.b16 %v191
    %v1321 = vunpack.c.h.b16 %v191
    %v1322 = vunpack.c.l.b16 %v192
    %v1323 = vunpack.c.h.b16 %v192
    %v1324 = vunpack.c.l.b16 %v193
    %v1325 = vunpack.c.h.b16 %v193
    %v1326 = vunpack.c.l.b16 %v194
    %v1327 = vunpack.c.h.b16 %v194
    %v1328 = vunpack.c.l.b16 %v195
    %v1329 = vunpack.c.h.b16 %v195
    %v1330 = vunpack.c.l.b16 %v196
    %v1331 = vunpack.c.h.b16 %v196
    %v1332 = vunpack.c.l.b16 %v197
    %v1333 = vunpack.c.h.b16 %v197
    %v1334 = vunpack.c.l.b16 %v198
    %v1335 = vunpack.c.h.b16 %v198
    %v1336 = vunpack.c.l.b16 %v199
    %v1337 = vunpack.c.h.b16 %v199
    %v1338 = vunpack.c.l.b16 %v200
    %v1339 = vunpack.c.h.b16 %v200
    %v1340 = vunpack.c.l.b16 %v201
    %v1341 = vunpack.c.h.b16 %v201
    %v1342 = vunpack.c.l.b16 %v202
    %v1343 = vunpack.c.h.b16 %v202
    %v1344 = vunpack.c.l.b16 %v203
    %v1345 = vunpack.c.h.b16 %v203
    %v1346 = vunpack.c.l.b16 %v204
    %v1347 = vunpack.c.h.b16 %v204
    %v1348 = vunpack.c.l.b16 %v205
    %v1349 = vunpack.c.h.b16 %v205
    %v1350 = vunpack.c.l.b16 %v206
    %v1351 = vunpack.c.h.b16 %v206
    %v1352 = vunpack.c.l.b16 %v207
    %v1353 = vunpack.c.h.b16 %v207
    %v1354 = vunpack.c.l.b16 %v208
    %v1355 = vunpack.c.h.b16 %v208
    %v1356 = vunpack.c.l.b16 %v209
    %v1357 = vunpack.c.h.b16 %v209
    %v1358 = vunpack.c.l.b16 %v210
    %v1359 = vunpack.c.h.b16 %v210
    %v1360 = vunpack.c.l.b16 %v211
    %v1361 = vunpack.c.h.b16 %v211
    %v1362 = vunpack.c.l.b16 %v212
    %v1363 = vunpack.c.h.b16 %v212
    %v1364 = vunpack.c.l.b16 %v213
    %v1365 = vunpack.c.h.b16 %v213
    %v1366 = vunpack.c.l.b16 %v214
    %v1367 = vunpack.c.h.b16 %v214
    %v1368 = vunpack.c.l.b16 %v215
    %v1369 = vunpack.c.h.b16 %v215
    %v1370 = vunpack.c.l.b16 %v216
    %v1371 = vunpack.c.h.b16 %v216
    %v1372 = vunpack.c.l.b16 %v217
    %v1373 = vunpack.c.h.b16 %v217
    %v1374 = vunpack.c.l.b16 %v218
    %v1375 = vunpack.c.h.b16 %v218
    %v1376 = vunpack.c.l.b16 %v219
    %v1377 = vunpack.c.h.b16 %v219
    %v1378 = vunpack.c.l.b16 %v220
    %v1379 = vunpack.c.h.b16 %v220
    %v1380 = vunpack.c.l.b16 %v221
    %v1381 = vunpack.c.h.b16 %v221
    %v1382 = vunpack.c.l.b16 %v222
    %v1383 = vunpack.c.h.b16 %v222
    %v1384 = vunpack.c.l.b16 %v223
    %v1385 = vunpack.c.h.b16 %v223
    %v1386 = vunpack.c.l.b16 %v224
    %v1387 = vunpack.c.h.b16 %v224
    %v1388 = vunpack.c.l.b16 %v225
    %v1389 = vunpack.c.h.b16 %v225
    %v1390 = vunpack.c.l.b16 %v226
    %v1391 = vunpack.c.h.b16 %v226
    %v1392 = vunpack.c.l.b16 %v227
    %v1393 = vunpack.c.h.b16 %v227
    %v1394 = vunpack.c.l.b16 %v228
    %v1395 = vunpack.c.h.b16 %v228
    %v1396 = vunpack.c.l.b16 %v229
    %v1397 = vunpack.c.h.b16 %v229
    %v1398 = vunpack.c.l.b16 %v230
    %v1399 = vunpack.c.h.b16 %v230
    %v1400 = vunpack.c.l.b16 %v231
    %v1401 = vunpack.c.h.b16 %v231
    %v1402 = vunpack.c.l.b16 %v232
    %v1403 = vunpack.c.h.b16 %v232
    %v1404 = vunpack.c.l.b16 %v233
    %v1405 = vunpack.c.h.b16 %v233
    %v1406 = vunpack.c.l.b16 %v234
    %v1407 = vunpack.c.h.b16 %v234
    %v1408 = vunpack.c.l.b16 %v235
    %v1409 = vunpack.c.h.b16 %v235
    %v1410 = vunpack.c.l.b16 %v236
    %v1411 = vunpack.c.h.b16 %v236
    %v1412 = vunpack.c.l.b16 %v237
    %v1413 = vunpack.c.h.b16 %v237
    %v1414 = vunpack.c.l.b16 %v238
    %v1415 = vunpack.c.h.b16 %v238
    %v1416 = vunpack.c.l.b16 %v239
    %v1417 = vunpack.c.h.b16 %v239
    %v1418 = vunpack.c.l.b16 %v240
    %v1419 = vunpack.c.h.b16 %v240
    %v1420 = vunpack.c.l.b16 %v241
    %v1421 = vunpack.c.h.b16 %v241
    %v1422 = vunpack.c.l.b16 %v242
    %v1423 = vunpack.c.h.b16 %v242
    %v1424 = vunpack.c.l.b16 %v243
    %v1425 = vunpack.c.h.b16 %v243
    %v1426 = vunpack.c.l.b16 %v244
    %v1427 = vunpack.c.h.b16 %v244
    %v1428 = vunpack.c.l.b16 %v245
    %v1429 = vunpack.c.h.b16 %v245
    %v1430 = vunpack.c.l.b16 %v246
    %v1431 = vunpack.c.h.b16 %v246
    %v1432 = vunpack.c.l.b16 %v247
    %v1433 = vunpack.c.h.b16 %v247
    %v1434 = vunpack.c.l.b16 %v248
    %v1435 = vunpack.c.h.b16 %v248
    %v1436 = vunpack.c.l.b16 %v249
    %v1437 = vunpack.c.h.b16 %v249
    %v1438 = vunpack.c.l.b16 %v250
    %v1439 = vunpack.c.h.b16 %v250
    %v1440 = vunpack.c.l.b16 %v251
    %v1441 = vunpack.c.h.b16 %v251
    %v1442 = vunpack.c.l.b16 %v252
    %v1443 = vunpack.c.h.b16 %v252
    %v1444 = vunpack.c.l.b16 %v253
    %v1445 = vunpack.c.h.b16 %v253
    %v1446 = vunpack.c.l.b16 %v254
    %v1447 = vunpack.c.h.b16 %v254
    %v1448 = vunpack.c.l.b16 %v255
    %v1449 = vunpack.c.h.b16 %v255
    %v1450 = vunpack.c.l.b16 %v256
    %v1451 = vunpack.c.h.b16 %v256
    %v1452 = vunpack.c.l.b16 %v257
    %v1453 = vunpack.c.h.b16 %v257
    %v1454 = vunpack.c.l.b16 %v258
    %v1455 = vunpack.c.h.b16 %v258
    %v1456 = vunpack.c.l.b16 %v259
    %v1457 = vunpack.c.h.b16 %v259
    %v1458 = vunpack.c.l.b16 %v260
    %v1459 = vunpack.c.h.b16 %v260
    %v1460 = vunpack.c.l.b16 %v261
    %v1461 = vunpack.c.h.b16 %v261
    %v1462 = vunpack.c.l.b16 %v262
    %v1463 = vunpack.c.h.b16 %v262
    %v1464 = vunpack.c.l.b16 %v263
    %v1465 = vunpack.c.h.b16 %v263
    %v1466 = vunpack.c.l.b16 %v264
    %v1467 = vunpack.c.h.b16 %v264
    %v1468 = vunpack.c.l.b16 %v265
    %v1469 = vunpack.c.h.b16 %v265
    %v1470 = vunpack.c.l.b16 %v266
    %v1471 = vunpack.c.h.b16 %v266
    %v1472 = vunpack.c.l.b16 %v267
    %v1473 = vunpack.c.h.b16 %v267
    %v1474 = vunpack.c.l.b16 %v268
    %v1475 = vunpack.c.h.b16 %v268
    %v1476 = vunpack.c.l.b16 %v269
    %v1477 = vunpack.c.h.b16 %v269
    %v1478 = vunpack.c.l.b16 %v270
    %v1479 = vunpack.c.h.b16 %v270
    %v1480 = vunpack.c.l.b16 %v271
    %v1481 = vunpack.c.h.b16 %v271
    %v1482 = vunpack.c.l.b16 %v272
    %v1483 = vunpack.c.h.b16 %v272
    %v1484 = vunpack.c.l.b16 %v273
    %v1485 = vunpack.c.h.b16 %v273
    %v1486 = vunpack.c.l.b16 %v274
    %v1487 = vunpack.c.h.b16 %v274
    %v1488 = vunpack.c.l.b16 %v275
    %v1489 = vunpack.c.h.b16 %v275
    %v1490 = vunpack.c.l.b16 %v276
    %v1491 = vunpack.c.h.b16 %v276
    %v1492 = vunpack.c.l.b16 %v277
    %v1493 = vunpack.c.h.b16 %v277
    %v1494 = vunpack.c.l.b16 %v278
    %v1495 = vunpack.c.h.b16 %v278
    %v1496 = vunpack.c.l.b16 %v279
    %v1497 = vunpack.c.h.b16 %v279
    %v1498 = vunpack.c.l.b16 %v280
    %v1499 = vunpack.c.h.b16 %v280
    %v1500 = vunpack.c.l.b16 %v281
    %v1501 = vunpack.c.h.b16 %v281
    %v1502 = vunpack.c.l.b16 %v282
    %v1503 = vunpack.c.h.b16 %v282
    %v1504 = vunpack.c.l.b16 %v283
    %v1505 = vunpack.c.h.b16 %v283
    %v1506 = vunpack.c.l.b16 %v284
    %v1507 = vunpack.c.h.b16 %v284
    %v1508 = vunpack.c.l.b16 %v285
    %v1509 = vunpack.c.h.b16 %v285
    %v1510 = vunpack.c.l.b16 %v286
    %v1511 = vunpack.c.h.b16 %v286
    %v1512 = vunpack.c.l.b16 %v287
    %v1513 = vunpack.c.h.b16 %v287
    %v1514 = vunpack.c.l.b16 %v288
    %v1515 = vunpack.c.h.b16 %v288
    %v1516 = vunpack.c.l.b16 %v289
    %v1517 = vunpack.c.h.b16 %v289
    %v1518 = vunpack.c.l.b16 %v290
    %v1519 = vunpack.c.h.b16 %v290
    %v1520 = vunpack.c.l.b16 %v291
    %v1521 = vunpack.c.h.b16 %v291
    %v1522 = vunpack.c.l.b16 %v292
    %v1523 = vunpack.c.h.b16 %v292
    %v1524 = vunpack.c.l.b16 %v293
    %v1525 = vunpack.c.h.b16 %v293
    %v1526 = vunpack.c.l.b16 %v294
    %v1527 = vunpack.c.h.b16 %v294
    %v1528 = vunpack.c.l.b16 %v295
    %v1529 = vunpack.c.h.b16 %v295
    %v1530 = vunpack.c.l.b16 %v296
    %v1531 = vunpack.c.h.b16 %v296
    %v1532 = vunpack.c.l.b16 %v297
    %v1533 = vunpack.c.h.b16 %v297
    %v1534 = vunpack.c.l.b16 %v298
    %v1535 = vunpack.c.h.b16 %v298
    %v1536 = vunpack.c.l.b16 %v299
    %v1537 = vunpack.c.h.b16 %v299
    %v1538 = vunpack.c.l.b16 %v300
    %v1539 = vunpack.c.h.b16 %v300
    %v1540 = vunpack.c.l.b16 %v301
    %v1541 = vunpack.c.h.b16 %v301
    %v1542 = vunpack.c.l.b16 %v302
    %v1543 = vunpack.c.h.b16 %v302
    %v1544 = vunpack.c.l.b16 %v303
    %v1545 = vunpack.c.h.b16 %v303
    %v1546 = vunpack.c.l.b16 %v304
    %v1547 = vunpack.c.h.b16 %v304
    %v1548 = vunpack.c.l.b16 %v305
    %v1549 = vunpack.c.h.b16 %v305
    %v1550 = vunpack.c.l.b16 %v306
    %v1551 = vunpack.c.h.b16 %v306
    %v1552 = vunpack.c.l.b16 %v307
    %v1553 = vunpack.c.h.b16 %v307
    %v1554 = vunpack.c.l.b16 %v308
    %v1555 = vunpack.c.h.b16 %v308
    %v1556 = vunpack.c.l.b16 %v309
    %v1557 = vunpack.c.h.b16 %v309
    %v1558 = vunpack.c.l.b16 %v310
    %v1559 = vunpack.c.h.b16 %v310
    %v1560 = vunpack.c.l.b16 %v311
    %v1561 = vunpack.c.h.b16 %v311
    %v1562 = vunpack.c.l.b16 %v312
    %v1563 = vunpack.c.h.b16 %v312
    %v1564 = vunpack.c.l.b16 %v313
    %v1565 = vunpack.c.h.b16 %v313
    %v1566 = vunpack.c.l.b16 %v314
    %v1567 = vunpack.c.h.b16 %v314
    %v1568 = vunpack.c.l.b16 %v315
    %v1569 = vunpack.c.h.b16 %v315
    %v1570 = vunpack.c.l.b16 %v316
    %v1571 = vunpack.c.h.b16 %v316
    %v1572 = vunpack.c.l.b16 %v317
    %v1573 = vunpack.c.h.b16 %v317
    %v1574 = vunpack.c.l.b16 %v318
    %v1575 = vunpack.c.h.b16 %v318
    %v1576 = vunpack.c.l.b16 %v319
    %v1577 = vunpack.c.h.b16 %v319
    %v1578 = vunpack.c.l.b16 %v320
    %v1579 = vunpack.c.h.b16 %v320
    %v1580 = vunpack.c.l.b16 %v321
    %v1581 = vunpack.c.h.b16 %v321
    %v1582 = vunpack.c.l.b16 %v322
    %v1583 = vunpack.c.h.b16 %v322
    %v1584 = vunpack.c.l.b16 %v323
    %v1585 = vunpack.c.h.b16 %v323
    %v1586 = vunpack.c.l.b16 %v324
    %v1587 = vunpack.c.h.b16 %v324
    %v1588 = vunpack.c.l.b16 %v325
    %v1589 = vunpack.c.h.b16 %v325
    %v1590 = vunpack.c.l.b16 %v326
    %v1591 = vunpack.c.h.b16 %v326
    %v1592 = vunpack.c.l.b16 %v327
    %v1593 = vunpack.c.h.b16 %v327
    %v1594 = vunpack.c.l.b16 %v328
    %v1595 = vunpack.c.h.b16 %v328
    %v1596 = vunpack.c.l.b16 %v329
    %v1597 = vunpack.c.h.b16 %v329
    %v1598 = vunpack.c.l.b16 %v330
    %v1599 = vunpack.c.h.b16 %v330
    %v1600 = vunpack.c.l.b16 %v331
    %v1601 = vunpack.c.h.b16 %v331
    %v1602 = vunpack.c.l.b16 %v332
    %v1603 = vunpack.c.h.b16 %v332
    %v1604 = vunpack.c.l.b16 %v333
    %v1605 = vunpack.c.h.b16 %v333
    %v1606 = vunpack.c.l.b16 %v334
    %v1607 = vunpack.c.h.b16 %v334
    %v1608 = vunpack.c.l.b16 %v335
    %v1609 = vunpack.c.h.b16 %v335
    %v1610 = vunpack.c.l.b16 %v336
    %v1611 = vunpack.c.h.b16 %v336
    %v1612 = vunpack.c.l.b16 %v337
    %v1613 = vunpack.c.h.b16 %v337
    %v1614 = vunpack.c.l.b16 %v338
    %v1615 = vunpack.c.h.b16 %v338
    %v1616 = vunpack.c.l.b16 %v339
    %v1617 = vunpack.c.h.b16 %v339
    %v1618 = vunpack.c.l.b16 %v340
    %v1619 = vunpack.c.h.b16 %v340
    %v1620 = vunpack.c.l.b16 %v341
    %v1621 = vunpack.c.h.b16 %v341
    %v1622 = vunpack.c.l.b16 %v342
    %v1623 = vunpack.c.h.b16 %v342
    %v1624 = vunpack.c.l.b16 %v343
    %v1625 = vunpack.c.h.b16 %v343
    %v1626 = vunpack.c.l.b16 %v344
    %v1627 = vunpack.c.h.b16 %v344
    %v1628 = vunpack.c.l.b16 %v345
    %v1629 = vunpack.c.h.b16 %v345
    %v1630 = vunpack.c.l.b16 %v346
    %v1631 = vunpack.c.h.b16 %v346
    %v1632 = vunpack.c.l.b16 %v347
    %v1633 = vunpack.c.h.b16 %v347
    %v1634 = vunpack.c.l.b16 %v348
    %v1635 = vunpack.c.h.b16 %v348
    %v1636 = vunpack.c.l.b16 %v349
    %v1637 = vunpack.c.h.b16 %v349
    %v1638 = vunpack.c.l.b16 %v350
    %v1639 = vunpack.c.h.b16 %v350
    %v1640 = vunpack.c.l.b16 %v351
    %v1641 = vunpack.c.h.b16 %v351
    %v1642 = vunpack.c.l.b16 %v352
    %v1643 = vunpack.c.h.b16 %v352
    %v1644 = vunpack.c.l.b16 %v353
    %v1645 = vunpack.c.h.b16 %v353
    %v1646 = vunpack.c.l.b16 %v354
    %v1647 = vunpack.c.h.b16 %v354
    %v1648 = vunpack.c.l.b16 %v355
    %v1649 = vunpack.c.h.b16 %v355
    %v1650 = vunpack.c.l.b16 %v356
    %v1651 = vunpack.c.h.b16 %v356
    %v1652 = vunpack.c.l.b16 %v357
    %v1653 = vunpack.c.h.b16 %v357
    %v1654 = vunpack.c.l.b16 %v358
    %v1655 = vunpack.c.h.b16 %v358
    %v1656 = vunpack.c.l.b16 %v359
    %v1657 = vunpack.c.h.b16 %v359
    %v1658 = vunpack.c.l.b16 %v360
    %v1659 = vunpack.c.h.b16 %v360
    %v1660 = vunpack.c.l.b16 %v361
    %v1661 = vunpack.c.h.b16 %v361
    %v1662 = vunpack.c.l.b16 %v362
    %v1663 = vunpack.c.h.b16 %v362
    %v1664 = vunpack.c.l.b16 %v363
    %v1665 = vunpack.c.h.b16 %v363
    %v1666 = vunpack.c.l.b16 %v364
    %v1667 = vunpack.c.h.b16 %v364
    %v1668 = vunpack.c.l.b16 %v365
    %v1669 = vunpack.c.h.b16 %v365
    %v1670 = vunpack.c.l.b16 %v366
    %v1671 = vunpack.c.h.b16 %v366
    %v1672 = vunpack.c.l.b16 %v367
    %v1673 = vunpack.c.h.b16 %v367
    %v1674 = vunpack.c.l.b16 %v368
    %v1675 = vunpack.c.h.b16 %v368
    %v1676 = vunpack.c.l.b16 %v369
    %v1677 = vunpack.c.h.b16 %v369
    %v1678 = vunpack.c.l.b16 %v370
    %v1679 = vunpack.c.h.b16 %v370
    %v1680 = vunpack.c.l.b16 %v371
    %v1681 = vunpack.c.h.b16 %v371
    %v1682 = vunpack.c.l.b16 %v372
    %v1683 = vunpack.c.h.b16 %v372
    %v1684 = vunpack.c.l.b16 %v373
    %v1685 = vunpack.c.h.b16 %v373
    %v1686 = vunpack.c.l.b16 %v374
    %v1687 = vunpack.c.h.b16 %v374
    %v1688 = vunpack.c.l.b16 %v375
    %v1689 = vunpack.c.h.b16 %v375
    %v1690 = vunpack.c.l.b16 %v376
    %v1691 = vunpack.c.h.b16 %v376
    %v1692 = vunpack.c.l.b16 %v377
    %v1693 = vunpack.c.h.b16 %v377
    %v1694 = vunpack.c.l.b16 %v378
    %v1695 = vunpack.c.h.b16 %v378
    %v1696 = vunpack.c.l.b16 %v379
    %v1697 = vunpack.c.h.b16 %v379
    %v1698 = vunpack.c.l.b16 %v380
    %v1699 = vunpack.c.h.b16 %v380
    %v1700 = vunpack.c.l.b16 %v381
    %v1701 = vunpack.c.h.b16 %v381
    %v1702 = vunpack.c.l.b16 %v382
    %v1703 = vunpack.c.h.b16 %v382
    %v1704 = vunpack.c.l.b16 %v383
    %v1705 = vunpack.c.h.b16 %v383
    %v1706 = vunpack.c.l.b16 %v384
    %v1707 = vunpack.c.h.b16 %v384
    %v1708 = vunpack.c.l.b16 %v385
    %v1709 = vunpack.c.h.b16 %v385
    %v1710 = vunpack.c.l.b16 %v386
    %v1711 = vunpack.c.h.b16 %v386
    %v1712 = vunpack.c.l.b16 %v387
    %v1713 = vunpack.c.h.b16 %v387
    %v1714 = vunpack.c.l.b16 %v388
    %v1715 = vunpack.c.h.b16 %v388
    %v1716 = vunpack.c.l.b16 %v389
    %v1717 = vunpack.c.h.b16 %v389
    %v1718 = vunpack.c.l.b16 %v390
    %v1719 = vunpack.c.h.b16 %v390
    %v1720 = vunpack.c.l.b16 %v391
    %v1721 = vunpack.c.h.b16 %v391
    %v1722 = vunpack.c.l.b16 %v392
    %v1723 = vunpack.c.h.b16 %v392
    %v1724 = vunpack.c.l.b16 %v393
    %v1725 = vunpack.c.h.b16 %v393
    %v1726 = vunpack.c.l.b16 %v394
    %v1727 = vunpack.c.h.b16 %v394
    %v1728 = vunpack.c.l.b16 %v395
    %v1729 = vunpack.c.h.b16 %v395
    %v1730 = vunpack.c.l.b16 %v396
    %v1731 = vunpack.c.h.b16 %v396
    %v1732 = vunpack.c.l.b16 %v397
    %v1733 = vunpack.c.h.b16 %v397
    %v1734 = vunpack.c.l.b16 %v398
    %v1735 = vunpack.c.h.b16 %v398
    %v1736 = vunpack.c.l.b16 %v399
    %v1737 = vunpack.c.h.b16 %v399
    %v1738 = vunpack.c.l.b16 %v400
    %v1739 = vunpack.c.h.b16 %v400
    %v1740 = vunpack.c.l.b16 %v401
    %v1741 = vunpack.c.h.b16 %v401
    %v1742 = vunpack.c.l.b16 %v402
    %v1743 = vunpack.c.h.b16 %v402
    %v1744 = vunpack.c.l.b16 %v403
    %v1745 = vunpack.c.h.b16 %v403
    %v1746 = vunpack.c.l.b16 %v404
    %v1747 = vunpack.c.h.b16 %v404
    %v1748 = vunpack.c.l.b16 %v405
    %v1749 = vunpack.c.h.b16 %v405
    %v1750 = vunpack.c.l.b16 %v406
    %v1751 = vunpack.c.h.b16 %v406
    %v1752 = vunpack.c.l.b16 %v407
    %v1753 = vunpack.c.h.b16 %v407
    %v1754 = vunpack.c.l.b16 %v408
    %v1755 = vunpack.c.h.b16 %v408
    %v1756 = vunpack.c.l.b16 %v409
    %v1757 = vunpack.c.h.b16 %v409
    %v1758 = vunpack.c.l.b16 %v410
    %v1759 = vunpack.c.h.b16 %v410
    %v1760 = vunpack.c.l.b16 %v411
    %v1761 = vunpack.c.h.b16 %v411
    %v1762 = vunpack.c.l.b16 %v412
    %v1763 = vunpack.c.h.b16 %v412
    %v1764 = vunpack.c.l.b16 %v413
    %v1765 = vunpack.c.h.b16 %v413
    %v1766 = vunpack.c.l.b16 %v414
    %v1767 = vunpack.c.h.b16 %v414
    %v1768 = vunpack.c.l.b16 %v415
    %v1769 = vunpack.c.h.b16 %v415
    %v1770 = vunpack.c.l.b16 %v416
    %v1771 = vunpack.c.h.b16 %v416
    %v1772 = vunpack.c.l.b16 %v417
    %v1773 = vunpack.c.h.b16 %v417
    %v1774 = vunpack.c.l.b16 %v418
    %v1775 = vunpack.c.h.b16 %v418
    %v1776 = vunpack.c.l.b16 %v419
    %v1777 = vunpack.c.h.b16 %v419
    %v1778 = vunpack.c.l.b16 %v420
    %v1779 = vunpack.c.h.b16 %v420
    %v1780 = vunpack.c.l.b16 %v421
    %v1781 = vunpack.c.h.b16 %v421
    %v1782 = vunpack.c.l.b16 %v422
    %v1783 = vunpack.c.h.b16 %v422
    %v1784 = vunpack.c.l.b16 %v423
    %v1785 = vunpack.c.h.b16 %v423
    %v1786 = vunpack.c.l.b16 %v424
    %v1787 = vunpack.c.h.b16 %v424
    %v1788 = vunpack.c.l.b16 %v425
    %v1789 = vunpack.c.h.b16 %v425
    %v1790 = vunpack.c.l.b16 %v426
    %v1791 = vunpack.c.h.b16 %v426
    %v1792 = vunpack.c.l.b16 %v427
    %v1793 = vunpack.c.h.b16 %v427
    %v1794 = vunpack.c.l.b16 %v428
    %v1795 = vunpack.c.h.b16 %v428
    %v1796 = vunpack.c.l.b16 %v429
    %v1797 = vunpack.c.h.b16 %v429
    %v1798 = vunpack.c.l.b16 %v430
    %v1799 = vunpack.c.h.b16 %v430
    %v1800 = vunpack.c.l.b16 %v431
    %v1801 = vunpack.c.h.b16 %v431
    %v1802 = vunpack.c.l.b16 %v432
    %v1803 = vunpack.c.h.b16 %v432
    %v1804 = vunpack.c.l.b16 %v433
    %v1805 = vunpack.c.h.b16 %v433
    %v1806 = vunpack.c.l.b16 %v434
    %v1807 = vunpack.c.h.b16 %v434
    %v1808 = vunpack.c.l.b16 %v435
    %v1809 = vunpack.c.h.b16 %v435
    %v1810 = vunpack.c.l.b16 %v436
    %v1811 = vunpack.c.h.b16 %v436
    %v1812 = vunpack.c.l.b16 %v437
    %v1813 = vunpack.c.h.b16 %v437
    %v1814 = vunpack.c.l.b16 %v438
    %v1815 = vunpack.c.h.b16 %v438
    %v1816 = vunpack.c.l.b16 %v439
    %v1817 = vunpack.c.h.b16 %v439
    %v1818 = vunpack.c.l.b16 %v440
    %v1819 = vunpack.c.h.b16 %v440
    %v1820 = vunpack.c.l.b16 %v441
    %v1821 = vunpack.c.h.b16 %v441
    %v1822 = vunpack.c.l.b16 %v442
    %v1823 = vunpack.c.h.b16 %v442
    %v1824 = vunpack.c.l.b16 %v443
    %v1825 = vunpack.c.h.b16 %v443
    %v1826 = vunpack.c.l.b16 %v444
    %v1827 = vunpack.c.h.b16 %v444
    %v1828 = vunpack.c.l.b16 %v445
    %v1829 = vunpack.c.h.b16 %v445
    %v1830 = vunpack.c.l.b16 %v446
    %v1831 = vunpack.c.h.b16 %v446
    %v1832 = vunpack.c.l.b16 %v447
    %v1833 = vunpack.c.h.b16 %v447
    %v1834 = vunpack.c.l.b16 %v448
    %v1835 = vunpack.c.h.b16 %v448
    %v1836 = vunpack.c.l.b16 %v449
    %v1837 = vunpack.c.h.b16 %v449
    %v1838 = vunpack.c.l.b16 %v450
    %v1839 = vunpack.c.h.b16 %v450
    %v1840 = vunpack.c.l.b16 %v451
    %v1841 = vunpack.c.h.b16 %v451
    %v1842 = vunpack.c.l.b16 %v452
    %v1843 = vunpack.c.h.b16 %v452
    %v1844 = vunpack.c.l.b16 %v453
    %v1845 = vunpack.c.h.b16 %v453
    %v1846 = vunpack.c.l.b16 %v454
    %v1847 = vunpack.c.h.b16 %v454
    %v1848 = vunpack.c.l.b16 %v455
    %v1849 = vunpack.c.h.b16 %v455
    %v1850 = vunpack.c.l.b16 %v456
    %v1851 = vunpack.c.h.b16 %v456
    %v1852 = vunpack.c.l.b16 %v457
    %v1853 = vunpack.c.h.b16 %v457
    %v1854 = vunpack.c.l.b16 %v458
    %v1855 = vunpack.c.h.b16 %v458
    %v1856 = vunpack.c.l.b16 %v459
    %v1857 = vunpack.c.h.b16 %v459
    %v1858 = vunpack.c.l.b16 %v460
    %v1859 = vunpack.c.h.b16 %v460
    %v1860 = vunpack.c.l.b16 %v461
    %v1861 = vunpack.c.h.b16 %v461
    %v1862 = vunpack.c.l.b16 %v462
    %v1863 = vunpack.c.h.b16 %v462
    %v1864 = vunpack.c.l.b16 %v463
    %v1865 = vunpack.c.h.b16 %v463
    %v1866 = vunpack.c.l.b16 %v464
    %v1867 = vunpack.c.h.b16 %v464
    %v1868 = vunpack.c.l.b16 %v465
    %v1869 = vunpack.c.h.b16 %v465
    %v1870 = vunpack.c.l.b16 %v466
    %v1871 = vunpack.c.h.b16 %v466
    %v1872 = vunpack.c.l.b16 %v467
    %v1873 = vunpack.c.h.b16 %v467
    %v1874 = vunpack.c.l.b16 %v468
    %v1875 = vunpack.c.h.b16 %v468
    %v1876 = vunpack.c.l.b16 %v469
    %v1877 = vunpack.c.h.b16 %v469
    %v1878 = vunpack.c.l.b16 %v470
    %v1879 = vunpack.c.h.b16 %v470
    %v1880 = vunpack.c.l.b16 %v471
    %v1881 = vunpack.c.h.b16 %v471
    %v1882 = vunpack.c.l.b16 %v472
    %v1883 = vunpack.c.h.b16 %v472
    %v1884 = vunpack.c.l.b16 %v473
    %v1885 = vunpack.c.h.b16 %v473
    %v1886 = vunpack.c.l.b16 %v474
    %v1887 = vunpack.c.h.b16 %v474
    %v1888 = vunpack.c.l.b16 %v475
    %v1889 = vunpack.c.h.b16 %v475
    %v1890 = vunpack.c.l.b16 %v476
    %v1891 = vunpack.c.h.b16 %v476
    %v1892 = vunpack.c.l.b16 %v477
    %v1893 = vunpack.c.h.b16 %v477
    %v1894 = vunpack.c.l.b16 %v478
    %v1895 = vunpack.c.h.b16 %v478
    %v1896 = vunpack.c.l.b16 %v479
    %v1897 = vunpack.c.h.b16 %v479
    %v1898 = vunpack.c.l.b16 %v480
    %v1899 = vunpack.c.h.b16 %v480
    %v1900 = vunpack.c.l.b16 %v481
    %v1901 = vunpack.c.h.b16 %v481
    %v1902 = vunpack.c.l.b16 %v482
    %v1903 = vunpack.c.h.b16 %v482
    %v1904 = vunpack.c.l.b16 %v483
    %v1905 = vunpack.c.h.b16 %v483
    %v1906 = vunpack.c.l.b16 %v484
    %v1907 = vunpack.c.h.b16 %v484
    %v1908 = vunpack.c.l.b16 %v485
    %v1909 = vunpack.c.h.b16 %v485
    %v1910 = vunpack.c.l.b16 %v486
    %v1911 = vunpack.c.h.b16 %v486
    %v1912 = vunpack.c.l.b16 %v487
    %v1913 = vunpack.c.h.b16 %v487
    %v1914 = vunpack.c.l.b16 %v488
    %v1915 = vunpack.c.h.b16 %v488
    %v1916 = vunpack.c.l.b16 %v489
    %v1917 = vunpack.c.h.b16 %v489
    %v1918 = vunpack.c.l.b16 %v490
    %v1919 = vunpack.c.h.b16 %v490
    %v1920 = vunpack.c.l.b16 %v491
    %v1921 = vunpack.c.h.b16 %v491
    %v1922 = vunpack.c.l.b16 %v492
    %v1923 = vunpack.c.h.b16 %v492
    %v1924 = vunpack.c.l.b16 %v493
    %v1925 = vunpack.c.h.b16 %v493
    %v1926 = vunpack.c.l.b16 %v494
    %v1927 = vunpack.c.h.b16 %v494
    %v1928 = vunpack.c.l.b16 %v495
    %v1929 = vunpack.c.h.b16 %v495
    %v1930 = vunpack.c.l.b16 %v496
    %v1931 = vunpack.c.h.b16 %v496
    %v1932 = vunpack.c.l.b16 %v497
    %v1933 = vunpack.c.h.b16 %v497
    %v1934 = vunpack.c.l.b16 %v498
    %v1935 = vunpack.c.h.b16 %v498
    %v1936 = vunpack.c.l.b16 %v499
    %v1937 = vunpack.c.h.b16 %v499
    %v1938 = vunpack.c.l.b16 %v500
    %v1939 = vunpack.c.h.b16 %v500
    %v1940 = vunpack.c.l.b16 %v501
    %v1941 = vunpack.c.h.b16 %v501
    %v1942 = vunpack.c.l.b16 %v502
    %v1943 = vunpack.c.h.b16 %v502
    %v1944 = vunpack.c.l.b16 %v503
    %v1945 = vunpack.c.h.b16 %v503
    %v1946 = vunpack.c.l.b16 %v504
    %v1947 = vunpack.c.h.b16 %v504
    %v1948 = vunpack.c.l.b16 %v505
    %v1949 = vunpack.c.h.b16 %v505
    %v1950 = vunpack.c.l.b16 %v506
    %v1951 = vunpack.c.h.b16 %v506
    %v1952 = vunpack.c.l.b16 %v507
    %v1953 = vunpack.c.h.b16 %v507
    %v1954 = vunpack.c.l.b16 %v508
    %v1955 = vunpack.c.h.b16 %v508
    %v1956 = vunpack.c.l.b16 %v509
    %v1957 = vunpack.c.h.b16 %v509
    %v1958 = vunpack.c.l.b16 %v510
    %v1959 = vunpack.c.h.b16 %v510
    %v1960 = vunpack.c.l.b16 %v511
    %v1961 = vunpack.c.h.b16 %v511
    %v1962 = vunpack.c.l.b16 %v512
    %v1963 = vunpack.c.h.b16 %v512
    %v1964 = vunpack.c.l.b16 %v513
    %v1965 = vunpack.c.h.b16 %v513
    %v1966 = vunpack.c.l.b16 %v514
    %v1967 = vunpack.c.h.b16 %v514
    %v1968 = vunpack.c.l.b16 %v515
    %v1969 = vunpack.c.h.b16 %v515
    %v1970 = vunpack.c.l.b16 %v516
    %v1971 = vunpack.c.h.b16 %v516
    %v1972 = vunpack.c.l.b16 %v517
    %v1973 = vunpack.c.h.b16 %v517
    %v1974 = vunpack.c.l.b16 %v518
    %v1975 = vunpack.c.h.b16 %v518
    %v1976 = vunpack.c.l.b16 %v519
    %v1977 = vunpack.c.h.b16 %v519
    %v1978 = vunpack.c.l.b16 %v520
    %v1979 = vunpack.c.h.b16 %v520
    %v1980 = vunpack.c.l.b16 %v521
    %v1981 = vunpack.c.h.b16 %v521
    %v1982 = vunpack.c.l.b16 %v522
    %v1983 = vunpack.c.h.b16 %v522
    %v1984 = vunpack.c.l.b16 %v523
    %v1985 = vunpack.c.h.b16 %v523
    %v1986 = vunpack.c.l.b16 %v524
    %v1987 = vunpack.c.h.b16 %v524
    %v1988 = vunpack.c.l.b16 %v525
    %v1989 = vunpack.c.h.b16 %v525
    %v1990 = vunpack.c.l.b16 %v526
    %v1991 = vunpack.c.h.b16 %v526
    %v1992 = vunpack.c.l.b16 %v527
    %v1993 = vunpack.c.h.b16 %v527
    %v1994 = vunpack.c.l.b16 %v528
    %v1995 = vunpack.c.h.b16 %v528
    %v1996 = vunpack.c.l.b16 %v529
    %v1997 = vunpack.c.h.b16 %v529
    %v1998 = vunpack.c.l.b16 %v530
    %v1999 = vunpack.c.h.b16 %v530
    %v2000 = vunpack.c.l.b16 %v531
    %v2001 = vunpack.c.h.b16 %v531
    %v2002 = vunpack.c.l.b16 %v532
    %v2003 = vunpack.c.h.b16 %v532
    %v2004 = vunpack.c.l.b16 %v533
    %v2005 = vunpack.c.h.b16 %v533
    %v2006 = vunpack.c.l.b16 %v534
    %v2007 = vunpack.c.h.b16 %v534
    %v2008 = vunpack.c.l.b16 %v535
    %v2009 = vunpack.c.h.b16 %v535
    %v2010 = vunpack.c.l.b16 %v536
    %v2011 = vunpack.c.h.b16 %v536
    %v2012 = vunpack.c.l.b16 %v537
    %v2013 = vunpack.c.h.b16 %v537
    %v2014 = vunpack.c.l.b16 %v538
    %v2015 = vunpack.c.h.b16 %v538
    %v2016 = vunpack.c.l.b16 %v539
    %v2017 = vunpack.c.h.b16 %v539
    %v2018 = vunpack.c.l.b16 %v540
    %v2019 = vunpack.c.h.b16 %v540
    %v2020 = vunpack.c.l.b16 %v541
    %v2021 = vunpack.c.h.b16 %v541
    %v2022 = vunpack.c.l.b16 %v542
    %v2023 = vunpack.c.h.b16 %v542
    %v2024 = vunpack.c.l.b16 %v543
    %v2025 = vunpack.c.h.b16 %v543
    %v2026 = vunpack.c.l.b16 %v544
    %v2027 = vunpack.c.h.b16 %v544
    %v2028 = vunpack.c.l.b16 %v545
    %v2029 = vunpack.c.h.b16 %v545
    %v2030 = vunpack.c.l.b16 %v546
    %v2031 = vunpack.c.h.b16 %v546
    %v2032 = vunpack.c.l.b16 %v547
    %v2033 = vunpack.c.h.b16 %v547
    %v2034 = vunpack.c.l.b16 %v548
    %v2035 = vunpack.c.h.b16 %v548
    %v2036 = vunpack.c.l.b16 %v549
    %v2037 = vunpack.c.h.b16 %v549
    %v2038 = vunpack.c.l.b16 %v550
    %v2039 = vunpack.c.h.b16 %v550
    %v2040 = vunpack.c.l.b16 %v551
    %v2041 = vunpack.c.h.b16 %v551
    %v2042 = vunpack.c.l.b16 %v552
    %v2043 = vunpack.c.h.b16 %v552
    %v2044 = vunpack.c.l.b16 %v553
    %v2045 = vunpack.c.h.b16 %v553
    %v2046 = vunpack.c.l.b16 %v554
    %v2047 = vunpack.c.h.b16 %v554
    %v2048 = vunpack.c.l.b16 %v555
    %v2049 = vunpack.c.h.b16 %v555
    %v2050 = vunpack.c.l.b16 %v556
    %v2051 = vunpack.c.h.b16 %v556
    %v2052 = vunpack.c.l.b16 %v557
    %v2053 = vunpack.c.h.b16 %v557
    %v2054 = vunpack.c.l.b16 %v558
    %v2055 = vunpack.c.h.b16 %v558
    %v2056 = vunpack.c.l.b16 %v559
    %v2057 = vunpack.c.h.b16 %v559
    %v2058 = vunpack.c.l.b16 %v560
    %v2059 = vunpack.c.h.b16 %v560
    %v2060 = vunpack.c.l.b16 %v561
    %v2061 = vunpack.c.h.b16 %v561
    %v2062 = vunpack.c.l.b16 %v562
    %v2063 = vunpack.c.h.b16 %v562
    %v2064 = vunpack.c.l.b16 %v563
    %v2065 = vunpack.c.h.b16 %v563
    %v2066 = vunpack.c.l.b16 %v564
    %v2067 = vunpack.c.h.b16 %v564
    %v2068 = vunpack.c.l.b16 %v565
    %v2069 = vunpack.c.h.b16 %v565
    %v2070 = vunpack.c.l.b16 %v566
    %v2071 = vunpack.c.h.b16 %v566
    %v2072 = vunpack.c.l.b16 %v567
    %v2073 = vunpack.c.h.b16 %v567
    %v2074 = vunpack.c.l.b16 %v568
    %v2075 = vunpack.c.h.b16 %v568
    %v2076 = vunpack.c.l.b16 %v569
    %v2077 = vunpack.c.h.b16 %v569
    %v2078 = vunpack.c.l.b16 %v570
    %v2079 = vunpack.c.h.b16 %v570
    %v2080 = vunpack.c.l.b16 %v571
    %v2081 = vunpack.c.h.b16 %v571
    %v2082 = vunpack.c.l.b16 %v572
    %v2083 = vunpack.c.h.b16 %v572
    %v2084 = vunpack.c.l.b16 %v573
    %v2085 = vunpack.c.h.b16 %v573
    %v2086 = vunpack.c.l.b16 %v574
    %v2087 = vunpack.c.h.b16 %v574
    %v2088 = vunpack.c.l.b16 %v575
    %v2089 = vunpack.c.h.b16 %v575
    %v2090 = vunpack.c.l.b16 %v576
    %v2091 = vunpack.c.h.b16 %v576
    %v2092 = vunpack.c.l.b16 %v577
    %v2093 = vunpack.c.h.b16 %v577
    %v2094 = vunpack.c.l.b16 %v578
    %v2095 = vunpack.c.h.b16 %v578
    %v2096 = vunpack.c.l.b16 %v579
    %v2097 = vunpack.c.h.b16 %v579
    %v2098 = vunpack.c.l.b16 %v580
    %v2099 = vunpack.c.h.b16 %v580
    %v2100 = vunpack.c.l.b16 %v581
    %v2101 = vunpack.c.h.b16 %v581
    %v2102 = vunpack.c.l.b16 %v582
    %v2103 = vunpack.c.h.b16 %v582
    %v2104 = vunpack.c.l.b16 %v583
    %v2105 = vunpack.c.h.b16 %v583
    %v2106 = vunpack.c.l.b16 %v584
    %v2107 = vunpack.c.h.b16 %v584
    %v2108 = vunpack.c.l.b16 %v585
    %v2109 = vunpack.c.h.b16 %v585
    %v2110 = vunpack.c.l.b16 %v586
    %v2111 = vunpack.c.h.b16 %v586
    %v2112 = vunpack.c.l.b16 %v587
    %v2113 = vunpack.c.h.b16 %v587
    %v2114 = vunpack.c.l.b16 %v588
    %v2115 = vunpack.c.h.b16 %v588
    %v2116 = vunpack.c.l.b16 %v589
    %v2117 = vunpack.c.h.b16 %v589
    %v2118 = vunpack.c.l.b16 %v590
    %v2119 = vunpack.c.h.b16 %v590
    %v2120 = vunpack.c.l.b16 %v591
    %v2121 = vunpack.c.h.b16 %v591
    %v2122 = vunpack.c.l.b16 %v592
    %v2123 = vunpack.c.h.b16 %v592
    %v2124 = vunpack.c.l.b16 %v593
    %v2125 = vunpack.c.h.b16 %v593
    %v2126 = vunpack.c.l.b16 %v594
    %v2127 = vunpack.c.h.b16 %v594
    %v2128 = vunpack.c.l.b16 %v595
    %v2129 = vunpack.c.h.b16 %v595
    %v2130 = vunpack.c.l.b16 %v596
    %v2131 = vunpack.c.h.b16 %v596
    %v2132 = vunpack.c.l.b16 %v597
    %v2133 = vunpack.c.h.b16 %v597
    %v2134 = vunpack.c.l.b16 %v598
    %v2135 = vunpack.c.h.b16 %v598
    %v2136 = vunpack.c.l.b16 %v599
    %v2137 = vunpack.c.h.b16 %v599
    %v2138 = vunpack.c.l.b16 %v600
    %v2139 = vunpack.c.h.b16 %v600
    %v2140 = vunpack.c.l.b16 %v601
    %v2141 = vunpack.c.h.b16 %v601
    %v2142 = vunpack.c.l.b16 %v602
    %v2143 = vunpack.c.h.b16 %v602
    %v2144 = vunpack.c.l.b16 %v603
    %v2145 = vunpack.c.h.b16 %v603
    %v2146 = vunpack.c.l.b16 %v604
    %v2147 = vunpack.c.h.b16 %v604
    %v2148 = vunpack.c.l.b16 %v605
    %v2149 = vunpack.c.h.b16 %v605
    %v2150 = vunpack.c.l.b16 %v606
    %v2151 = vunpack.c.h.b16 %v606
    %v2152 = vunpack.c.l.b16 %v607
    %v2153 = vunpack.c.h.b16 %v607
    %v2154 = vunpack.c.l.b16 %v608
    %v2155 = vunpack.c.h.b16 %v608
    %v2156 = vunpack.c.l.b16 %v609
    %v2157 = vunpack.c.h.b16 %v609
    %v2158 = vunpack.c.l.b16 %v610
    %v2159 = vunpack.c.h.b16 %v610
    %v2160 = vunpack.c.l.b16 %v611
    %v2161 = vunpack.c.h.b16 %v611
    %v2162 = vunpack.c.l.b16 %v612
    %v2163 = vunpack.c.h.b16 %v612
    %v2164 = vunpack.c.l.b16 %v613
    %v2165 = vunpack.c.h.b16 %v613
    %v2166 = vunpack.c.l.b16 %v614
    %v2167 = vunpack.c.h.b16 %v614
    %v2168 = vunpack.c.l.b16 %v615
    %v2169 = vunpack.c.h.b16 %v615
    %v2170 = vunpack.c.l.b16 %v616
    %v2171 = vunpack.c.h.b16 %v616
    %v2172 = vunpack.c.l.b16 %v617
    %v2173 = vunpack.c.h.b16 %v617
    %v2174 = vunpack.c.l.b16 %v618
    %v2175 = vunpack.c.h.b16 %v618
    %v2176 = vunpack.c.l.b16 %v619
    %v2177 = vunpack.c.h.b16 %v619
    %v2178 = vunpack.c.l.b16 %v620
    %v2179 = vunpack.c.h.b16 %v620
    %v2180 = vunpack.c.l.b16 %v621
    %v2181 = vunpack.c.h.b16 %v621
    %v2182 = vunpack.c.l.b16 %v622
    %v2183 = vunpack.c.h.b16 %v622
    %v2184 = vunpack.c.l.b16 %v623
    %v2185 = vunpack.c.h.b16 %v623
    %v2186 = vunpack.c.l.b16 %v624
    %v2187 = vunpack.c.h.b16 %v624
    %v2188 = vunpack.c.l.b16 %v625
    %v2189 = vunpack.c.h.b16 %v625
    %v2190 = vunpack.c.l.b16 %v626
    %v2191 = vunpack.c.h.b16 %v626
    %v2192 = vunpack.c.l.b16 %v627
    %v2193 = vunpack.c.h.b16 %v627
    %v2194 = vunpack.c.l.b16 %v628
    %v2195 = vunpack.c.h.b16 %v628
    %v2196 = vunpack.c.l.b16 %v629
    %v2197 = vunpack.c.h.b16 %v629
    %v2198 = vunpack.c.l.b16 %v630
    %v2199 = vunpack.c.h.b16 %v630
    %v2200 = vunpack.c.l.b16 %v631
    %v2201 = vunpack.c.h.b16 %v631
    %v2202 = vunpack.c.l.b16 %v632
    %v2203 = vunpack.c.h.b16 %v632
    %v2204 = vunpack.c.l.b16 %v633
    %v2205 = vunpack.c.h.b16 %v633
    %v2206 = vunpack.c.l.b16 %v634
    %v2207 = vunpack.c.h.b16 %v634
    %v2208 = vunpack.c.l.b16 %v635
    %v2209 = vunpack.c.h.b16 %v635
    %v2210 = vunpack.c.l.b16 %v636
    %v2211 = vunpack.c.h.b16 %v636
    %v2212 = vunpack.c.l.b16 %v637
    %v2213 = vunpack.c.h.b16 %v637
    %v2214 = vunpack.c.l.b16 %v638
    %v2215 = vunpack.c.h.b16 %v638
    %v2216 = vunpack.c.l.b16 %v639
    %v2217 = vunpack.c.h.b16 %v639
    %v2218 = vunpack.c.l.b16 %v640
    %v2219 = vunpack.c.h.b16 %v640
    %v2220 = vunpack.c.l.b16 %v641
    %v2221 = vunpack.c.h.b16 %v641
    %v2222 = vunpack.c.l.b16 %v642
    %v2223 = vunpack.c.h.b16 %v642
    %v2224 = vunpack.c.l.b16 %v643
    %v2225 = vunpack.c.h.b16 %v643
    %v2226 = vpack.c.b16 %v1210, %v1202
    %v2227 = vpack.c.b16 %v1211, %v1203
    %v2228 = vpack.c.b16 %v1212, %v1204
    %v2229 = vpack.c.b16 %v1213, %v1205
    %v2230 = vpack.c.b16 %v1214, %v1206
    %v2231 = vpack.c.b16 %v1215, %v1207
    %v2232 = vpack.c.b16 %v1216, %v1208
    %v2233 = vpack.c.b16 %v1217, %v1209
    %v2234 = vpack.c.b16 %v1226, %v1218
    %v2235 = vpack.c.b16 %v1227, %v1219
    %v2236 = vpack.c.b16 %v1228, %v1220
    %v2237 = vpack.c.b16 %v1229, %v1221
    %v2238 = vpack.c.b16 %v1230, %v1222
    %v2239 = vpack.c.b16 %v1231, %v1223
    %v2240 = vpack.c.b16 %v1232, %v1224
    %v2241 = vpack.c.b16 %v1233, %v1225
    %v2242 = vpack.c.b16 %v1242, %v1234
    %v2243 = vpack.c.b16 %v1243, %v1235
    %v2244 = vpack.c.b16 %v1244, %v1236
    %v2245 = vpack.c.b16 %v1245, %v1237
    %v2246 = vpack.c.b16 %v1246, %v1238
    %v2247 = vpack.c.b16 %v1247, %v1239
    %v2248 = vpack.c.b16 %v1248, %v1240
    %v2249 = vpack.c.b16 %v1249, %v1241
    %v2250 = vpack.c.b16 %v1258, %v1250
    %v2251 = vpack.c.b16 %v1259, %v1251
    %v2252 = vpack.c.b16 %v1260, %v1252
    %v2253 = vpack.c.b16 %v1261, %v1253
    %v2254 = vpack.c.b16 %v1262, %v1254
    %v2255 = vpack.c.b16 %v1263, %v1255
    %v2256 = vpack.c.b16 %v1264, %v1256
    %v2257 = vpack.c.b16 %v1265, %v1257
    %v2258 = vpack.c.b16 %v1274, %v1266
    %v2259 = vpack.c.b16 %v1275, %v1267
    %v2260 = vpack.c.b16 %v1276, %v1268
    %v2261 = vpack.c.b16 %v1277, %v1269
    %v2262 = vpack.c.b16 %v1278, %v1270
    %v2263 = vpack.c.b16 %v1279, %v1271
    %v2264 = vpack.c.b16 %v1280, %v1272
    %v2265 = vpack.c.b16 %v1281, %v1273
    %v2266 = vpack.c.b16 %v1290, %v1282
    %v2267 = vpack.c.b16 %v1291, %v1283
    %v2268 = vpack.c.b16 %v1292, %v1284
    %v2269 = vpack.c.b16 %v1293, %v1285
    %v2270 = vpack.c.b16 %v1294, %v1286
    %v2271 = vpack.c.b16 %v1295, %v1287
    %v2272 = vpack.c.b16 %v1296, %v1288
    %v2273 = vpack.c.b16 %v1297, %v1289
    %v2274 = vpack.c.b16 %v1306, %v1298
    %v2275 = vpack.c.b16 %v1307, %v1299
    %v2276 = vpack.c.b16 %v1308, %v1300
    %v2277 = vpack.c.b16 %v1309, %v1301
    %v2278 = vpack.c.b16 %v1310, %v1302
    %v2279 = vpack.c.b16 %v1311, %v1303
    %v2280 = vpack.c.b16 %v1312, %v1304
    %v2281 = vpack.c.b16 %v1313, %v1305
    %v2282 = vpack.c.b16 %v1322, %v1314
    %v2283 = vpack.c.b16 %v1323, %v1315
    %v2284 = vpack.c.b16 %v1324, %v1316
    %v2285 = vpack.c.b16 %v1325, %v1317
    %v2286 = vpack.c.b16 %v1326, %v1318
    %v2287 = vpack.c.b16 %v1327, %v1319
    %v2288 = vpack.c.b16 %v1328, %v1320
    %v2289 = vpack.c.b16 %v1329, %v1321
    %v2290 = vpack.c.b16 %v1338, %v1330
    %v2291 = vpack.c.b16 %v1339, %v1331
    %v2292 = vpack.c.b16 %v1340, %v1332
    %v2293 = vpack.c.b16 %v1341, %v1333
    %v2294 = vpack.c.b16 %v1342, %v1334
    %v2295 = vpack.c.b16 %v1343, %v1335
    %v2296 = vpack.c.b16 %v1344, %v1336
    %v2297 = vpack.c.b16 %v1345, %v1337
    %v2298 = vpack.c.b16 %v1354, %v1346
    %v2299 = vpack.c.b16 %v1355, %v1347
    %v2300 = vpack.c.b16 %v1356, %v1348
    %v2301 = vpack.c.b16 %v1357, %v1349
    %v2302 = vpack.c.b16 %v1358, %v1350
    %v2303 = vpack.c.b16 %v1359, %v1351
    %v2304 = vpack.c.b16 %v1360, %v1352
    %v2305 = vpack.c.b16 %v1361, %v1353
    %v2306 = vpack.c.b16 %v1370, %v1362
    %v2307 = vpack.c.b16 %v1371, %v1363
    %v2308 = vpack.c.b16 %v1372, %v1364
    %v2309 = vpack.c.b16 %v1373, %v1365
    %v2310 = vpack.c.b16 %v1374, %v1366
    %v2311 = vpack.c.b16 %v1375, %v1367
    %v2312 = vpack.c.b16 %v1376, %v1368
    %v2313 = vpack.c.b16 %v1377, %v1369
    %v2314 = vpack.c.b16 %v1386, %v1378
    %v2315 = vpack.c.b16 %v1387, %v1379
    %v2316 = vpack.c.b16 %v1388, %v1380
    %v2317 = vpack.c.b16 %v1389, %v1381
    %v2318 = vpack.c.b16 %v1390, %v1382
    %v2319 = vpack.c.b16 %v1391, %v1383
    %v2320 = vpack.c.b16 %v1392, %v1384
    %v2321 = vpack.c.b16 %v1393, %v1385
    %v2322 = vpack.c.b16 %v1402, %v1394
    %v2323 = vpack.c.b16 %v1403, %v1395
    %v2324 = vpack.c.b16 %v1404, %v1396
    %v2325 = vpack.c.b16 %v1405, %v1397
    %v2326 = vpack.c.b16 %v1406, %v1398
    %v2327 = vpack.c.b16 %v1407, %v1399
    %v2328 = vpack.c.b16 %v1408, %v1400
    %v2329 = vpack.c.b16 %v1409, %v1401
    %v2330 = vpack.c.b16 %v1418, %v1410
    %v2331 = vpack.c.b16 %v1419, %v1411
    %v2332 = vpack.c.b16 %v1420, %v1412
    %v2333 = vpack.c.b16 %v1421, %v1413
    %v2334 = vpack.c.b16 %v1422, %v1414
    %v2335 = vpack.c.b16 %v1423, %v1415
    %v2336 = vpack.c.b16 %v1424, %v1416
    %v2337 = vpack.c.b16 %v1425, %v1417
    %v2338 = vpack.c.b16 %v1434, %v1426
    %v2339 = vpack.c.b16 %v1435, %v1427
    %v2340 = vpack.c.b16 %v1436, %v1428
    %v2341 = vpack.c.b16 %v1437, %v1429
    %v2342 = vpack.c.b16 %v1438, %v1430
    %v2343 = vpack.c.b16 %v1439, %v1431
    %v2344 = vpack.c.b16 %v1440, %v1432
    %v2345 = vpack.c.b16 %v1441, %v1433
    %v2346 = vpack.c.b16 %v1450, %v1442
    %v2347 = vpack.c.b16 %v1451, %v1443
    %v2348 = vpack.c.b16 %v1452, %v1444
    %v2349 = vpack.c.b16 %v1453, %v1445
    %v2350 = vpack.c.b16 %v1454, %v1446
    %v2351 = vpack.c.b16 %v1455, %v1447
    %v2352 = vpack.c.b16 %v1456, %v1448
    %v2353 = vpack.c.b16 %v1457, %v1449
    %v2354 = vpack.c.b16 %v1466, %v1458
    %v2355 = vpack.c.b16 %v1467, %v1459
    %v2356 = vpack.c.b16 %v1468, %v1460
    %v2357 = vpack.c.b16 %v1469, %v1461
    %v2358 = vpack.c.b16 %v1470, %v1462
    %v2359 = vpack.c.b16 %v1471, %v1463
    %v2360 = vpack.c.b16 %v1472, %v1464
    %v2361 = vpack.c.b16 %v1473, %v1465
    %v2362 = vpack.c.b16 %v1482, %v1474
    %v2363 = vpack.c.b16 %v1483, %v1475
    %v2364 = vpack.c.b16 %v1484, %v1476
    %v2365 = vpack.c.b16 %v1485, %v1477
    %v2366 = vpack.c.b16 %v1486, %v1478
    %v2367 = vpack.c.b16 %v1487, %v1479
    %v2368 = vpack.c.b16 %v1488, %v1480
    %v2369 = vpack.c.b16 %v1489, %v1481
    %v2370 = vpack.c.b16 %v1498, %v1490
    %v2371 = vpack.c.b16 %v1499, %v1491
    %v2372 = vpack.c.b16 %v1500, %v1492
    %v2373 = vpack.c.b16 %v1501, %v1493
    %v2374 = vpack.c.b16 %v1502, %v1494
    %v2375 = vpack.c.b16 %v1503, %v1495
    %v2376 = vpack.c.b16 %v1504, %v1496
    %v2377 = vpack.c.b16 %v1505, %v1497
    %v2378 = vpack.c.b16 %v1514, %v1506
    %v2379 = vpack.c.b16 %v1515, %v1507
    %v2380 = vpack.c.b16 %v1516, %v1508
    %v2381 = vpack.c.b16 %v1517, %v1509
    %v2382 = vpack.c.b16 %v1518, %v1510
    %v2383 = vpack.c.b16 %v1519, %v1511
    %v2384 = vpack.c.b16 %v1520, %v1512
    %v2385 = vpack.c.b16 %v1521, %v1513
    %v2386 = vpack.c.b16 %v1530, %v1522
    %v2387 = vpack.c.b16 %v1531, %v1523
    %v2388 = vpack.c.b16 %v1532, %v1524
    %v2389 = vpack.c.b16 %v1533, %v1525
    %v2390 = vpack.c.b16 %v1534, %v1526
    %v2391 = vpack.c.b16 %v1535, %v1527
    %v2392 = vpack.c.b16 %v1536, %v1528
    %v2393 = vpack.c.b16 %v1537, %v1529
    %v2394 = vpack.c.b16 %v1546, %v1538
    %v2395 = vpack.c.b16 %v1547, %v1539
    %v2396 = vpack.c.b16 %v1548, %v1540
    %v2397 = vpack.c.b16 %v1549, %v1541
    %v2398 = vpack.c.b16 %v1550, %v1542
    %v2399 = vpack.c.b16 %v1551, %v1543
    %v2400 = vpack.c.b16 %v1552, %v1544
    %v2401 = vpack.c.b16 %v1553, %v1545
    %v2402 = vpack.c.b16 %v1562, %v1554
    %v2403 = vpack.c.b16 %v1563, %v1555
    %v2404 = vpack.c.b16 %v1564, %v1556
    %v2405 = vpack.c.b16 %v1565, %v1557
    %v2406 = vpack.c.b16 %v1566, %v1558
    %v2407 = vpack.c.b16 %v1567, %v1559
    %v2408 = vpack.c.b16 %v1568, %v1560
    %v2409 = vpack.c.b16 %v1569, %v1561
    %v2410 = vpack.c.b16 %v1578, %v1570
    %v2411 = vpack.c.b16 %v1579, %v1571
    %v2412 = vpack.c.b16 %v1580, %v1572
    %v2413 = vpack.c.b16 %v1581, %v1573
    %v2414 = vpack.c.b16 %v1582, %v1574
    %v2415 = vpack.c.b16 %v1583, %v1575
    %v2416 = vpack.c.b16 %v1584, %v1576
    %v2417 = vpack.c.b16 %v1585, %v1577
    %v2418 = vpack.c.b16 %v1594, %v1586
    %v2419 = vpack.c.b16 %v1595, %v1587
    %v2420 = vpack.c.b16 %v1596, %v1588
    %v2421 = vpack.c.b16 %v1597, %v1589
    %v2422 = vpack.c.b16 %v1598, %v1590
    %v2423 = vpack.c.b16 %v1599, %v1591
    %v2424 = vpack.c.b16 %v1600, %v1592
    %v2425 = vpack.c.b16 %v1601, %v1593
    %v2426 = vpack.c.b16 %v1610, %v1602
    %v2427 = vpack.c.b16 %v1611, %v1603
    %v2428 = vpack.c.b16 %v1612, %v1604
    %v2429 = vpack.c.b16 %v1613, %v1605
    %v2430 = vpack.c.b16 %v1614, %v1606
    %v2431 = vpack.c.b16 %v1615, %v1607
    %v2432 = vpack.c.b16 %v1616, %v1608
    %v2433 = vpack.c.b16 %v1617, %v1609
    %v2434 = vpack.c.b16 %v1626, %v1618
    %v2435 = vpack.c.b16 %v1627, %v1619
    %v2436 = vpack.c.b16 %v1628, %v1620
    %v2437 = vpack.c.b16 %v1629, %v1621
    %v2438 = vpack.c.b16 %v1630, %v1622
    %v2439 = vpack.c.b16 %v1631, %v1623
    %v2440 = vpack.c.b16 %v1632, %v1624
    %v2441 = vpack.c.b16 %v1633, %v1625
    %v2442 = vpack.c.b16 %v1642, %v1634
    %v2443 = vpack.c.b16 %v1643, %v1635
    %v2444 = vpack.c.b16 %v1644, %v1636
    %v2445 = vpack.c.b16 %v1645, %v1637
    %v2446 = vpack.c.b16 %v1646, %v1638
    %v2447 = vpack.c.b16 %v1647, %v1639
    %v2448 = vpack.c.b16 %v1648, %v1640
    %v2449 = vpack.c.b16 %v1649, %v1641
    %v2450 = vpack.c.b16 %v1658, %v1650
    %v2451 = vpack.c.b16 %v1659, %v1651
    %v2452 = vpack.c.b16 %v1660, %v1652
    %v2453 = vpack.c.b16 %v1661, %v1653
    %v2454 = vpack.c.b16 %v1662, %v1654
    %v2455 = vpack.c.b16 %v1663, %v1655
    %v2456 = vpack.c.b16 %v1664, %v1656
    %v2457 = vpack.c.b16 %v1665, %v1657
    %v2458 = vpack.c.b16 %v1674, %v1666
    %v2459 = vpack.c.b16 %v1675, %v1667
    %v2460 = vpack.c.b16 %v1676, %v1668
    %v2461 = vpack.c.b16 %v1677, %v1669
    %v2462 = vpack.c.b16 %v1678, %v1670
    %v2463 = vpack.c.b16 %v1679, %v1671
    %v2464 = vpack.c.b16 %v1680, %v1672
    %v2465 = vpack.c.b16 %v1681, %v1673
    %v2466 = vpack.c.b16 %v1690, %v1682
    %v2467 = vpack.c.b16 %v1691, %v1683
    %v2468 = vpack.c.b16 %v1692, %v1684
    %v2469 = vpack.c.b16 %v1693, %v1685
    %v2470 = vpack.c.b16 %v1694, %v1686
    %v2471 = vpack.c.b16 %v1695, %v1687
    %v2472 = vpack.c.b16 %v1696, %v1688
    %v2473 = vpack.c.b16 %v1697, %v1689
    %v2474 = vpack.c.b16 %v1706, %v1698
    %v2475 = vpack.c.b16 %v1707, %v1699
    %v2476 = vpack.c.b16 %v1708, %v1700
    %v2477 = vpack.c.b16 %v1709, %v1701
    %v2478 = vpack.c.b16 %v1710, %v1702
    %v2479 = vpack.c.b16 %v1711, %v1703
    %v2480 = vpack.c.b16 %v1712, %v1704
    %v2481 = vpack.c.b16 %v1713, %v1705
    %v2482 = vpack.c.b16 %v1722, %v1714
    %v2483 = vpack.c.b16 %v1723, %v1715
    %v2484 = vpack.c.b16 %v1724, %v1716
    %v2485 = vpack.c.b16 %v1725, %v1717
    %v2486 = vpack.c.b16 %v1726, %v1718
    %v2487 = vpack.c.b16 %v1727, %v1719
    %v2488 = vpack.c.b16 %v1728, %v1720
    %v2489 = vpack.c.b16 %v1729, %v1721
    %v2490 = vpack.c.b16 %v1738, %v1730
    %v2491 = vpack.c.b16 %v1739, %v1731
    %v2492 = vpack.c.b16 %v1740, %v1732
    %v2493 = vpack.c.b16 %v1741, %v1733
    %v2494 = vpack.c.b16 %v1742, %v1734
    %v2495 = vpack.c.b16 %v1743, %v1735
    %v2496 = vpack.c.b16 %v1744, %v1736
    %v2497 = vpack.c.b16 %v1745, %v1737
    %v2498 = vpack.c.b16 %v1754, %v1746
    %v2499 = vpack.c.b16 %v1755, %v1747
    %v2500 = vpack.c.b16 %v1756, %v1748
    %v2501 = vpack.c.b16 %v1757, %v1749
    %v2502 = vpack.c.b16 %v1758, %v1750
    %v2503 = vpack.c.b16 %v1759, %v1751
    %v2504 = vpack.c.b16 %v1760, %v1752
    %v2505 = vpack.c.b16 %v1761, %v1753
    %v2506 = vpack.c.b16 %v1770, %v1762
    %v2507 = vpack.c.b16 %v1771, %v1763
    %v2508 = vpack.c.b16 %v1772, %v1764
    %v2509 = vpack.c.b16 %v1773, %v1765
    %v2510 = vpack.c.b16 %v1774, %v1766
    %v2511 = vpack.c.b16 %v1775, %v1767
    %v2512 = vpack.c.b16 %v1776, %v1768
    %v2513 = vpack.c.b16 %v1777, %v1769
    %v2514 = vpack.c.b16 %v1786, %v1778
    %v2515 = vpack.c.b16 %v1787, %v1779
    %v2516 = vpack.c.b16 %v1788, %v1780
    %v2517 = vpack.c.b16 %v1789, %v1781
    %v2518 = vpack.c.b16 %v1790, %v1782
    %v2519 = vpack.c.b16 %v1791, %v1783
    %v2520 = vpack.c.b16 %v1792, %v1784
    %v2521 = vpack.c.b16 %v1793, %v1785
    %v2522 = vpack.c.b16 %v1802, %v1794
    %v2523 = vpack.c.b16 %v1803, %v1795
    %v2524 = vpack.c.b16 %v1804, %v1796
    %v2525 = vpack.c.b16 %v1805, %v1797
    %v2526 = vpack.c.b16 %v1806, %v1798
    %v2527 = vpack.c.b16 %v1807, %v1799
    %v2528 = vpack.c.b16 %v1808, %v1800
    %v2529 = vpack.c.b16 %v1809, %v1801
    %v2530 = vpack.c.b16 %v1818, %v1810
    %v2531 = vpack.c.b16 %v1819, %v1811
    %v2532 = vpack.c.b16 %v1820, %v1812
    %v2533 = vpack.c.b16 %v1821, %v1813
    %v2534 = vpack.c.b16 %v1822, %v1814
    %v2535 = vpack.c.b16 %v1823, %v1815
    %v2536 = vpack.c.b16 %v1824, %v1816
    %v2537 = vpack.c.b16 %v1825, %v1817
    %v2538 = vpack.c.b16 %v1834, %v1826
    %v2539 = vpack.c.b16 %v1835, %v1827
    %v2540 = vpack.c.b16 %v1836, %v1828
    %v2541 = vpack.c.b16 %v1837, %v1829
    %v2542 = vpack.c.b16 %v1838, %v1830
    %v2543 = vpack.c.b16 %v1839, %v1831
    %v2544 = vpack.c.b16 %v1840, %v1832
    %v2545 = vpack.c.b16 %v1841, %v1833
    %v2546 = vpack.c.b16 %v1850, %v1842
    %v2547 = vpack.c.b16 %v1851, %v1843
    %v2548 = vpack.c.b16 %v1852, %v1844
    %v2549 = vpack.c.b16 %v1853, %v1845
    %v2550 = vpack.c.b16 %v1854, %v1846
    %v2551 = vpack.c.b16 %v1855, %v1847
    %v2552 = vpack.c.b16 %v1856, %v1848
    %v2553 = vpack.c.b16 %v1857, %v1849
    %v2554 = vpack.c.b16 %v1866, %v1858
    %v2555 = vpack.c.b16 %v1867, %v1859
    %v2556 = vpack.c.b16 %v1868, %v1860
    %v2557 = vpack.c.b16 %v1869, %v1861
    %v2558 = vpack.c.b16 %v1870, %v1862
    %v2559 = vpack.c.b16 %v1871, %v1863
    %v2560 = vpack.c.b16 %v1872, %v1864
    %v2561 = vpack.c.b16 %v1873, %v1865
    %v2562 = vpack.c.b16 %v1882, %v1874
    %v2563 = vpack.c.b16 %v1883, %v1875
    %v2564 = vpack.c.b16 %v1884, %v1876
    %v2565 = vpack.c.b16 %v1885, %v1877
    %v2566 = vpack.c.b16 %v1886, %v1878
    %v2567 = vpack.c.b16 %v1887, %v1879
    %v2568 = vpack.c.b16 %v1888, %v1880
    %v2569 = vpack.c.b16 %v1889, %v1881
    %v2570 = vpack.c.b16 %v1898, %v1890
    %v2571 = vpack.c.b16 %v1899, %v1891
    %v2572 = vpack.c.b16 %v1900, %v1892
    %v2573 = vpack.c.b16 %v1901, %v1893
    %v2574 = vpack.c.b16 %v1902, %v1894
    %v2575 = vpack.c.b16 %v1903, %v1895
    %v2576 = vpack.c.b16 %v1904, %v1896
    %v2577 = vpack.c.b16 %v1905, %v1897
    %v2578 = vpack.c.b16 %v1914, %v1906
    %v2579 = vpack.c.b16 %v1915, %v1907
    %v2580 = vpack.c.b16 %v1916, %v1908
    %v2581 = vpack.c.b16 %v1917, %v1909
    %v2582 = vpack.c.b16 %v1918, %v1910
    %v2583 = vpack.c.b16 %v1919, %v1911
    %v2584 = vpack.c.b16 %v1920, %v1912
    %v2585 = vpack.c.b16 %v1921, %v1913
    %v2586 = vpack.c.b16 %v1930, %v1922
    %v2587 = vpack.c.b16 %v1931, %v1923
    %v2588 = vpack.c.b16 %v1932, %v1924
    %v2589 = vpack.c.b16 %v1933, %v1925
    %v2590 = vpack.c.b16 %v1934, %v1926
    %v2591 = vpack.c.b16 %v1935, %v1927
    %v2592 = vpack.c.b16 %v1936, %v1928
    %v2593 = vpack.c.b16 %v1937, %v1929
    %v2594 = vpack.c.b16 %v1946, %v1938
    %v2595 = vpack.c.b16 %v1947, %v1939
    %v2596 = vpack.c.b16 %v1948, %v1940
    %v2597 = vpack.c.b16 %v1949, %v1941
    %v2598 = vpack.c.b16 %v1950, %v1942
    %v2599 = vpack.c.b16 %v1951, %v1943
    %v2600 = vpack.c.b16 %v1952, %v1944
    %v2601 = vpack.c.b16 %v1953, %v1945
    %v2602 = vpack.c.b16 %v1962, %v1954
    %v2603 = vpack.c.b16 %v1963, %v1955
    %v2604 = vpack.c.b16 %v1964, %v1956
    %v2605 = vpack.c.b16 %v1965, %v1957
    %v2606 = vpack.c.b16 %v1966, %v1958
    %v2607 = vpack.c.b16 %v1967, %v1959
    %v2608 = vpack.c.b16 %v1968, %v1960
    %v2609 = vpack.c.b16 %v1969, %v1961
    %v2610 = vpack.c.b16 %v1978, %v1970
    %v2611 = vpack.c.b16 %v1979, %v1971
    %v2612 = vpack.c.b16 %v1980, %v1972
    %v2613 = vpack.c.b16 %v1981, %v1973
    %v2614 = vpack.c.b16 %v1982, %v1974
    %v2615 = vpack.c.b16 %v1983, %v1975
    %v2616 = vpack.c.b16 %v1984, %v1976
    %v2617 = vpack.c.b16 %v1985, %v1977
    %v2618 = vpack.c.b16 %v1994, %v1986
    %v2619 = vpack.c.b16 %v1995, %v1987
    %v2620 = vpack.c.b16 %v1996, %v1988
    %v2621 = vpack.c.b16 %v1997, %v1989
    %v2622 = vpack.c.b16 %v1998, %v1990
    %v2623 = vpack.c.b16 %v1999, %v1991
    %v2624 = vpack.c.b16 %v2000, %v1992
    %v2625 = vpack.c.b16 %v2001, %v1993
    %v2626 = vpack.c.b16 %v2010, %v2002
    %v2627 = vpack.c.b16 %v2011, %v2003
    %v2628 = vpack.c.b16 %v2012, %v2004
    %v2629 = vpack.c.b16 %v2013, %v2005
    %v2630 = vpack.c.b16 %v2014, %v2006
    %v2631 = vpack.c.b16 %v2015, %v2007
    %v2632 = vpack.c.b16 %v2016, %v2008
    %v2633 = vpack.c.b16 %v2017, %v2009
    %v2634 = vpack.c.b16 %v2026, %v2018
    %v2635 = vpack.c.b16 %v2027, %v2019
    %v2636 = vpack.c.b16 %v2028, %v2020
    %v2637 = vpack.c.b16 %v2029, %v2021
    %v2638 = vpack.c.b16 %v2030, %v2022
    %v2639 = vpack.c.b16 %v2031, %v2023
    %v2640 = vpack.c.b16 %v2032, %v2024
    %v2641 = vpack.c.b16 %v2033, %v2025
    %v2642 = vpack.c.b16 %v2042, %v2034
    %v2643 = vpack.c.b16 %v2043, %v2035
    %v2644 = vpack.c.b16 %v2044, %v2036
    %v2645 = vpack.c.b16 %v2045, %v2037
    %v2646 = vpack.c.b16 %v2046, %v2038
    %v2647 = vpack.c.b16 %v2047, %v2039
    %v2648 = vpack.c.b16 %v2048, %v2040
    %v2649 = vpack.c.b16 %v2049, %v2041
    %v2650 = vpack.c.b16 %v2058, %v2050
    %v2651 = vpack.c.b16 %v2059, %v2051
    %v2652 = vpack.c.b16 %v2060, %v2052
    %v2653 = vpack.c.b16 %v2061, %v2053
    %v2654 = vpack.c.b16 %v2062, %v2054
    %v2655 = vpack.c.b16 %v2063, %v2055
    %v2656 = vpack.c.b16 %v2064, %v2056
    %v2657 = vpack.c.b16 %v2065, %v2057
    %v2658 = vpack.c.b16 %v2074, %v2066
    %v2659 = vpack.c.b16 %v2075, %v2067
    %v2660 = vpack.c.b16 %v2076, %v2068
    %v2661 = vpack.c.b16 %v2077, %v2069
    %v2662 = vpack.c.b16 %v2078, %v2070
    %v2663 = vpack.c.b16 %v2079, %v2071
    %v2664 = vpack.c.b16 %v2080, %v2072
    %v2665 = vpack.c.b16 %v2081, %v2073
    %v2666 = vpack.c.b16 %v2090, %v2082
    %v2667 = vpack.c.b16 %v2091, %v2083
    %v2668 = vpack.c.b16 %v2092, %v2084
    %v2669 = vpack.c.b16 %v2093, %v2085
    %v2670 = vpack.c.b16 %v2094, %v2086
    %v2671 = vpack.c.b16 %v2095, %v2087
    %v2672 = vpack.c.b16 %v2096, %v2088
    %v2673 = vpack.c.b16 %v2097, %v2089
    %v2674 = vpack.c.b16 %v2106, %v2098
    %v2675 = vpack.c.b16 %v2107, %v2099
    %v2676 = vpack.c.b16 %v2108, %v2100
    %v2677 = vpack.c.b16 %v2109, %v2101
    %v2678 = vpack.c.b16 %v2110, %v2102
    %v2679 = vpack.c.b16 %v2111, %v2103
    %v2680 = vpack.c.b16 %v2112, %v2104
    %v2681 = vpack.c.b16 %v2113, %v2105
    %v2682 = vpack.c.b16 %v2122, %v2114
    %v2683 = vpack.c.b16 %v2123, %v2115
    %v2684 = vpack.c.b16 %v2124, %v2116
    %v2685 = vpack.c.b16 %v2125, %v2117
    %v2686 = vpack.c.b16 %v2126, %v2118
    %v2687 = vpack.c.b16 %v2127, %v2119
    %v2688 = vpack.c.b16 %v2128, %v2120
    %v2689 = vpack.c.b16 %v2129, %v2121
    %v2690 = vpack.c.b16 %v2138, %v2130
    %v2691 = vpack.c.b16 %v2139, %v2131
    %v2692 = vpack.c.b16 %v2140, %v2132
    %v2693 = vpack.c.b16 %v2141, %v2133
    %v2694 = vpack.c.b16 %v2142, %v2134
    %v2695 = vpack.c.b16 %v2143, %v2135
    %v2696 = vpack.c.b16 %v2144, %v2136
    %v2697 = vpack.c.b16 %v2145, %v2137
    %v2698 = vpack.c.b16 %v2154, %v2146
    %v2699 = vpack.c.b16 %v2155, %v2147
    %v2700 = vpack.c.b16 %v2156, %v2148
    %v2701 = vpack.c.b16 %v2157, %v2149
    %v2702 = vpack.c.b16 %v2158, %v2150
    %v2703 = vpack.c.b16 %v2159, %v2151
    %v2704 = vpack.c.b16 %v2160, %v2152
    %v2705 = vpack.c.b16 %v2161, %v2153
    %v2706 = vpack.c.b16 %v2170, %v2162
    %v2707 = vpack.c.b16 %v2171, %v2163
    %v2708 = vpack.c.b16 %v2172, %v2164
    %v2709 = vpack.c.b16 %v2173, %v2165
    %v2710 = vpack.c.b16 %v2174, %v2166
    %v2711 = vpack.c.b16 %v2175, %v2167
    %v2712 = vpack.c.b16 %v2176, %v2168
    %v2713 = vpack.c.b16 %v2177, %v2169
    %v2714 = vpack.c.b16 %v2186, %v2178
    %v2715 = vpack.c.b16 %v2187, %v2179
    %v2716 = vpack.c.b16 %v2188, %v2180
    %v2717 = vpack.c.b16 %v2189, %v2181
    %v2718 = vpack.c.b16 %v2190, %v2182
    %v2719 = vpack.c.b16 %v2191, %v2183
    %v2720 = vpack.c.b16 %v2192, %v2184
    %v2721 = vpack.c.b16 %v2193, %v2185
    %v2722 = vpack.c.b16 %v2202, %v2194
    %v2723 = vpack.c.b16 %v2203, %v2195
    %v2724 = vpack.c.b16 %v2204, %v2196
    %v2725 = vpack.c.b16 %v2205, %v2197
    %v2726 = vpack.c.b16 %v2206, %v2198
    %v2727 = vpack.c.b16 %v2207, %v2199
    %v2728 = vpack.c.b16 %v2208, %v2200
    %v2729 = vpack.c.b16 %v2209, %v2201
    %v2730 = vpack.c.b16 %v2218, %v2210
    %v2731 = vpack.c.b16 %v2219, %v2211
    %v2732 = vpack.c.b16 %v2220, %v2212
    %v2733 = vpack.c.b16 %v2221, %v2213
    %v2734 = vpack.c.b16 %v2222, %v2214
    %v2735 = vpack.c.b16 %v2223, %v2215
    %v2736 = vpack.c.b16 %v2224, %v2216
    %v2737 = vpack.c.b16 %v2225, %v2217
    %3250 = vmatpush.bf16.msra.mxu0 %v2282
    %3251 = vmatpush.bf16.msra.mxu0 %v2274
    %3252 = vmatpush.bf16.msra.mxu0 %v2266
    %3253 = vmatpush.bf16.msra.mxu0 %v2258
    %3254 = vmatpush.bf16.msra.mxu0 %v2250
    %3255 = vmatpush.bf16.msra.mxu0 %v2242
    %3256 = vmatpush.bf16.msra.mxu0 %v2234
    %3257 = vmatpush.bf16.msra.mxu0 %v2226
    %3258 = vmatmul.bf16.gmra.mxu0 %v674
    %v3259 = vpop.f32.mrf.mxu0
    %v3260 = vadd.f32 %v646, %v3259
    %v3261 = vpop.f32.mrf.mxu0
    %3262 = vdwg.mxu0
    %3263 = vmatpush.bf16.msra.mxu0 %v2346
    %3264 = vmatpush.bf16.msra.mxu0 %v2338
    %3265 = vmatpush.bf16.msra.mxu0 %v2330
    %3266 = vmatpush.bf16.msra.mxu0 %v2322
    %3267 = vmatpush.bf16.msra.mxu0 %v2314
    %3268 = vmatpush.bf16.msra.mxu0 %v2306
    %3269 = vmatpush.bf16.msra.mxu0 %v2298
    %3270 = vmatpush.bf16.msra.mxu0 %v2290
    %3271 = vmatmul.bf16.gmra.mxu0 %v675
    %v3272 = vpop.f32.mrf.mxu0
    %v3273 = vadd.f32 %v3260, %v3272
    %v3274 = vpop.f32.mrf.mxu0
    %3275 = vdwg.mxu0
    %3276 = vmatpush.bf16.msra.mxu0 %v2410
    %3277 = vmatpush.bf16.msra.mxu0 %v2402
    %3278 = vmatpush.bf16.msra.mxu0 %v2394
    %3279 = vmatpush.bf16.msra.mxu0 %v2386
    %3280 = vmatpush.bf16.msra.mxu0 %v2378
    %3281 = vmatpush.bf16.msra.mxu0 %v2370
    %3282 = vmatpush.bf16.msra.mxu0 %v2362
    %3283 = vmatpush.bf16.msra.mxu0 %v2354
    %3284 = vmatmul.bf16.gmra.mxu0 %v676
    %v3285 = vpop.f32.mrf.mxu0
    %v3286 = vadd.f32 %v3273, %v3285
    %v3287 = vpop.f32.mrf.mxu0
    %3288 = vdwg.mxu0
    %3289 = vmatpush.bf16.msra.mxu0 %v2474
    %3290 = vmatpush.bf16.msra.mxu0 %v2466
    %3291 = vmatpush.bf16.msra.mxu0 %v2458
    %3292 = vmatpush.bf16.msra.mxu0 %v2450
    %3293 = vmatpush.bf16.msra.mxu0 %v2442
    %3294 = vmatpush.bf16.msra.mxu0 %v2434
    %3295 = vmatpush.bf16.msra.mxu0 %v2426
    %3296 = vmatpush.bf16.msra.mxu0 %v2418
    %3297 = vmatmul.bf16.gmra.mxu0 %v677
    %v3298 = vpop.f32.mrf.mxu0
    %v3299 = vadd.f32 %v3286, %v3298
    %v3300 = vpop.f32.mrf.mxu0
    %3301 = vdwg.mxu0
    %3302 = vmatpush.bf16.msra.mxu0 %v2538
    %3303 = vmatpush.bf16.msra.mxu0 %v2530
    %3304 = vmatpush.bf16.msra.mxu0 %v2522
    %3305 = vmatpush.bf16.msra.mxu0 %v2514
    %3306 = vmatpush.bf16.msra.mxu0 %v2506
    %3307 = vmatpush.bf16.msra.mxu0 %v2498
    %3308 = vmatpush.bf16.msra.mxu0 %v2490
    %3309 = vmatpush.bf16.msra.mxu0 %v2482
    %3310 = vmatmul.bf16.gmra.mxu0 %v678
    %v3311 = vpop.f32.mrf.mxu0
    %v3312 = vadd.f32 %v3299, %v3311
    %v3313 = vpop.f32.mrf.mxu0
    %3314 = vdwg.mxu0
    %3315 = vmatpush.bf16.msra.mxu0 %v2602
    %3316 = vmatpush.bf16.msra.mxu0 %v2594
    %3317 = vmatpush.bf16.msra.mxu0 %v2586
    %3318 = vmatpush.bf16.msra.mxu0 %v2578
    %3319 = vmatpush.bf16.msra.mxu0 %v2570
    %3320 = vmatpush.bf16.msra.mxu0 %v2562
    %3321 = vmatpush.bf16.msra.mxu0 %v2554
    %3322 = vmatpush.bf16.msra.mxu0 %v2546
    %3323 = vmatmul.bf16.gmra.mxu0 %v679
    %v3324 = vpop.f32.mrf.mxu0
    %v3325 = vadd.f32 %v3312, %v3324
    %v3326 = vpop.f32.mrf.mxu0
    %3327 = vdwg.mxu0
    %3328 = vmatpush.bf16.msra.mxu0 %v2666
    %3329 = vmatpush.bf16.msra.mxu0 %v2658
    %3330 = vmatpush.bf16.msra.mxu0 %v2650
    %3331 = vmatpush.bf16.msra.mxu0 %v2642
    %3332 = vmatpush.bf16.msra.mxu0 %v2634
    %3333 = vmatpush.bf16.msra.mxu0 %v2626
    %3334 = vmatpush.bf16.msra.mxu0 %v2618
    %3335 = vmatpush.bf16.msra.mxu0 %v2610
    %3336 = vmatmul.bf16.gmra.mxu0 %v680
    %v3337 = vpop.f32.mrf.mxu0
    %v3338 = vadd.f32 %v3325, %v3337
    %v3339 = vpop.f32.mrf.mxu0
    %3340 = vdwg.mxu0
    %3341 = vmatpush.bf16.msra.mxu0 %v2730
    %3342 = vmatpush.bf16.msra.mxu0 %v2722
    %3343 = vmatpush.bf16.msra.mxu0 %v2714
    %3344 = vmatpush.bf16.msra.mxu0 %v2706
    %3345 = vmatpush.bf16.msra.mxu0 %v2698
    %3346 = vmatpush.bf16.msra.mxu0 %v2690
    %3347 = vmatpush.bf16.msra.mxu0 %v2682
    %3348 = vmatpush.bf16.msra.mxu0 %v2674
    %3349 = vmatmul.bf16.gmra.mxu0 %v681
    %v3350 = vpop.f32.mrf.mxu0
    %v3351 = vadd.f32 %v3338, %v3350
    %v3352 = vpop.f32.mrf.mxu0
    %3353 = vdwg.mxu0
    %3354 = vmatpush.bf16.msra.mxu0 %v2283
    %3355 = vmatpush.bf16.msra.mxu0 %v2275
    %3356 = vmatpush.bf16.msra.mxu0 %v2267
    %3357 = vmatpush.bf16.msra.mxu0 %v2259
    %3358 = vmatpush.bf16.msra.mxu0 %v2251
    %3359 = vmatpush.bf16.msra.mxu0 %v2243
    %3360 = vmatpush.bf16.msra.mxu0 %v2235
    %3361 = vmatpush.bf16.msra.mxu0 %v2227
    %3362 = vmatmul.bf16.gmra.mxu0 %v674
    %v3363 = vpop.f32.mrf.mxu0
    %v3364 = vadd.f32 %v647, %v3363
    %v3365 = vpop.f32.mrf.mxu0
    %3366 = vdwg.mxu0
    %3367 = vmatpush.bf16.msra.mxu0 %v2347
    %3368 = vmatpush.bf16.msra.mxu0 %v2339
    %3369 = vmatpush.bf16.msra.mxu0 %v2331
    %3370 = vmatpush.bf16.msra.mxu0 %v2323
    %3371 = vmatpush.bf16.msra.mxu0 %v2315
    %3372 = vmatpush.bf16.msra.mxu0 %v2307
    %3373 = vmatpush.bf16.msra.mxu0 %v2299
    %3374 = vmatpush.bf16.msra.mxu0 %v2291
    %3375 = vmatmul.bf16.gmra.mxu0 %v675
    %v3376 = vpop.f32.mrf.mxu0
    %v3377 = vadd.f32 %v3364, %v3376
    %v3378 = vpop.f32.mrf.mxu0
    %3379 = vdwg.mxu0
    %3380 = vmatpush.bf16.msra.mxu0 %v2411
    %3381 = vmatpush.bf16.msra.mxu0 %v2403
    %3382 = vmatpush.bf16.msra.mxu0 %v2395
    %3383 = vmatpush.bf16.msra.mxu0 %v2387
    %3384 = vmatpush.bf16.msra.mxu0 %v2379
    %3385 = vmatpush.bf16.msra.mxu0 %v2371
    %3386 = vmatpush.bf16.msra.mxu0 %v2363
    %3387 = vmatpush.bf16.msra.mxu0 %v2355
    %3388 = vmatmul.bf16.gmra.mxu0 %v676
    %v3389 = vpop.f32.mrf.mxu0
    %v3390 = vadd.f32 %v3377, %v3389
    %v3391 = vpop.f32.mrf.mxu0
    %3392 = vdwg.mxu0
    %3393 = vmatpush.bf16.msra.mxu0 %v2475
    %3394 = vmatpush.bf16.msra.mxu0 %v2467
    %3395 = vmatpush.bf16.msra.mxu0 %v2459
    %3396 = vmatpush.bf16.msra.mxu0 %v2451
    %3397 = vmatpush.bf16.msra.mxu0 %v2443
    %3398 = vmatpush.bf16.msra.mxu0 %v2435
    %3399 = vmatpush.bf16.msra.mxu0 %v2427
    %3400 = vmatpush.bf16.msra.mxu0 %v2419
    %3401 = vmatmul.bf16.gmra.mxu0 %v677
    %v3402 = vpop.f32.mrf.mxu0
    %v3403 = vadd.f32 %v3390, %v3402
    %v3404 = vpop.f32.mrf.mxu0
    %3405 = vdwg.mxu0
    %3406 = vmatpush.bf16.msra.mxu0 %v2539
    %3407 = vmatpush.bf16.msra.mxu0 %v2531
    %3408 = vmatpush.bf16.msra.mxu0 %v2523
    %3409 = vmatpush.bf16.msra.mxu0 %v2515
    %3410 = vmatpush.bf16.msra.mxu0 %v2507
    %3411 = vmatpush.bf16.msra.mxu0 %v2499
    %3412 = vmatpush.bf16.msra.mxu0 %v2491
    %3413 = vmatpush.bf16.msra.mxu0 %v2483
    %3414 = vmatmul.bf16.gmra.mxu0 %v678
    %v3415 = vpop.f32.mrf.mxu0
    %v3416 = vadd.f32 %v3403, %v3415
    %v3417 = vpop.f32.mrf.mxu0
    %3418 = vdwg.mxu0
    %3419 = vmatpush.bf16.msra.mxu0 %v2603
    %3420 = vmatpush.bf16.msra.mxu0 %v2595
    %3421 = vmatpush.bf16.msra.mxu0 %v2587
    %3422 = vmatpush.bf16.msra.mxu0 %v2579
    %3423 = vmatpush.bf16.msra.mxu0 %v2571
    %3424 = vmatpush.bf16.msra.mxu0 %v2563
    %3425 = vmatpush.bf16.msra.mxu0 %v2555
    %3426 = vmatpush.bf16.msra.mxu0 %v2547
    %3427 = vmatmul.bf16.gmra.mxu0 %v679
    %v3428 = vpop.f32.mrf.mxu0
    %v3429 = vadd.f32 %v3416, %v3428
    %v3430 = vpop.f32.mrf.mxu0
    %3431 = vdwg.mxu0
    %3432 = vmatpush.bf16.msra.mxu0 %v2667
    %3433 = vmatpush.bf16.msra.mxu0 %v2659
    %3434 = vmatpush.bf16.msra.mxu0 %v2651
    %3435 = vmatpush.bf16.msra.mxu0 %v2643
    %3436 = vmatpush.bf16.msra.mxu0 %v2635
    %3437 = vmatpush.bf16.msra.mxu0 %v2627
    %3438 = vmatpush.bf16.msra.mxu0 %v2619
    %3439 = vmatpush.bf16.msra.mxu0 %v2611
    %3440 = vmatmul.bf16.gmra.mxu0 %v680
    %v3441 = vpop.f32.mrf.mxu0
    %v3442 = vadd.f32 %v3429, %v3441
    %v3443 = vpop.f32.mrf.mxu0
    %3444 = vdwg.mxu0
    %3445 = vmatpush.bf16.msra.mxu0 %v2731
    %3446 = vmatpush.bf16.msra.mxu0 %v2723
    %3447 = vmatpush.bf16.msra.mxu0 %v2715
    %3448 = vmatpush.bf16.msra.mxu0 %v2707
    %3449 = vmatpush.bf16.msra.mxu0 %v2699
    %3450 = vmatpush.bf16.msra.mxu0 %v2691
    %3451 = vmatpush.bf16.msra.mxu0 %v2683
    %3452 = vmatpush.bf16.msra.mxu0 %v2675
    %3453 = vmatmul.bf16.gmra.mxu0 %v681
    %v3454 = vpop.f32.mrf.mxu0
    %v3455 = vadd.f32 %v3442, %v3454
    %v3456 = vpop.f32.mrf.mxu0
    %3457 = vdwg.mxu0
    %3458 = vmatpush.bf16.msra.mxu0 %v2284
    %3459 = vmatpush.bf16.msra.mxu0 %v2276
    %3460 = vmatpush.bf16.msra.mxu0 %v2268
    %3461 = vmatpush.bf16.msra.mxu0 %v2260
    %3462 = vmatpush.bf16.msra.mxu0 %v2252
    %3463 = vmatpush.bf16.msra.mxu0 %v2244
    %3464 = vmatpush.bf16.msra.mxu0 %v2236
    %3465 = vmatpush.bf16.msra.mxu0 %v2228
    %3466 = vmatmul.bf16.gmra.mxu0 %v674
    %v3467 = vpop.f32.mrf.mxu0
    %v3468 = vadd.f32 %v648, %v3467
    %v3469 = vpop.f32.mrf.mxu0
    %3470 = vdwg.mxu0
    %3471 = vmatpush.bf16.msra.mxu0 %v2348
    %3472 = vmatpush.bf16.msra.mxu0 %v2340
    %3473 = vmatpush.bf16.msra.mxu0 %v2332
    %3474 = vmatpush.bf16.msra.mxu0 %v2324
    %3475 = vmatpush.bf16.msra.mxu0 %v2316
    %3476 = vmatpush.bf16.msra.mxu0 %v2308
    %3477 = vmatpush.bf16.msra.mxu0 %v2300
    %3478 = vmatpush.bf16.msra.mxu0 %v2292
    %3479 = vmatmul.bf16.gmra.mxu0 %v675
    %v3480 = vpop.f32.mrf.mxu0
    %v3481 = vadd.f32 %v3468, %v3480
    %v3482 = vpop.f32.mrf.mxu0
    %3483 = vdwg.mxu0
    %3484 = vmatpush.bf16.msra.mxu0 %v2412
    %3485 = vmatpush.bf16.msra.mxu0 %v2404
    %3486 = vmatpush.bf16.msra.mxu0 %v2396
    %3487 = vmatpush.bf16.msra.mxu0 %v2388
    %3488 = vmatpush.bf16.msra.mxu0 %v2380
    %3489 = vmatpush.bf16.msra.mxu0 %v2372
    %3490 = vmatpush.bf16.msra.mxu0 %v2364
    %3491 = vmatpush.bf16.msra.mxu0 %v2356
    %3492 = vmatmul.bf16.gmra.mxu0 %v676
    %v3493 = vpop.f32.mrf.mxu0
    %v3494 = vadd.f32 %v3481, %v3493
    %v3495 = vpop.f32.mrf.mxu0
    %3496 = vdwg.mxu0
    %3497 = vmatpush.bf16.msra.mxu0 %v2476
    %3498 = vmatpush.bf16.msra.mxu0 %v2468
    %3499 = vmatpush.bf16.msra.mxu0 %v2460
    %3500 = vmatpush.bf16.msra.mxu0 %v2452
    %3501 = vmatpush.bf16.msra.mxu0 %v2444
    %3502 = vmatpush.bf16.msra.mxu0 %v2436
    %3503 = vmatpush.bf16.msra.mxu0 %v2428
    %3504 = vmatpush.bf16.msra.mxu0 %v2420
    %3505 = vmatmul.bf16.gmra.mxu0 %v677
    %v3506 = vpop.f32.mrf.mxu0
    %v3507 = vadd.f32 %v3494, %v3506
    %v3508 = vpop.f32.mrf.mxu0
    %3509 = vdwg.mxu0
    %3510 = vmatpush.bf16.msra.mxu0 %v2540
    %3511 = vmatpush.bf16.msra.mxu0 %v2532
    %3512 = vmatpush.bf16.msra.mxu0 %v2524
    %3513 = vmatpush.bf16.msra.mxu0 %v2516
    %3514 = vmatpush.bf16.msra.mxu0 %v2508
    %3515 = vmatpush.bf16.msra.mxu0 %v2500
    %3516 = vmatpush.bf16.msra.mxu0 %v2492
    %3517 = vmatpush.bf16.msra.mxu0 %v2484
    %3518 = vmatmul.bf16.gmra.mxu0 %v678
    %v3519 = vpop.f32.mrf.mxu0
    %v3520 = vadd.f32 %v3507, %v3519
    %v3521 = vpop.f32.mrf.mxu0
    %3522 = vdwg.mxu0
    %3523 = vmatpush.bf16.msra.mxu0 %v2604
    %3524 = vmatpush.bf16.msra.mxu0 %v2596
    %3525 = vmatpush.bf16.msra.mxu0 %v2588
    %3526 = vmatpush.bf16.msra.mxu0 %v2580
    %3527 = vmatpush.bf16.msra.mxu0 %v2572
    %3528 = vmatpush.bf16.msra.mxu0 %v2564
    %3529 = vmatpush.bf16.msra.mxu0 %v2556
    %3530 = vmatpush.bf16.msra.mxu0 %v2548
    %3531 = vmatmul.bf16.gmra.mxu0 %v679
    %v3532 = vpop.f32.mrf.mxu0
    %v3533 = vadd.f32 %v3520, %v3532
    %v3534 = vpop.f32.mrf.mxu0
    %3535 = vdwg.mxu0
    %3536 = vmatpush.bf16.msra.mxu0 %v2668
    %3537 = vmatpush.bf16.msra.mxu0 %v2660
    %3538 = vmatpush.bf16.msra.mxu0 %v2652
    %3539 = vmatpush.bf16.msra.mxu0 %v2644
    %3540 = vmatpush.bf16.msra.mxu0 %v2636
    %3541 = vmatpush.bf16.msra.mxu0 %v2628
    %3542 = vmatpush.bf16.msra.mxu0 %v2620
    %3543 = vmatpush.bf16.msra.mxu0 %v2612
    %3544 = vmatmul.bf16.gmra.mxu0 %v680
    %v3545 = vpop.f32.mrf.mxu0
    %v3546 = vadd.f32 %v3533, %v3545
    %v3547 = vpop.f32.mrf.mxu0
    %3548 = vdwg.mxu0
    %3549 = vmatpush.bf16.msra.mxu0 %v2732
    %3550 = vmatpush.bf16.msra.mxu0 %v2724
    %3551 = vmatpush.bf16.msra.mxu0 %v2716
    %3552 = vmatpush.bf16.msra.mxu0 %v2708
    %3553 = vmatpush.bf16.msra.mxu0 %v2700
    %3554 = vmatpush.bf16.msra.mxu0 %v2692
    %3555 = vmatpush.bf16.msra.mxu0 %v2684
    %3556 = vmatpush.bf16.msra.mxu0 %v2676
    %3557 = vmatmul.bf16.gmra.mxu0 %v681
    %v3558 = vpop.f32.mrf.mxu0
    %v3559 = vadd.f32 %v3546, %v3558
    %v3560 = vpop.f32.mrf.mxu0
    %3561 = vdwg.mxu0
    %3562 = vmatpush.bf16.msra.mxu0 %v2285
    %3563 = vmatpush.bf16.msra.mxu0 %v2277
    %3564 = vmatpush.bf16.msra.mxu0 %v2269
    %3565 = vmatpush.bf16.msra.mxu0 %v2261
    %3566 = vmatpush.bf16.msra.mxu0 %v2253
    %3567 = vmatpush.bf16.msra.mxu0 %v2245
    %3568 = vmatpush.bf16.msra.mxu0 %v2237
    %3569 = vmatpush.bf16.msra.mxu0 %v2229
    %3570 = vmatmul.bf16.gmra.mxu0 %v674
    %v3571 = vpop.f32.mrf.mxu0
    %v3572 = vadd.f32 %v649, %v3571
    %v3573 = vpop.f32.mrf.mxu0
    %3574 = vdwg.mxu0
    %3575 = vmatpush.bf16.msra.mxu0 %v2349
    %3576 = vmatpush.bf16.msra.mxu0 %v2341
    %3577 = vmatpush.bf16.msra.mxu0 %v2333
    %3578 = vmatpush.bf16.msra.mxu0 %v2325
    %3579 = vmatpush.bf16.msra.mxu0 %v2317
    %3580 = vmatpush.bf16.msra.mxu0 %v2309
    %3581 = vmatpush.bf16.msra.mxu0 %v2301
    %3582 = vmatpush.bf16.msra.mxu0 %v2293
    %3583 = vmatmul.bf16.gmra.mxu0 %v675
    %v3584 = vpop.f32.mrf.mxu0
    %v3585 = vadd.f32 %v3572, %v3584
    %v3586 = vpop.f32.mrf.mxu0
    %3587 = vdwg.mxu0
    %3588 = vmatpush.bf16.msra.mxu0 %v2413
    %3589 = vmatpush.bf16.msra.mxu0 %v2405
    %3590 = vmatpush.bf16.msra.mxu0 %v2397
    %3591 = vmatpush.bf16.msra.mxu0 %v2389
    %3592 = vmatpush.bf16.msra.mxu0 %v2381
    %3593 = vmatpush.bf16.msra.mxu0 %v2373
    %3594 = vmatpush.bf16.msra.mxu0 %v2365
    %3595 = vmatpush.bf16.msra.mxu0 %v2357
    %3596 = vmatmul.bf16.gmra.mxu0 %v676
    %v3597 = vpop.f32.mrf.mxu0
    %v3598 = vadd.f32 %v3585, %v3597
    %v3599 = vpop.f32.mrf.mxu0
    %3600 = vdwg.mxu0
    %3601 = vmatpush.bf16.msra.mxu0 %v2477
    %3602 = vmatpush.bf16.msra.mxu0 %v2469
    %3603 = vmatpush.bf16.msra.mxu0 %v2461
    %3604 = vmatpush.bf16.msra.mxu0 %v2453
    %3605 = vmatpush.bf16.msra.mxu0 %v2445
    %3606 = vmatpush.bf16.msra.mxu0 %v2437
    %3607 = vmatpush.bf16.msra.mxu0 %v2429
    %3608 = vmatpush.bf16.msra.mxu0 %v2421
    %3609 = vmatmul.bf16.gmra.mxu0 %v677
    %v3610 = vpop.f32.mrf.mxu0
    %v3611 = vadd.f32 %v3598, %v3610
    %v3612 = vpop.f32.mrf.mxu0
    %3613 = vdwg.mxu0
    %3614 = vmatpush.bf16.msra.mxu0 %v2541
    %3615 = vmatpush.bf16.msra.mxu0 %v2533
    %3616 = vmatpush.bf16.msra.mxu0 %v2525
    %3617 = vmatpush.bf16.msra.mxu0 %v2517
    %3618 = vmatpush.bf16.msra.mxu0 %v2509
    %3619 = vmatpush.bf16.msra.mxu0 %v2501
    %3620 = vmatpush.bf16.msra.mxu0 %v2493
    %3621 = vmatpush.bf16.msra.mxu0 %v2485
    %3622 = vmatmul.bf16.gmra.mxu0 %v678
    %v3623 = vpop.f32.mrf.mxu0
    %v3624 = vadd.f32 %v3611, %v3623
    %v3625 = vpop.f32.mrf.mxu0
    %3626 = vdwg.mxu0
    %3627 = vmatpush.bf16.msra.mxu0 %v2605
    %3628 = vmatpush.bf16.msra.mxu0 %v2597
    %3629 = vmatpush.bf16.msra.mxu0 %v2589
    %3630 = vmatpush.bf16.msra.mxu0 %v2581
    %3631 = vmatpush.bf16.msra.mxu0 %v2573
    %3632 = vmatpush.bf16.msra.mxu0 %v2565
    %3633 = vmatpush.bf16.msra.mxu0 %v2557
    %3634 = vmatpush.bf16.msra.mxu0 %v2549
    %3635 = vmatmul.bf16.gmra.mxu0 %v679
    %v3636 = vpop.f32.mrf.mxu0
    %v3637 = vadd.f32 %v3624, %v3636
    %v3638 = vpop.f32.mrf.mxu0
    %3639 = vdwg.mxu0
    %3640 = vmatpush.bf16.msra.mxu0 %v2669
    %3641 = vmatpush.bf16.msra.mxu0 %v2661
    %3642 = vmatpush.bf16.msra.mxu0 %v2653
    %3643 = vmatpush.bf16.msra.mxu0 %v2645
    %3644 = vmatpush.bf16.msra.mxu0 %v2637
    %3645 = vmatpush.bf16.msra.mxu0 %v2629
    %3646 = vmatpush.bf16.msra.mxu0 %v2621
    %3647 = vmatpush.bf16.msra.mxu0 %v2613
    %3648 = vmatmul.bf16.gmra.mxu0 %v680
    %v3649 = vpop.f32.mrf.mxu0
    %v3650 = vadd.f32 %v3637, %v3649
    %v3651 = vpop.f32.mrf.mxu0
    %3652 = vdwg.mxu0
    %3653 = vmatpush.bf16.msra.mxu0 %v2733
    %3654 = vmatpush.bf16.msra.mxu0 %v2725
    %3655 = vmatpush.bf16.msra.mxu0 %v2717
    %3656 = vmatpush.bf16.msra.mxu0 %v2709
    %3657 = vmatpush.bf16.msra.mxu0 %v2701
    %3658 = vmatpush.bf16.msra.mxu0 %v2693
    %3659 = vmatpush.bf16.msra.mxu0 %v2685
    %3660 = vmatpush.bf16.msra.mxu0 %v2677
    %3661 = vmatmul.bf16.gmra.mxu0 %v681
    %v3662 = vpop.f32.mrf.mxu0
    %v3663 = vadd.f32 %v3650, %v3662
    %v3664 = vpop.f32.mrf.mxu0
    %3665 = vdwg.mxu0
    %3666 = vmatpush.bf16.msra.mxu0 %v2286
    %3667 = vmatpush.bf16.msra.mxu0 %v2278
    %3668 = vmatpush.bf16.msra.mxu0 %v2270
    %3669 = vmatpush.bf16.msra.mxu0 %v2262
    %3670 = vmatpush.bf16.msra.mxu0 %v2254
    %3671 = vmatpush.bf16.msra.mxu0 %v2246
    %3672 = vmatpush.bf16.msra.mxu0 %v2238
    %3673 = vmatpush.bf16.msra.mxu0 %v2230
    %3674 = vmatmul.bf16.gmra.mxu0 %v674
    %v3675 = vpop.f32.mrf.mxu0
    %v3676 = vadd.f32 %v650, %v3675
    %v3677 = vpop.f32.mrf.mxu0
    %3678 = vdwg.mxu0
    %3679 = vmatpush.bf16.msra.mxu0 %v2350
    %3680 = vmatpush.bf16.msra.mxu0 %v2342
    %3681 = vmatpush.bf16.msra.mxu0 %v2334
    %3682 = vmatpush.bf16.msra.mxu0 %v2326
    %3683 = vmatpush.bf16.msra.mxu0 %v2318
    %3684 = vmatpush.bf16.msra.mxu0 %v2310
    %3685 = vmatpush.bf16.msra.mxu0 %v2302
    %3686 = vmatpush.bf16.msra.mxu0 %v2294
    %3687 = vmatmul.bf16.gmra.mxu0 %v675
    %v3688 = vpop.f32.mrf.mxu0
    %v3689 = vadd.f32 %v3676, %v3688
    %v3690 = vpop.f32.mrf.mxu0
    %3691 = vdwg.mxu0
    %3692 = vmatpush.bf16.msra.mxu0 %v2414
    %3693 = vmatpush.bf16.msra.mxu0 %v2406
    %3694 = vmatpush.bf16.msra.mxu0 %v2398
    %3695 = vmatpush.bf16.msra.mxu0 %v2390
    %3696 = vmatpush.bf16.msra.mxu0 %v2382
    %3697 = vmatpush.bf16.msra.mxu0 %v2374
    %3698 = vmatpush.bf16.msra.mxu0 %v2366
    %3699 = vmatpush.bf16.msra.mxu0 %v2358
    %3700 = vmatmul.bf16.gmra.mxu0 %v676
    %v3701 = vpop.f32.mrf.mxu0
    %v3702 = vadd.f32 %v3689, %v3701
    %v3703 = vpop.f32.mrf.mxu0
    %3704 = vdwg.mxu0
    %3705 = vmatpush.bf16.msra.mxu0 %v2478
    %3706 = vmatpush.bf16.msra.mxu0 %v2470
    %3707 = vmatpush.bf16.msra.mxu0 %v2462
    %3708 = vmatpush.bf16.msra.mxu0 %v2454
    %3709 = vmatpush.bf16.msra.mxu0 %v2446
    %3710 = vmatpush.bf16.msra.mxu0 %v2438
    %3711 = vmatpush.bf16.msra.mxu0 %v2430
    %3712 = vmatpush.bf16.msra.mxu0 %v2422
    %3713 = vmatmul.bf16.gmra.mxu0 %v677
    %v3714 = vpop.f32.mrf.mxu0
    %v3715 = vadd.f32 %v3702, %v3714
    %v3716 = vpop.f32.mrf.mxu0
    %3717 = vdwg.mxu0
    %3718 = vmatpush.bf16.msra.mxu0 %v2542
    %3719 = vmatpush.bf16.msra.mxu0 %v2534
    %3720 = vmatpush.bf16.msra.mxu0 %v2526
    %3721 = vmatpush.bf16.msra.mxu0 %v2518
    %3722 = vmatpush.bf16.msra.mxu0 %v2510
    %3723 = vmatpush.bf16.msra.mxu0 %v2502
    %3724 = vmatpush.bf16.msra.mxu0 %v2494
    %3725 = vmatpush.bf16.msra.mxu0 %v2486
    %3726 = vmatmul.bf16.gmra.mxu0 %v678
    %v3727 = vpop.f32.mrf.mxu0
    %v3728 = vadd.f32 %v3715, %v3727
    %v3729 = vpop.f32.mrf.mxu0
    %3730 = vdwg.mxu0
    %3731 = vmatpush.bf16.msra.mxu0 %v2606
    %3732 = vmatpush.bf16.msra.mxu0 %v2598
    %3733 = vmatpush.bf16.msra.mxu0 %v2590
    %3734 = vmatpush.bf16.msra.mxu0 %v2582
    %3735 = vmatpush.bf16.msra.mxu0 %v2574
    %3736 = vmatpush.bf16.msra.mxu0 %v2566
    %3737 = vmatpush.bf16.msra.mxu0 %v2558
    %3738 = vmatpush.bf16.msra.mxu0 %v2550
    %3739 = vmatmul.bf16.gmra.mxu0 %v679
    %v3740 = vpop.f32.mrf.mxu0
    %v3741 = vadd.f32 %v3728, %v3740
    %v3742 = vpop.f32.mrf.mxu0
    %3743 = vdwg.mxu0
    %3744 = vmatpush.bf16.msra.mxu0 %v2670
    %3745 = vmatpush.bf16.msra.mxu0 %v2662
    %3746 = vmatpush.bf16.msra.mxu0 %v2654
    %3747 = vmatpush.bf16.msra.mxu0 %v2646
    %3748 = vmatpush.bf16.msra.mxu0 %v2638
    %3749 = vmatpush.bf16.msra.mxu0 %v2630
    %3750 = vmatpush.bf16.msra.mxu0 %v2622
    %3751 = vmatpush.bf16.msra.mxu0 %v2614
    %3752 = vmatmul.bf16.gmra.mxu0 %v680
    %v3753 = vpop.f32.mrf.mxu0
    %v3754 = vadd.f32 %v3741, %v3753
    %v3755 = vpop.f32.mrf.mxu0
    %3756 = vdwg.mxu0
    %3757 = vmatpush.bf16.msra.mxu0 %v2734
    %3758 = vmatpush.bf16.msra.mxu0 %v2726
    %3759 = vmatpush.bf16.msra.mxu0 %v2718
    %3760 = vmatpush.bf16.msra.mxu0 %v2710
    %3761 = vmatpush.bf16.msra.mxu0 %v2702
    %3762 = vmatpush.bf16.msra.mxu0 %v2694
    %3763 = vmatpush.bf16.msra.mxu0 %v2686
    %3764 = vmatpush.bf16.msra.mxu0 %v2678
    %3765 = vmatmul.bf16.gmra.mxu0 %v681
    %v3766 = vpop.f32.mrf.mxu0
    %v3767 = vadd.f32 %v3754, %v3766
    %v3768 = vpop.f32.mrf.mxu0
    %3769 = vdwg.mxu0
    %3770 = vmatpush.bf16.msra.mxu0 %v2287
    %3771 = vmatpush.bf16.msra.mxu0 %v2279
    %3772 = vmatpush.bf16.msra.mxu0 %v2271
    %3773 = vmatpush.bf16.msra.mxu0 %v2263
    %3774 = vmatpush.bf16.msra.mxu0 %v2255
    %3775 = vmatpush.bf16.msra.mxu0 %v2247
    %3776 = vmatpush.bf16.msra.mxu0 %v2239
    %3777 = vmatpush.bf16.msra.mxu0 %v2231
    %3778 = vmatmul.bf16.gmra.mxu0 %v674
    %v3779 = vpop.f32.mrf.mxu0
    %v3780 = vadd.f32 %v651, %v3779
    %v3781 = vpop.f32.mrf.mxu0
    %3782 = vdwg.mxu0
    %3783 = vmatpush.bf16.msra.mxu0 %v2351
    %3784 = vmatpush.bf16.msra.mxu0 %v2343
    %3785 = vmatpush.bf16.msra.mxu0 %v2335
    %3786 = vmatpush.bf16.msra.mxu0 %v2327
    %3787 = vmatpush.bf16.msra.mxu0 %v2319
    %3788 = vmatpush.bf16.msra.mxu0 %v2311
    %3789 = vmatpush.bf16.msra.mxu0 %v2303
    %3790 = vmatpush.bf16.msra.mxu0 %v2295
    %3791 = vmatmul.bf16.gmra.mxu0 %v675
    %v3792 = vpop.f32.mrf.mxu0
    %v3793 = vadd.f32 %v3780, %v3792
    %v3794 = vpop.f32.mrf.mxu0
    %3795 = vdwg.mxu0
    %3796 = vmatpush.bf16.msra.mxu0 %v2415
    %3797 = vmatpush.bf16.msra.mxu0 %v2407
    %3798 = vmatpush.bf16.msra.mxu0 %v2399
    %3799 = vmatpush.bf16.msra.mxu0 %v2391
    %3800 = vmatpush.bf16.msra.mxu0 %v2383
    %3801 = vmatpush.bf16.msra.mxu0 %v2375
    %3802 = vmatpush.bf16.msra.mxu0 %v2367
    %3803 = vmatpush.bf16.msra.mxu0 %v2359
    %3804 = vmatmul.bf16.gmra.mxu0 %v676
    %v3805 = vpop.f32.mrf.mxu0
    %v3806 = vadd.f32 %v3793, %v3805
    %v3807 = vpop.f32.mrf.mxu0
    %3808 = vdwg.mxu0
    %3809 = vmatpush.bf16.msra.mxu0 %v2479
    %3810 = vmatpush.bf16.msra.mxu0 %v2471
    %3811 = vmatpush.bf16.msra.mxu0 %v2463
    %3812 = vmatpush.bf16.msra.mxu0 %v2455
    %3813 = vmatpush.bf16.msra.mxu0 %v2447
    %3814 = vmatpush.bf16.msra.mxu0 %v2439
    %3815 = vmatpush.bf16.msra.mxu0 %v2431
    %3816 = vmatpush.bf16.msra.mxu0 %v2423
    %3817 = vmatmul.bf16.gmra.mxu0 %v677
    %v3818 = vpop.f32.mrf.mxu0
    %v3819 = vadd.f32 %v3806, %v3818
    %v3820 = vpop.f32.mrf.mxu0
    %3821 = vdwg.mxu0
    %3822 = vmatpush.bf16.msra.mxu0 %v2543
    %3823 = vmatpush.bf16.msra.mxu0 %v2535
    %3824 = vmatpush.bf16.msra.mxu0 %v2527
    %3825 = vmatpush.bf16.msra.mxu0 %v2519
    %3826 = vmatpush.bf16.msra.mxu0 %v2511
    %3827 = vmatpush.bf16.msra.mxu0 %v2503
    %3828 = vmatpush.bf16.msra.mxu0 %v2495
    %3829 = vmatpush.bf16.msra.mxu0 %v2487
    %3830 = vmatmul.bf16.gmra.mxu0 %v678
    %v3831 = vpop.f32.mrf.mxu0
    %v3832 = vadd.f32 %v3819, %v3831
    %v3833 = vpop.f32.mrf.mxu0
    %3834 = vdwg.mxu0
    %3835 = vmatpush.bf16.msra.mxu0 %v2607
    %3836 = vmatpush.bf16.msra.mxu0 %v2599
    %3837 = vmatpush.bf16.msra.mxu0 %v2591
    %3838 = vmatpush.bf16.msra.mxu0 %v2583
    %3839 = vmatpush.bf16.msra.mxu0 %v2575
    %3840 = vmatpush.bf16.msra.mxu0 %v2567
    %3841 = vmatpush.bf16.msra.mxu0 %v2559
    %3842 = vmatpush.bf16.msra.mxu0 %v2551
    %3843 = vmatmul.bf16.gmra.mxu0 %v679
    %v3844 = vpop.f32.mrf.mxu0
    %v3845 = vadd.f32 %v3832, %v3844
    %v3846 = vpop.f32.mrf.mxu0
    %3847 = vdwg.mxu0
    %3848 = vmatpush.bf16.msra.mxu0 %v2671
    %3849 = vmatpush.bf16.msra.mxu0 %v2663
    %3850 = vmatpush.bf16.msra.mxu0 %v2655
    %3851 = vmatpush.bf16.msra.mxu0 %v2647
    %3852 = vmatpush.bf16.msra.mxu0 %v2639
    %3853 = vmatpush.bf16.msra.mxu0 %v2631
    %3854 = vmatpush.bf16.msra.mxu0 %v2623
    %3855 = vmatpush.bf16.msra.mxu0 %v2615
    %3856 = vmatmul.bf16.gmra.mxu0 %v680
    %v3857 = vpop.f32.mrf.mxu0
    %v3858 = vadd.f32 %v3845, %v3857
    %v3859 = vpop.f32.mrf.mxu0
    %3860 = vdwg.mxu0
    %3861 = vmatpush.bf16.msra.mxu0 %v2735
    %3862 = vmatpush.bf16.msra.mxu0 %v2727
    %3863 = vmatpush.bf16.msra.mxu0 %v2719
    %3864 = vmatpush.bf16.msra.mxu0 %v2711
    %3865 = vmatpush.bf16.msra.mxu0 %v2703
    %3866 = vmatpush.bf16.msra.mxu0 %v2695
    %3867 = vmatpush.bf16.msra.mxu0 %v2687
    %3868 = vmatpush.bf16.msra.mxu0 %v2679
    %3869 = vmatmul.bf16.gmra.mxu0 %v681
    %v3870 = vpop.f32.mrf.mxu0
    %v3871 = vadd.f32 %v3858, %v3870
    %v3872 = vpop.f32.mrf.mxu0
    %3873 = vdwg.mxu0
    %3874 = vmatpush.bf16.msra.mxu0 %v2288
    %3875 = vmatpush.bf16.msra.mxu0 %v2280
    %3876 = vmatpush.bf16.msra.mxu0 %v2272
    %3877 = vmatpush.bf16.msra.mxu0 %v2264
    %3878 = vmatpush.bf16.msra.mxu0 %v2256
    %3879 = vmatpush.bf16.msra.mxu0 %v2248
    %3880 = vmatpush.bf16.msra.mxu0 %v2240
    %3881 = vmatpush.bf16.msra.mxu0 %v2232
    %3882 = vmatmul.bf16.gmra.mxu0 %v674
    %v3883 = vpop.f32.mrf.mxu0
    %v3884 = vadd.f32 %v652, %v3883
    %v3885 = vpop.f32.mrf.mxu0
    %3886 = vdwg.mxu0
    %3887 = vmatpush.bf16.msra.mxu0 %v2352
    %3888 = vmatpush.bf16.msra.mxu0 %v2344
    %3889 = vmatpush.bf16.msra.mxu0 %v2336
    %3890 = vmatpush.bf16.msra.mxu0 %v2328
    %3891 = vmatpush.bf16.msra.mxu0 %v2320
    %3892 = vmatpush.bf16.msra.mxu0 %v2312
    %3893 = vmatpush.bf16.msra.mxu0 %v2304
    %3894 = vmatpush.bf16.msra.mxu0 %v2296
    %3895 = vmatmul.bf16.gmra.mxu0 %v675
    %v3896 = vpop.f32.mrf.mxu0
    %v3897 = vadd.f32 %v3884, %v3896
    %v3898 = vpop.f32.mrf.mxu0
    %3899 = vdwg.mxu0
    %3900 = vmatpush.bf16.msra.mxu0 %v2416
    %3901 = vmatpush.bf16.msra.mxu0 %v2408
    %3902 = vmatpush.bf16.msra.mxu0 %v2400
    %3903 = vmatpush.bf16.msra.mxu0 %v2392
    %3904 = vmatpush.bf16.msra.mxu0 %v2384
    %3905 = vmatpush.bf16.msra.mxu0 %v2376
    %3906 = vmatpush.bf16.msra.mxu0 %v2368
    %3907 = vmatpush.bf16.msra.mxu0 %v2360
    %3908 = vmatmul.bf16.gmra.mxu0 %v676
    %v3909 = vpop.f32.mrf.mxu0
    %v3910 = vadd.f32 %v3897, %v3909
    %v3911 = vpop.f32.mrf.mxu0
    %3912 = vdwg.mxu0
    %3913 = vmatpush.bf16.msra.mxu0 %v2480
    %3914 = vmatpush.bf16.msra.mxu0 %v2472
    %3915 = vmatpush.bf16.msra.mxu0 %v2464
    %3916 = vmatpush.bf16.msra.mxu0 %v2456
    %3917 = vmatpush.bf16.msra.mxu0 %v2448
    %3918 = vmatpush.bf16.msra.mxu0 %v2440
    %3919 = vmatpush.bf16.msra.mxu0 %v2432
    %3920 = vmatpush.bf16.msra.mxu0 %v2424
    %3921 = vmatmul.bf16.gmra.mxu0 %v677
    %v3922 = vpop.f32.mrf.mxu0
    %v3923 = vadd.f32 %v3910, %v3922
    %v3924 = vpop.f32.mrf.mxu0
    %3925 = vdwg.mxu0
    %3926 = vmatpush.bf16.msra.mxu0 %v2544
    %3927 = vmatpush.bf16.msra.mxu0 %v2536
    %3928 = vmatpush.bf16.msra.mxu0 %v2528
    %3929 = vmatpush.bf16.msra.mxu0 %v2520
    %3930 = vmatpush.bf16.msra.mxu0 %v2512
    %3931 = vmatpush.bf16.msra.mxu0 %v2504
    %3932 = vmatpush.bf16.msra.mxu0 %v2496
    %3933 = vmatpush.bf16.msra.mxu0 %v2488
    %3934 = vmatmul.bf16.gmra.mxu0 %v678
    %v3935 = vpop.f32.mrf.mxu0
    %v3936 = vadd.f32 %v3923, %v3935
    %v3937 = vpop.f32.mrf.mxu0
    %3938 = vdwg.mxu0
    %3939 = vmatpush.bf16.msra.mxu0 %v2608
    %3940 = vmatpush.bf16.msra.mxu0 %v2600
    %3941 = vmatpush.bf16.msra.mxu0 %v2592
    %3942 = vmatpush.bf16.msra.mxu0 %v2584
    %3943 = vmatpush.bf16.msra.mxu0 %v2576
    %3944 = vmatpush.bf16.msra.mxu0 %v2568
    %3945 = vmatpush.bf16.msra.mxu0 %v2560
    %3946 = vmatpush.bf16.msra.mxu0 %v2552
    %3947 = vmatmul.bf16.gmra.mxu0 %v679
    %v3948 = vpop.f32.mrf.mxu0
    %v3949 = vadd.f32 %v3936, %v3948
    %v3950 = vpop.f32.mrf.mxu0
    %3951 = vdwg.mxu0
    %3952 = vmatpush.bf16.msra.mxu0 %v2672
    %3953 = vmatpush.bf16.msra.mxu0 %v2664
    %3954 = vmatpush.bf16.msra.mxu0 %v2656
    %3955 = vmatpush.bf16.msra.mxu0 %v2648
    %3956 = vmatpush.bf16.msra.mxu0 %v2640
    %3957 = vmatpush.bf16.msra.mxu0 %v2632
    %3958 = vmatpush.bf16.msra.mxu0 %v2624
    %3959 = vmatpush.bf16.msra.mxu0 %v2616
    %3960 = vmatmul.bf16.gmra.mxu0 %v680
    %v3961 = vpop.f32.mrf.mxu0
    %v3962 = vadd.f32 %v3949, %v3961
    %v3963 = vpop.f32.mrf.mxu0
    %3964 = vdwg.mxu0
    %3965 = vmatpush.bf16.msra.mxu0 %v2736
    %3966 = vmatpush.bf16.msra.mxu0 %v2728
    %3967 = vmatpush.bf16.msra.mxu0 %v2720
    %3968 = vmatpush.bf16.msra.mxu0 %v2712
    %3969 = vmatpush.bf16.msra.mxu0 %v2704
    %3970 = vmatpush.bf16.msra.mxu0 %v2696
    %3971 = vmatpush.bf16.msra.mxu0 %v2688
    %3972 = vmatpush.bf16.msra.mxu0 %v2680
    %3973 = vmatmul.bf16.gmra.mxu0 %v681
    %v3974 = vpop.f32.mrf.mxu0
    %v3975 = vadd.f32 %v3962, %v3974
    %v3976 = vpop.f32.mrf.mxu0
    %3977 = vdwg.mxu0
    %3978 = vmatpush.bf16.msra.mxu0 %v2289
    %3979 = vmatpush.bf16.msra.mxu0 %v2281
    %3980 = vmatpush.bf16.msra.mxu0 %v2273
    %3981 = vmatpush.bf16.msra.mxu0 %v2265
    %3982 = vmatpush.bf16.msra.mxu0 %v2257
    %3983 = vmatpush.bf16.msra.mxu0 %v2249
    %3984 = vmatpush.bf16.msra.mxu0 %v2241
    %3985 = vmatpush.bf16.msra.mxu0 %v2233
    %3986 = vmatmul.bf16.gmra.mxu0 %v674
    %v3987 = vpop.f32.mrf.mxu0
    %v3988 = vadd.f32 %v653, %v3987
    %v3989 = vpop.f32.mrf.mxu0
    %3990 = vdwg.mxu0
    %3991 = vmatpush.bf16.msra.mxu0 %v2353
    %3992 = vmatpush.bf16.msra.mxu0 %v2345
    %3993 = vmatpush.bf16.msra.mxu0 %v2337
    %3994 = vmatpush.bf16.msra.mxu0 %v2329
    %3995 = vmatpush.bf16.msra.mxu0 %v2321
    %3996 = vmatpush.bf16.msra.mxu0 %v2313
    %3997 = vmatpush.bf16.msra.mxu0 %v2305
    %3998 = vmatpush.bf16.msra.mxu0 %v2297
    %3999 = vmatmul.bf16.gmra.mxu0 %v675
    %v4000 = vpop.f32.mrf.mxu0
    %v4001 = vadd.f32 %v3988, %v4000
    %v4002 = vpop.f32.mrf.mxu0
    %4003 = vdwg.mxu0
    %4004 = vmatpush.bf16.msra.mxu0 %v2417
    %4005 = vmatpush.bf16.msra.mxu0 %v2409
    %4006 = vmatpush.bf16.msra.mxu0 %v2401
    %4007 = vmatpush.bf16.msra.mxu0 %v2393
    %4008 = vmatpush.bf16.msra.mxu0 %v2385
    %4009 = vmatpush.bf16.msra.mxu0 %v2377
    %4010 = vmatpush.bf16.msra.mxu0 %v2369
    %4011 = vmatpush.bf16.msra.mxu0 %v2361
    %4012 = vmatmul.bf16.gmra.mxu0 %v676
    %v4013 = vpop.f32.mrf.mxu0
    %v4014 = vadd.f32 %v4001, %v4013
    %v4015 = vpop.f32.mrf.mxu0
    %4016 = vdwg.mxu0
    %4017 = vmatpush.bf16.msra.mxu0 %v2481
    %4018 = vmatpush.bf16.msra.mxu0 %v2473
    %4019 = vmatpush.bf16.msra.mxu0 %v2465
    %4020 = vmatpush.bf16.msra.mxu0 %v2457
    %4021 = vmatpush.bf16.msra.mxu0 %v2449
    %4022 = vmatpush.bf16.msra.mxu0 %v2441
    %4023 = vmatpush.bf16.msra.mxu0 %v2433
    %4024 = vmatpush.bf16.msra.mxu0 %v2425
    %4025 = vmatmul.bf16.gmra.mxu0 %v677
    %v4026 = vpop.f32.mrf.mxu0
    %v4027 = vadd.f32 %v4014, %v4026
    %v4028 = vpop.f32.mrf.mxu0
    %4029 = vdwg.mxu0
    %4030 = vmatpush.bf16.msra.mxu0 %v2545
    %4031 = vmatpush.bf16.msra.mxu0 %v2537
    %4032 = vmatpush.bf16.msra.mxu0 %v2529
    %4033 = vmatpush.bf16.msra.mxu0 %v2521
    %4034 = vmatpush.bf16.msra.mxu0 %v2513
    %4035 = vmatpush.bf16.msra.mxu0 %v2505
    %4036 = vmatpush.bf16.msra.mxu0 %v2497
    %4037 = vmatpush.bf16.msra.mxu0 %v2489
    %4038 = vmatmul.bf16.gmra.mxu0 %v678
    %v4039 = vpop.f32.mrf.mxu0
    %v4040 = vadd.f32 %v4027, %v4039
    %v4041 = vpop.f32.mrf.mxu0
    %4042 = vdwg.mxu0
    %4043 = vmatpush.bf16.msra.mxu0 %v2609
    %4044 = vmatpush.bf16.msra.mxu0 %v2601
    %4045 = vmatpush.bf16.msra.mxu0 %v2593
    %4046 = vmatpush.bf16.msra.mxu0 %v2585
    %4047 = vmatpush.bf16.msra.mxu0 %v2577
    %4048 = vmatpush.bf16.msra.mxu0 %v2569
    %4049 = vmatpush.bf16.msra.mxu0 %v2561
    %4050 = vmatpush.bf16.msra.mxu0 %v2553
    %4051 = vmatmul.bf16.gmra.mxu0 %v679
    %v4052 = vpop.f32.mrf.mxu0
    %v4053 = vadd.f32 %v4040, %v4052
    %v4054 = vpop.f32.mrf.mxu0
    %4055 = vdwg.mxu0
    %4056 = vmatpush.bf16.msra.mxu0 %v2673
    %4057 = vmatpush.bf16.msra.mxu0 %v2665
    %4058 = vmatpush.bf16.msra.mxu0 %v2657
    %4059 = vmatpush.bf16.msra.mxu0 %v2649
    %4060 = vmatpush.bf16.msra.mxu0 %v2641
    %4061 = vmatpush.bf16.msra.mxu0 %v2633
    %4062 = vmatpush.bf16.msra.mxu0 %v2625
    %4063 = vmatpush.bf16.msra.mxu0 %v2617
    %4064 = vmatmul.bf16.gmra.mxu0 %v680
    %v4065 = vpop.f32.mrf.mxu0
    %v4066 = vadd.f32 %v4053, %v4065
    %v4067 = vpop.f32.mrf.mxu0
    %4068 = vdwg.mxu0
    %4069 = vmatpush.bf16.msra.mxu0 %v2737
    %4070 = vmatpush.bf16.msra.mxu0 %v2729
    %4071 = vmatpush.bf16.msra.mxu0 %v2721
    %4072 = vmatpush.bf16.msra.mxu0 %v2713
    %4073 = vmatpush.bf16.msra.mxu0 %v2705
    %4074 = vmatpush.bf16.msra.mxu0 %v2697
    %4075 = vmatpush.bf16.msra.mxu0 %v2689
    %4076 = vmatpush.bf16.msra.mxu0 %v2681
    %4077 = vmatmul.bf16.gmra.mxu0 %v681
    %v4078 = vpop.f32.mrf.mxu0
    %v4079 = vadd.f32 %v4066, %v4078
    %v4080 = vpop.f32.mrf.mxu0
    %4081 = vdwg.mxu0
    %v4082 = vmax.f32 %v3351, 0.0
    %v4083 = vmax.f32 %v3455, 0.0
    %v4084 = vmax.f32 %v3559, 0.0
    %v4085 = vmax.f32 %v3663, 0.0
    %v4086 = vmax.f32 %v3767, 0.0
    %v4087 = vmax.f32 %v3871, 0.0
    %v4088 = vmax.f32 %v3975, 0.0
    %v4089 = vmax.f32 %v4079, 0.0
    %v4090 = vpack.c.bf16 %v4082, %v4082
    %v4091 = vpack.c.bf16 %v4083, %v4083
    %v4092 = vpack.c.bf16 %v4084, %v4084
    %v4093 = vpack.c.bf16 %v4085, %v4085
    %v4094 = vpack.c.bf16 %v4086, %v4086
    %v4095 = vpack.c.bf16 %v4087, %v4087
    %v4096 = vpack.c.bf16 %v4088, %v4088
    %v4097 = vpack.c.bf16 %v4089, %v4089
    %v4098 = vld [vmem:[#allocation8] sm:$0xf]
    %v4099 = vld [vmem:[#allocation8 + $0x4] sm:$0xf]
    %v4100 = vld [vmem:[#allocation8 + $0x8] sm:$0xf]
    %v4101 = vld [vmem:[#allocation8 + $0xc] sm:$0xf]
    %v4102 = vld [vmem:[#allocation8 + $0x10] sm:$0xf]
    %v4103 = vld [vmem:[#allocation8 + $0x14] sm:$0xf]
    %v4104 = vld [vmem:[#allocation8 + $0x18] sm:$0xf]
    %v4105 = vld [vmem:[#allocation8 + $0x1c] sm:$0xf]
    %v4106 = vld [vmem:[#allocation8 + $0x20] sm:$0xf]
    %v4107 = vld [vmem:[#allocation8 + $0x24] sm:$0xf]
    %v4108 = vld [vmem:[#allocation8 + $0x28] sm:$0xf]
    %v4109 = vld [vmem:[#allocation8 + $0x2c] sm:$0xf]
    %v4110 = vld [vmem:[#allocation8 + $0x30] sm:$0xf]
    %v4111 = vld [vmem:[#allocation8 + $0x34] sm:$0xf]
    %v4112 = vld [vmem:[#allocation8 + $0x38] sm:$0xf]
    %v4113 = vld [vmem:[#allocation8 + $0x3c] sm:$0xf]
    %v4114 = vld [vmem:[#allocation8 + $0x40] sm:$0xf]
    %v4115 = vld [vmem:[#allocation8 + $0x44] sm:$0xf]
    %v4116 = vld [vmem:[#allocation8 + $0x48] sm:$0xf]
    %v4117 = vld [vmem:[#allocation8 + $0x4c] sm:$0xf]
    %v4118 = vld [vmem:[#allocation8 + $0x50] sm:$0xf]
    %v4119 = vld [vmem:[#allocation8 + $0x54] sm:$0xf]
    %v4120 = vld [vmem:[#allocation8 + $0x58] sm:$0xf]
    %v4121 = vld [vmem:[#allocation8 + $0x5c] sm:$0xf]
    %v4122 = vld [vmem:[#allocation8 + $0x60] sm:$0xf]
    %v4123 = vld [vmem:[#allocation8 + $0x64] sm:$0xf]
    %v4124 = vld [vmem:[#allocation8 + $0x68] sm:$0xf]
    %v4125 = vld [vmem:[#allocation8 + $0x6c] sm:$0xf]
    %v4126 = vld [vmem:[#allocation8 + $0x70] sm:$0xf]
    %v4127 = vld [vmem:[#allocation8 + $0x74] sm:$0xf]
    %v4128 = vld [vmem:[#allocation8 + $0x78] sm:$0xf]
    %v4129 = vld [vmem:[#allocation8 + $0x7c] sm:$0xf]
    %v4130 = vld [vmem:[#allocation8 + $0x80] sm:$0xf]
    %v4131 = vld [vmem:[#allocation8 + $0x84] sm:$0xf]
    %v4132 = vld [vmem:[#allocation8 + $0x88] sm:$0xf]
    %v4133 = vld [vmem:[#allocation8 + $0x8c] sm:$0xf]
    %v4134 = vld [vmem:[#allocation8 + $0x90] sm:$0xf]
    %v4135 = vld [vmem:[#allocation8 + $0x94] sm:$0xf]
    %v4136 = vld [vmem:[#allocation8 + $0x98] sm:$0xf]
    %v4137 = vld [vmem:[#allocation8 + $0x9c] sm:$0xf]
    %v4138 = vld [vmem:[#allocation8 + $0xa0] sm:$0xf]
    %v4139 = vld [vmem:[#allocation8 + $0xa4] sm:$0xf]
    %v4140 = vld [vmem:[#allocation8 + $0xa8] sm:$0xf]
    %v4141 = vld [vmem:[#allocation8 + $0xac] sm:$0xf]
    %v4142 = vld [vmem:[#allocation8 + $0xb0] sm:$0xf]
    %v4143 = vld [vmem:[#allocation8 + $0xb4] sm:$0xf]
    %v4144 = vld [vmem:[#allocation8 + $0xb8] sm:$0xf]
    %v4145 = vld [vmem:[#allocation8 + $0xbc] sm:$0xf]
    %v4146 = vld [vmem:[#allocation8 + $0xc0] sm:$0xf]
    %v4147 = vld [vmem:[#allocation8 + $0xc4] sm:$0xf]
    %v4148 = vld [vmem:[#allocation8 + $0xc8] sm:$0xf]
    %v4149 = vld [vmem:[#allocation8 + $0xcc] sm:$0xf]
    %v4150 = vld [vmem:[#allocation8 + $0xd0] sm:$0xf]
    %v4151 = vld [vmem:[#allocation8 + $0xd4] sm:$0xf]
    %v4152 = vld [vmem:[#allocation8 + $0xd8] sm:$0xf]
    %v4153 = vld [vmem:[#allocation8 + $0xdc] sm:$0xf]
    %v4154 = vld [vmem:[#allocation8 + $0xe0] sm:$0xf]
    %v4155 = vld [vmem:[#allocation8 + $0xe4] sm:$0xf]
    %v4156 = vld [vmem:[#allocation8 + $0xe8] sm:$0xf]
    %v4157 = vld [vmem:[#allocation8 + $0xec] sm:$0xf]
    %v4158 = vld [vmem:[#allocation8 + $0xf0] sm:$0xf]
    %v4159 = vld [vmem:[#allocation8 + $0xf4] sm:$0xf]
    %v4160 = vld [vmem:[#allocation8 + $0xf8] sm:$0xf]
    %v4161 = vld [vmem:[#allocation8 + $0xfc] sm:$0xf]
    %v4162 = vld [vmem:[#allocation8 + $0x100] sm:$0xf]
    %v4163 = vld [vmem:[#allocation8 + $0x104] sm:$0xf]
    %v4164 = vld [vmem:[#allocation8 + $0x108] sm:$0xf]
    %v4165 = vld [vmem:[#allocation8 + $0x10c] sm:$0xf]
    %v4166 = vld [vmem:[#allocation8 + $0x110] sm:$0xf]
    %v4167 = vld [vmem:[#allocation8 + $0x114] sm:$0xf]
    %v4168 = vld [vmem:[#allocation8 + $0x118] sm:$0xf]
    %v4169 = vld [vmem:[#allocation8 + $0x11c] sm:$0xf]
    %v4170 = vld [vmem:[#allocation8 + $0x120] sm:$0xf]
    %v4171 = vld [vmem:[#allocation8 + $0x124] sm:$0xf]
    %v4172 = vld [vmem:[#allocation8 + $0x128] sm:$0xf]
    %v4173 = vld [vmem:[#allocation8 + $0x12c] sm:$0xf]
    %v4174 = vld [vmem:[#allocation8 + $0x130] sm:$0xf]
    %v4175 = vld [vmem:[#allocation8 + $0x134] sm:$0xf]
    %v4176 = vld [vmem:[#allocation8 + $0x138] sm:$0xf]
    %v4177 = vld [vmem:[#allocation8 + $0x13c] sm:$0xf]
    %v4178 = vld [vmem:[#allocation8 + $0x140] sm:$0xf]
    %v4179 = vld [vmem:[#allocation8 + $0x144] sm:$0xf]
    %v4180 = vld [vmem:[#allocation8 + $0x148] sm:$0xf]
    %v4181 = vld [vmem:[#allocation8 + $0x14c] sm:$0xf]
    %v4182 = vld [vmem:[#allocation8 + $0x150] sm:$0xf]
    %v4183 = vld [vmem:[#allocation8 + $0x154] sm:$0xf]
    %v4184 = vld [vmem:[#allocation8 + $0x158] sm:$0xf]
    %v4185 = vld [vmem:[#allocation8 + $0x15c] sm:$0xf]
    %v4186 = vld [vmem:[#allocation8 + $0x160] sm:$0xf]
    %v4187 = vld [vmem:[#allocation8 + $0x164] sm:$0xf]
    %v4188 = vld [vmem:[#allocation8 + $0x168] sm:$0xf]
    %v4189 = vld [vmem:[#allocation8 + $0x16c] sm:$0xf]
    %v4190 = vld [vmem:[#allocation8 + $0x170] sm:$0xf]
    %v4191 = vld [vmem:[#allocation8 + $0x174] sm:$0xf]
    %v4192 = vld [vmem:[#allocation8 + $0x178] sm:$0xf]
    %v4193 = vld [vmem:[#allocation8 + $0x17c] sm:$0xf]
    %v4194 = vld [vmem:[#allocation8 + $0x180] sm:$0xf]
    %v4195 = vld [vmem:[#allocation8 + $0x184] sm:$0xf]
    %v4196 = vld [vmem:[#allocation8 + $0x188] sm:$0xf]
    %v4197 = vld [vmem:[#allocation8 + $0x18c] sm:$0xf]
    %v4198 = vld [vmem:[#allocation8 + $0x190] sm:$0xf]
    %v4199 = vld [vmem:[#allocation8 + $0x194] sm:$0xf]
    %v4200 = vld [vmem:[#allocation8 + $0x198] sm:$0xf]
    %v4201 = vld [vmem:[#allocation8 + $0x19c] sm:$0xf]
    %v4202 = vld [vmem:[#allocation8 + $0x1a0] sm:$0xf]
    %v4203 = vld [vmem:[#allocation8 + $0x1a4] sm:$0xf]
    %v4204 = vld [vmem:[#allocation8 + $0x1a8] sm:$0xf]
    %v4205 = vld [vmem:[#allocation8 + $0x1ac] sm:$0xf]
    %v4206 = vld [vmem:[#allocation8 + $0x1b0] sm:$0xf]
    %v4207 = vld [vmem:[#allocation8 + $0x1b4] sm:$0xf]
    %v4208 = vld [vmem:[#allocation8 + $0x1b8] sm:$0xf]
    %v4209 = vld [vmem:[#allocation8 + $0x1bc] sm:$0xf]
    %v4210 = vld [vmem:[#allocation8 + $0x1c0] sm:$0xf]
    %v4211 = vld [vmem:[#allocation8 + $0x1c4] sm:$0xf]
    %v4212 = vld [vmem:[#allocation8 + $0x1c8] sm:$0xf]
    %v4213 = vld [vmem:[#allocation8 + $0x1cc] sm:$0xf]
    %v4214 = vld [vmem:[#allocation8 + $0x1d0] sm:$0xf]
    %v4215 = vld [vmem:[#allocation8 + $0x1d4] sm:$0xf]
    %v4216 = vld [vmem:[#allocation8 + $0x1d8] sm:$0xf]
    %v4217 = vld [vmem:[#allocation8 + $0x1dc] sm:$0xf]
    %v4218 = vld [vmem:[#allocation8 + $0x1e0] sm:$0xf]
    %v4219 = vld [vmem:[#allocation8 + $0x1e4] sm:$0xf]
    %v4220 = vld [vmem:[#allocation8 + $0x1e8] sm:$0xf]
    %v4221 = vld [vmem:[#allocation8 + $0x1ec] sm:$0xf]
    %v4222 = vld [vmem:[#allocation8 + $0x1f0] sm:$0xf]
    %v4223 = vld [vmem:[#allocation8 + $0x1f4] sm:$0xf]
    %v4224 = vld [vmem:[#allocation8 + $0x1f8] sm:$0xf]
    %v4225 = vld [vmem:[#allocation8 + $0x1fc] sm:$0xf]
    %v4226 = vld [vmem:[#allocation10] sm:$0x1]
    %v4228 = vperm.slane %v4226, 0
    %v4358 = vunpack.c.l.b16 %v4098
    %v4359 = vunpack.c.l.b16 %v4099
    %v4360 = vunpack.c.l.b16 %v4100
    %v4361 = vunpack.c.l.b16 %v4101
    %v4362 = vunpack.c.l.b16 %v4102
    %v4363 = vunpack.c.l.b16 %v4103
    %v4364 = vunpack.c.l.b16 %v4104
    %v4365 = vunpack.c.l.b16 %v4105
    %v4366 = vunpack.c.l.b16 %v4106
    %v4367 = vunpack.c.l.b16 %v4107
    %v4368 = vunpack.c.l.b16 %v4108
    %v4369 = vunpack.c.l.b16 %v4109
    %v4370 = vunpack.c.l.b16 %v4110
    %v4371 = vunpack.c.l.b16 %v4111
    %v4372 = vunpack.c.l.b16 %v4112
    %v4373 = vunpack.c.l.b16 %v4113
    %v4374 = vunpack.c.l.b16 %v4114
    %v4375 = vunpack.c.l.b16 %v4115
    %v4376 = vunpack.c.l.b16 %v4116
    %v4377 = vunpack.c.l.b16 %v4117
    %v4378 = vunpack.c.l.b16 %v4118
    %v4379 = vunpack.c.l.b16 %v4119
    %v4380 = vunpack.c.l.b16 %v4120
    %v4381 = vunpack.c.l.b16 %v4121
    %v4382 = vunpack.c.l.b16 %v4122
    %v4383 = vunpack.c.l.b16 %v4123
    %v4384 = vunpack.c.l.b16 %v4124
    %v4385 = vunpack.c.l.b16 %v4125
    %v4386 = vunpack.c.l.b16 %v4126
    %v4387 = vunpack.c.l.b16 %v4127
    %v4388 = vunpack.c.l.b16 %v4128
    %v4389 = vunpack.c.l.b16 %v4129
    %v4390 = vunpack.c.l.b16 %v4130
    %v4391 = vunpack.c.l.b16 %v4131
    %v4392 = vunpack.c.l.b16 %v4132
    %v4393 = vunpack.c.l.b16 %v4133
    %v4394 = vunpack.c.l.b16 %v4134
    %v4395 = vunpack.c.l.b16 %v4135
    %v4396 = vunpack.c.l.b16 %v4136
    %v4397 = vunpack.c.l.b16 %v4137
    %v4398 = vunpack.c.l.b16 %v4138
    %v4399 = vunpack.c.l.b16 %v4139
    %v4400 = vunpack.c.l.b16 %v4140
    %v4401 = vunpack.c.l.b16 %v4141
    %v4402 = vunpack.c.l.b16 %v4142
    %v4403 = vunpack.c.l.b16 %v4143
    %v4404 = vunpack.c.l.b16 %v4144
    %v4405 = vunpack.c.l.b16 %v4145
    %v4406 = vunpack.c.l.b16 %v4146
    %v4407 = vunpack.c.l.b16 %v4147
    %v4408 = vunpack.c.l.b16 %v4148
    %v4409 = vunpack.c.l.b16 %v4149
    %v4410 = vunpack.c.l.b16 %v4150
    %v4411 = vunpack.c.l.b16 %v4151
    %v4412 = vunpack.c.l.b16 %v4152
    %v4413 = vunpack.c.l.b16 %v4153
    %v4414 = vunpack.c.l.b16 %v4154
    %v4415 = vunpack.c.l.b16 %v4155
    %v4416 = vunpack.c.l.b16 %v4156
    %v4417 = vunpack.c.l.b16 %v4157
    %v4418 = vunpack.c.l.b16 %v4158
    %v4419 = vunpack.c.l.b16 %v4159
    %v4420 = vunpack.c.l.b16 %v4160
    %v4421 = vunpack.c.l.b16 %v4161
    %v4422 = vunpack.c.l.b16 %v4162
    %v4423 = vunpack.c.l.b16 %v4163
    %v4424 = vunpack.c.l.b16 %v4164
    %v4425 = vunpack.c.l.b16 %v4165
    %v4426 = vunpack.c.l.b16 %v4166
    %v4427 = vunpack.c.l.b16 %v4167
    %v4428 = vunpack.c.l.b16 %v4168
    %v4429 = vunpack.c.l.b16 %v4169
    %v4430 = vunpack.c.l.b16 %v4170
    %v4431 = vunpack.c.l.b16 %v4171
    %v4432 = vunpack.c.l.b16 %v4172
    %v4433 = vunpack.c.l.b16 %v4173
    %v4434 = vunpack.c.l.b16 %v4174
    %v4435 = vunpack.c.l.b16 %v4175
    %v4436 = vunpack.c.l.b16 %v4176
    %v4437 = vunpack.c.l.b16 %v4177
    %v4438 = vunpack.c.l.b16 %v4178
    %v4439 = vunpack.c.l.b16 %v4179
    %v4440 = vunpack.c.l.b16 %v4180
    %v4441 = vunpack.c.l.b16 %v4181
    %v4442 = vunpack.c.l.b16 %v4182
    %v4443 = vunpack.c.l.b16 %v4183
    %v4444 = vunpack.c.l.b16 %v4184
    %v4445 = vunpack.c.l.b16 %v4185
    %v4446 = vunpack.c.l.b16 %v4186
    %v4447 = vunpack.c.l.b16 %v4187
    %v4448 = vunpack.c.l.b16 %v4188
    %v4449 = vunpack.c.l.b16 %v4189
    %v4450 = vunpack.c.l.b16 %v4190
    %v4451 = vunpack.c.l.b16 %v4191
    %v4452 = vunpack.c.l.b16 %v4192
    %v4453 = vunpack.c.l.b16 %v4193
    %v4454 = vunpack.c.l.b16 %v4194
    %v4455 = vunpack.c.l.b16 %v4195
    %v4456 = vunpack.c.l.b16 %v4196
    %v4457 = vunpack.c.l.b16 %v4197
    %v4458 = vunpack.c.l.b16 %v4198
    %v4459 = vunpack.c.l.b16 %v4199
    %v4460 = vunpack.c.l.b16 %v4200
    %v4461 = vunpack.c.l.b16 %v4201
    %v4462 = vunpack.c.l.b16 %v4202
    %v4463 = vunpack.c.l.b16 %v4203
    %v4464 = vunpack.c.l.b16 %v4204
    %v4465 = vunpack.c.l.b16 %v4205
    %v4466 = vunpack.c.l.b16 %v4206
    %v4467 = vunpack.c.l.b16 %v4207
    %v4468 = vunpack.c.l.b16 %v4208
    %v4469 = vunpack.c.l.b16 %v4209
    %v4470 = vunpack.c.l.b16 %v4210
    %v4471 = vunpack.c.l.b16 %v4211
    %v4472 = vunpack.c.l.b16 %v4212
    %v4473 = vunpack.c.l.b16 %v4213
    %v4474 = vunpack.c.l.b16 %v4214
    %v4475 = vunpack.c.l.b16 %v4215
    %v4476 = vunpack.c.l.b16 %v4216
    %v4477 = vunpack.c.l.b16 %v4217
    %v4478 = vunpack.c.l.b16 %v4218
    %v4479 = vunpack.c.l.b16 %v4219
    %v4480 = vunpack.c.l.b16 %v4220
    %v4481 = vunpack.c.l.b16 %v4221
    %v4482 = vunpack.c.l.b16 %v4222
    %v4483 = vunpack.c.l.b16 %v4223
    %v4484 = vunpack.c.l.b16 %v4224
    %v4485 = vunpack.c.l.b16 %v4225
    %v4486 = vpack.c.b16 %v4359, %v4358
    %v4487 = vpack.c.b16 %v4361, %v4360
    %v4488 = vpack.c.b16 %v4363, %v4362
    %v4489 = vpack.c.b16 %v4365, %v4364
    %v4490 = vpack.c.b16 %v4367, %v4366
    %v4491 = vpack.c.b16 %v4369, %v4368
    %v4492 = vpack.c.b16 %v4371, %v4370
    %v4493 = vpack.c.b16 %v4373, %v4372
    %v4494 = vpack.c.b16 %v4375, %v4374
    %v4495 = vpack.c.b16 %v4377, %v4376
    %v4496 = vpack.c.b16 %v4379, %v4378
    %v4497 = vpack.c.b16 %v4381, %v4380
    %v4498 = vpack.c.b16 %v4383, %v4382
    %v4499 = vpack.c.b16 %v4385, %v4384
    %v4500 = vpack.c.b16 %v4387, %v4386
    %v4501 = vpack.c.b16 %v4389, %v4388
    %v4502 = vpack.c.b16 %v4391, %v4390
    %v4503 = vpack.c.b16 %v4393, %v4392
    %v4504 = vpack.c.b16 %v4395, %v4394
    %v4505 = vpack.c.b16 %v4397, %v4396
    %v4506 = vpack.c.b16 %v4399, %v4398
    %v4507 = vpack.c.b16 %v4401, %v4400
    %v4508 = vpack.c.b16 %v4403, %v4402
    %v4509 = vpack.c.b16 %v4405, %v4404
    %v4510 = vpack.c.b16 %v4407, %v4406
    %v4511 = vpack.c.b16 %v4409, %v4408
    %v4512 = vpack.c.b16 %v4411, %v4410
    %v4513 = vpack.c.b16 %v4413, %v4412
    %v4514 = vpack.c.b16 %v4415, %v4414
    %v4515 = vpack.c.b16 %v4417, %v4416
    %v4516 = vpack.c.b16 %v4419, %v4418
    %v4517 = vpack.c.b16 %v4421, %v4420
    %v4518 = vpack.c.b16 %v4423, %v4422
    %v4519 = vpack.c.b16 %v4425, %v4424
    %v4520 = vpack.c.b16 %v4427, %v4426
    %v4521 = vpack.c.b16 %v4429, %v4428
    %v4522 = vpack.c.b16 %v4431, %v4430
    %v4523 = vpack.c.b16 %v4433, %v4432
    %v4524 = vpack.c.b16 %v4435, %v4434
    %v4525 = vpack.c.b16 %v4437, %v4436
    %v4526 = vpack.c.b16 %v4439, %v4438
    %v4527 = vpack.c.b16 %v4441, %v4440
    %v4528 = vpack.c.b16 %v4443, %v4442
    %v4529 = vpack.c.b16 %v4445, %v4444
    %v4530 = vpack.c.b16 %v4447, %v4446
    %v4531 = vpack.c.b16 %v4449, %v4448
    %v4532 = vpack.c.b16 %v4451, %v4450
    %v4533 = vpack.c.b16 %v4453, %v4452
    %v4534 = vpack.c.b16 %v4455, %v4454
    %v4535 = vpack.c.b16 %v4457, %v4456
    %v4536 = vpack.c.b16 %v4459, %v4458
    %v4537 = vpack.c.b16 %v4461, %v4460
    %v4538 = vpack.c.b16 %v4463, %v4462
    %v4539 = vpack.c.b16 %v4465, %v4464
    %v4540 = vpack.c.b16 %v4467, %v4466
    %v4541 = vpack.c.b16 %v4469, %v4468
    %v4542 = vpack.c.b16 %v4471, %v4470
    %v4543 = vpack.c.b16 %v4473, %v4472
    %v4544 = vpack.c.b16 %v4475, %v4474
    %v4545 = vpack.c.b16 %v4477, %v4476
    %v4546 = vpack.c.b16 %v4479, %v4478
    %v4547 = vpack.c.b16 %v4481, %v4480
    %v4548 = vpack.c.b16 %v4483, %v4482
    %v4549 = vpack.c.b16 %v4485, %v4484
    %4614 = vmatpush.bf16.msra.mxu0 %v4493
    %4615 = vmatpush.bf16.msra.mxu0 %v4492
    %4616 = vmatpush.bf16.msra.mxu0 %v4491
    %4617 = vmatpush.bf16.msra.mxu0 %v4490
    %4618 = vmatpush.bf16.msra.mxu0 %v4489
    %4619 = vmatpush.bf16.msra.mxu0 %v4488
    %4620 = vmatpush.bf16.msra.mxu0 %v4487
    %4621 = vmatpush.bf16.msra.mxu0 %v4486
    %4622 = vmatmul.bf16.gmra.mxu0 %v4090
    %v4623 = vpop.f32.mrf.mxu0
    %v4624 = vadd.f32 %v4228, %v4623
    %v4625 = vpop.f32.mrf.mxu0
    %4626 = vdwg.mxu0
    %4627 = vmatpush.bf16.msra.mxu0 %v4501
    %4628 = vmatpush.bf16.msra.mxu0 %v4500
    %4629 = vmatpush.bf16.msra.mxu0 %v4499
    %4630 = vmatpush.bf16.msra.mxu0 %v4498
    %4631 = vmatpush.bf16.msra.mxu0 %v4497
    %4632 = vmatpush.bf16.msra.mxu0 %v4496
    %4633 = vmatpush.bf16.msra.mxu0 %v4495
    %4634 = vmatpush.bf16.msra.mxu0 %v4494
    %4635 = vmatmul.bf16.gmra.mxu0 %v4091
    %v4636 = vpop.f32.mrf.mxu0
    %v4637 = vadd.f32 %v4624, %v4636
    %v4638 = vpop.f32.mrf.mxu0
    %4639 = vdwg.mxu0
    %4640 = vmatpush.bf16.msra.mxu0 %v4509
    %4641 = vmatpush.bf16.msra.mxu0 %v4508
    %4642 = vmatpush.bf16.msra.mxu0 %v4507
    %4643 = vmatpush.bf16.msra.mxu0 %v4506
    %4644 = vmatpush.bf16.msra.mxu0 %v4505
    %4645 = vmatpush.bf16.msra.mxu0 %v4504
    %4646 = vmatpush.bf16.msra.mxu0 %v4503
    %4647 = vmatpush.bf16.msra.mxu0 %v4502
    %4648 = vmatmul.bf16.gmra.mxu0 %v4092
    %v4649 = vpop.f32.mrf.mxu0
    %v4650 = vadd.f32 %v4637, %v4649
    %v4651 = vpop.f32.mrf.mxu0
    %4652 = vdwg.mxu0
    %4653 = vmatpush.bf16.msra.mxu0 %v4517
    %4654 = vmatpush.bf16.msra.mxu0 %v4516
    %4655 = vmatpush.bf16.msra.mxu0 %v4515
    %4656 = vmatpush.bf16.msra.mxu0 %v4514
    %4657 = vmatpush.bf16.msra.mxu0 %v4513
    %4658 = vmatpush.bf16.msra.mxu0 %v4512
    %4659 = vmatpush.bf16.msra.mxu0 %v4511
    %4660 = vmatpush.bf16.msra.mxu0 %v4510
    %4661 = vmatmul.bf16.gmra.mxu0 %v4093
    %v4662 = vpop.f32.mrf.mxu0
    %v4663 = vadd.f32 %v4650, %v4662
    %v4664 = vpop.f32.mrf.mxu0
    %4665 = vdwg.mxu0
    %4666 = vmatpush.bf16.msra.mxu0 %v4525
    %4667 = vmatpush.bf16.msra.mxu0 %v4524
    %4668 = vmatpush.bf16.msra.mxu0 %v4523
    %4669 = vmatpush.bf16.msra.mxu0 %v4522
    %4670 = vmatpush.bf16.msra.mxu0 %v4521
    %4671 = vmatpush.bf16.msra.mxu0 %v4520
    %4672 = vmatpush.bf16.msra.mxu0 %v4519
    %4673 = vmatpush.bf16.msra.mxu0 %v4518
    %4674 = vmatmul.bf16.gmra.mxu0 %v4094
    %v4675 = vpop.f32.mrf.mxu0
    %v4676 = vadd.f32 %v4663, %v4675
    %v4677 = vpop.f32.mrf.mxu0
    %4678 = vdwg.mxu0
    %4679 = vmatpush.bf16.msra.mxu0 %v4533
    %4680 = vmatpush.bf16.msra.mxu0 %v4532
    %4681 = vmatpush.bf16.msra.mxu0 %v4531
    %4682 = vmatpush.bf16.msra.mxu0 %v4530
    %4683 = vmatpush.bf16.msra.mxu0 %v4529
    %4684 = vmatpush.bf16.msra.mxu0 %v4528
    %4685 = vmatpush.bf16.msra.mxu0 %v4527
    %4686 = vmatpush.bf16.msra.mxu0 %v4526
    %4687 = vmatmul.bf16.gmra.mxu0 %v4095
    %v4688 = vpop.f32.mrf.mxu0
    %v4689 = vadd.f32 %v4676, %v4688
    %v4690 = vpop.f32.mrf.mxu0
    %4691 = vdwg.mxu0
    %4692 = vmatpush.bf16.msra.mxu0 %v4541
    %4693 = vmatpush.bf16.msra.mxu0 %v4540
    %4694 = vmatpush.bf16.msra.mxu0 %v4539
    %4695 = vmatpush.bf16.msra.mxu0 %v4538
    %4696 = vmatpush.bf16.msra.mxu0 %v4537
    %4697 = vmatpush.bf16.msra.mxu0 %v4536
    %4698 = vmatpush.bf16.msra.mxu0 %v4535
    %4699 = vmatpush.bf16.msra.mxu0 %v4534
    %4700 = vmatmul.bf16.gmra.mxu0 %v4096
    %v4701 = vpop.f32.mrf.mxu0
    %v4702 = vadd.f32 %v4689, %v4701
    %v4703 = vpop.f32.mrf.mxu0
    %4704 = vdwg.mxu0
    %4705 = vmatpush.bf16.msra.mxu0 %v4549
    %4706 = vmatpush.bf16.msra.mxu0 %v4548
    %4707 = vmatpush.bf16.msra.mxu0 %v4547
    %4708 = vmatpush.bf16.msra.mxu0 %v4546
    %4709 = vmatpush.bf16.msra.mxu0 %v4545
    %4710 = vmatpush.bf16.msra.mxu0 %v4544
    %4711 = vmatpush.bf16.msra.mxu0 %v4543
    %4712 = vmatpush.bf16.msra.mxu0 %v4542
    %4713 = vmatmul.bf16.gmra.mxu0 %v4097
    %v4714 = vpop.f32.mrf.mxu0
    %v4715 = vadd.f32 %v4702, %v4714
    %v4716 = vpop.f32.mrf.mxu0
    %4717 = vdwg.mxu0
    %v4718 = vmax.f32 %v4715, 0.0
    %v4719 = vpack.c.bf16 %v4718, %v4718
    %v4720 = vld [vmem:[#allocation11] sm:$0xf]
    %v4721 = vld [vmem:[#allocation11 + $0x4] sm:$0xf]
    %v4722 = vld [vmem:[#allocation11 + $0x8] sm:$0xf]
    %v4723 = vld [vmem:[#allocation11 + $0xc] sm:$0xf]
    %v4724 = vld [vmem:[#allocation11 + $0x10] sm:$0xf]
    %v4725 = vld [vmem:[#allocation11 + $0x14] sm:$0xf]
    %v4726 = vld [vmem:[#allocation11 + $0x18] sm:$0xf]
    %v4727 = vld [vmem:[#allocation11 + $0x1c] sm:$0xf]
    %v4728 = vld [vmem:[#allocation11 + $0x20] sm:$0xf]
    %v4729 = vld [vmem:[#allocation11 + $0x24] sm:$0xf]
    %v4730 = vld [vmem:[#allocation11 + $0x28] sm:$0xf]
    %v4731 = vld [vmem:[#allocation11 + $0x2c] sm:$0xf]
    %v4732 = vld [vmem:[#allocation11 + $0x30] sm:$0xf]
    %v4733 = vld [vmem:[#allocation11 + $0x34] sm:$0xf]
    %v4734 = vld [vmem:[#allocation11 + $0x38] sm:$0xf]
    %v4735 = vld [vmem:[#allocation11 + $0x3c] sm:$0xf]
    %v4736 = vld [vmem:[#allocation13] sm:$0x1]
    %v4738 = vperm.slane %v4736, 0
    %v4756 = vunpack.c.l.b16 %v4720
    %v4757 = vunpack.c.l.b16 %v4721
    %v4758 = vunpack.c.l.b16 %v4722
    %v4759 = vunpack.c.l.b16 %v4723
    %v4760 = vunpack.c.l.b16 %v4724
    %v4761 = vunpack.c.l.b16 %v4725
    %v4762 = vunpack.c.l.b16 %v4726
    %v4763 = vunpack.c.l.b16 %v4727
    %v4764 = vunpack.c.l.b16 %v4728
    %v4765 = vunpack.c.l.b16 %v4729
    %v4766 = vunpack.c.l.b16 %v4730
    %v4767 = vunpack.c.l.b16 %v4731
    %v4768 = vunpack.c.l.b16 %v4732
    %v4769 = vunpack.c.l.b16 %v4733
    %v4770 = vunpack.c.l.b16 %v4734
    %v4771 = vunpack.c.l.b16 %v4735
    %v4772 = vpack.c.b16 %v4757, %v4756
    %v4773 = vpack.c.b16 %v4759, %v4758
    %v4774 = vpack.c.b16 %v4761, %v4760
    %v4775 = vpack.c.b16 %v4763, %v4762
    %v4776 = vpack.c.b16 %v4765, %v4764
    %v4777 = vpack.c.b16 %v4767, %v4766
    %v4778 = vpack.c.b16 %v4769, %v4768
    %v4779 = vpack.c.b16 %v4771, %v4770
    %4788 = vmatpush.bf16.msra.mxu0 %v4779
    %4789 = vmatpush.bf16.msra.mxu0 %v4778
    %4790 = vmatpush.bf16.msra.mxu0 %v4777
    %4791 = vmatpush.bf16.msra.mxu0 %v4776
    %4792 = vmatpush.bf16.msra.mxu0 %v4775
    %4793 = vmatpush.bf16.msra.mxu0 %v4774
    %4794 = vmatpush.bf16.msra.mxu0 %v4773
    %4795 = vmatpush.bf16.msra.mxu0 %v4772
    %4796 = vmatmul.bf16.gmra.mxu0 %v4719
    %v4797 = vpop.f32.mrf.mxu0
    %v4798 = vadd.f32 %v4738, %v4797
    %v4799 = vpop.f32.mrf.mxu0
    %4800 = vdwg.mxu0
    %4801 = vst [vmem:[#allocation14] sm:$0xff] %v4798
    // Predicated region
    $region58: #{tpu_custom_call.1} parent=1 // pred_check
      _
    $region59: #{tpu_custom_call.1} parent=1 // pred_check_branch
      %4803 = sbr.rel (0) target = $region61
    $region60: #{tpu_custom_call.1} parent=1 // pred_region
      %4805 = vsyncadd [#allocation4], 0
      %s4807 = sshll.u32 [#allocation14], 4
      %s4808 = int_to_ptr.vmem [resolvable:$true] %s4807
      %s4809 = sshll.u32 %s7, 4
      %s4810 = int_to_ptr.hbm [resolvable:$true] %s4809
      %4812 = dma.vmem_to_hbm [thread:$0]  %s4808, 128, %s4810, [#allocation4]
    $region61: #{tpu_custom_call.1} parent=1 // pred_fallthru
      _
    // Predicated region
    $region62: #{tpu_custom_call.1} parent=1 // pred_check
      _
    $region63: #{tpu_custom_call.1} parent=1 // pred_check_branch
      %4814 = sbr.rel (0) target = $region65
    $region64: #{tpu_custom_call.1} parent=1 // pred_region
      %4816 = dma.done [#allocation4], 128
    $region65: #{tpu_custom_call.1} parent=1 // pred_fallthru
      _
    %4817 = vsyncpa [#allocation3], 1
    %4818 = vsyncpa [#allocation6], 1
    %4819 = vsyncpa [#allocation9], 1
    %4820 = vsyncpa [#allocation12], 1
    %4821 = vsyncpa [#allocation4], 1

</llo_original>
